<compile_context>
chip_gen: v7x
topology: tpu7x:2x2x1
jax: 0.10.0
libtpu: 0.0.40
codegen_flags: <defaults>
</compile_context>

<pallas_src>
import functools

import jax
import jax.numpy as jnp
import numpy as np
from jax import lax
from jax.experimental import pallas as pl
from jax.experimental.pallas import tpu as pltpu

EPS = 1e-5                      # PyTorch BatchNorm2d default eps
_LANES = 128                    # lane width: pad all channel dims to this
_VMEM_BUDGET = 48 * 1024 * 1024  # conservative (fits v7x's 64 MiB / TC)


# ----------------------------- small helpers ---------------------------------
def _round_up(x, m):
    return (x + m - 1) // m * m


def _fold_bn(gamma, beta, mean, var):
    """Fold eval-mode BatchNorm into per-channel scale / bias, shaped (1, C)."""
    scale = gamma / jnp.sqrt(var + EPS)
    bias = beta - mean * scale
    return (scale.reshape(1, -1).astype(jnp.float32),
            bias.reshape(1, -1).astype(jnp.float32))


def _pad_last(a, target):
    if a.shape[-1] == target:
        return a
    pad = [(0, 0)] * (a.ndim - 1) + [(0, target - a.shape[-1])]
    return jnp.pad(a, pad)


def _pad2(w, rows, cols):
    return jnp.pad(w, ((0, rows - w.shape[0]), (0, cols - w.shape[1])))


# ------------------------------ fused kernel ----------------------------------
def _bottleneck_kernel(xp_ref, w1_ref, b1_ref, w2_ref, b2_ref, w3_ref, b3_ref,
                       *args, stride, H, W, Wp, Ho, Wo, shortcut):
    """Whole BottleNeck for one image; all intermediates stay in VMEM."""
    if shortcut == "none":
        o_ref, h_scr = args
        xi_ref = ws_ref = bs_ref = None
    elif shortcut == "identity":
        xi_ref, o_ref, h_scr = args
        ws_ref = bs_ref = None
    else:  # "conv"
        xi_ref, ws_ref, bs_ref, o_ref, h_scr = args

    c_mid = h_scr.shape[-1]
    Hp = H + 2

    # ---- 1x1 expand (BN folded into w1) + ReLU6, over the spatially padded
    #      image, f32 MXU accumulation ----------------------------------------
    xp = xp_ref[0]                                            # (Hp*Wp, Cin_p)
    h = jnp.dot(xp, w1_ref[...], preferred_element_type=jnp.float32)
    h = jnp.clip(h + b1_ref[...], 0.0, 6.0)
    h3 = h.reshape(Hp, Wp, c_mid)

    # Zero the padding ring (the depthwise conv expects a zero-padded input);
    # the expanded activation never leaves VMEM.
    row = lax.broadcasted_iota(jnp.int32, (Hp, Wp, 1), 0)
    col = lax.broadcasted_iota(jnp.int32, (Hp, Wp, 1), 1)
    interior = (row >= 1) & (row <= H) & (col >= 1) & (col <= W)
    h_scr[...] = jnp.where(interior, h3, 0.0)

    # ---- 3x3 depthwise (pad=1, stride) + BN + ReLU6: taps read straight from
    #      the VMEM scratch, no 9x patch tensor -------------------------------
    w2 = w2_ref[...]                                          # (9, Cmid_p) f32
    acc = jnp.zeros((Ho, Wo, c_mid), jnp.float32)
    for k in range(9):
        dh, dw = divmod(k, 3)
        if stride == 1:
            tap = h_scr[dh:dh + Ho, dw:dw + Wo, :]
        else:
            tap = h_scr[pl.ds(dh, Ho, stride), pl.ds(dw, Wo, stride), :]
        acc = acc + tap * w2[k]
    d = jnp.clip(acc + b2_ref[...], 0.0, 6.0)

    # ---- 1x1 projection (BN folded) + fused shortcut -------------------------
    d2 = d.reshape(Ho * Wo, c_mid).astype(w3_ref.dtype)
    y = jnp.dot(d2, w3_ref[...], preferred_element_type=jnp.float32) + b3_ref[...]
    if shortcut == "identity":
        y = y + xi_ref[0].astype(jnp.float32)
    elif shortcut == "conv":
        y = y + (jnp.dot(xi_ref[0], ws_ref[...],
                         preferred_element_type=jnp.float32) + bs_ref[...])
    o_ref[0] = y.astype(o_ref.dtype)


# ------------------------------ forward wrapper --------------------------------
def bottleneck_forward(x_nchw, params, stride, *, compute_dtype=jnp.float32):
    N, Cin, H, W = x_nchw.shape
    Cmid = params["w1"].shape[1]
    Cout = params["w3"].shape[1]
    Ho = (H + 2 - 3) // stride + 1
    Wo = (W + 2 - 3) // stride + 1
    assert Wo % 8 == 0, "fused kernel assumes the output width is a multiple of 8"

    cin_p = _round_up(Cin, _LANES)
    cmid_p = _round_up(Cmid, _LANES)
    cout_p = _round_up(Cout, _LANES)
    wp = _round_up(W + 2, 8)          # padded width (layout-friendly reshapes)

    # ---- layout + BN folding (cheap XLA glue, done once per call) -----------
    x_nhwc = jnp.transpose(x_nchw, (0, 2, 3, 1)).astype(jnp.float32)
    x_nhwc = _pad_last(x_nhwc, cin_p)                               # lane-dense
    x_sp = jnp.pad(x_nhwc, ((0, 0), (1, 1), (1, wp - W - 1), (0, 0)))
    x_pad = x_sp.reshape(N, (H + 2) * wp, cin_p).astype(compute_dtype)

    s1, b1 = _fold_bn(*params["bn1"])
    w1 = _pad2(params["w1"].astype(jnp.float32) * s1, cin_p, cmid_p).astype(compute_dtype)
    b1 = _pad_last(b1, cmid_p)

    s2, b2 = _fold_bn(*params["bn2"])
    w2 = _pad_last(params["w2"].astype(jnp.float32).reshape(9, Cmid) * s2, cmid_p)
    b2 = _pad_last(b2, cmid_p)

    s3, b3 = _fold_bn(*params["bn3"])
    w3 = _pad2(params["w3"].astype(jnp.float32) * s3, cmid_p, cout_p).astype(compute_dtype)
    b3 = _pad_last(b3, cout_p)

    if stride != 1:
        shortcut = "none"
    elif Cin == Cout:
        shortcut = "identity"
    else:
        shortcut = "conv"

    args = [x_pad, w1, b1, w2, b2, w3, b3]
    in_specs = [
        pl.BlockSpec((1, (H + 2) * wp, cin_p), lambda n: (n, 0, 0)),
        pl.BlockSpec((cin_p, cmid_p), lambda n: (0, 0)),
        pl.BlockSpec((1, cmid_p), lambda n: (0, 0)),
        pl.BlockSpec((9, cmid_p), lambda n: (0, 0)),
        pl.BlockSpec((1, cmid_p), lambda n: (0, 0)),
        pl.BlockSpec((cmid_p, cout_p), lambda n: (0, 0)),
        pl.BlockSpec((1, cout_p), lambda n: (0, 0)),
    ]
    if shortcut != "none":
        x_int = x_nhwc.reshape(N, H * W, cin_p).astype(compute_dtype)
        args.append(x_int)
        in_specs.append(pl.BlockSpec((1, H * W, cin_p), lambda n: (n, 0, 0)))
    if shortcut == "conv":
        ss, bs = _fold_bn(*params["bns"])
        ws = _pad2(params["ws"].astype(jnp.float32) * ss, cin_p, cout_p).astype(compute_dtype)
        bs = _pad_last(bs, cout_p)
        args += [ws, bs]
        in_specs += [pl.BlockSpec((cin_p, cout_p), lambda n: (0, 0)),
                     pl.BlockSpec((1, cout_p), lambda n: (0, 0))]

    # VMEM budget: per-image blocks (double-buffered) + f32 VMEM scratch.
    itm = jnp.dtype(compute_dtype).itemsize
    act_rows = (H + 2) * wp + (H * W if shortcut != "none" else 0)
    vmem_est = (
        2 * (act_rows * cin_p + Ho * Wo * cout_p) * itm
        + 2 * (cin_p * cmid_p + cmid_p * cout_p
               + (cin_p * cout_p if shortcut == "conv" else 0)) * itm
        + 2 * (11 * cmid_p + 2 * cout_p) * 4
        + (H + 2) * wp * cmid_p * 4
    )
    assert vmem_est < _VMEM_BUDGET, (
        "per-image working set exceeds the VMEM budget; use row-band tiling")

    kernel = functools.partial(
        _bottleneck_kernel, stride=stride, H=H, W=W, Wp=wp, Ho=Ho, Wo=Wo,
        shortcut=shortcut)

    out = pl.pallas_call(
        kernel,
        out_shape=jax.ShapeDtypeStruct((N, Ho * Wo, cout_p), compute_dtype),
        grid=(N,),
        in_specs=in_specs,
        out_specs=pl.BlockSpec((1, Ho * Wo, cout_p), lambda n: (n, 0, 0)),
        scratch_shapes=[pltpu.VMEM((H + 2, wp, cmid_p), jnp.float32)],
        compiler_params=pltpu.CompilerParams(
            dimension_semantics=("parallel",),
            vmem_limit_bytes=int(min(_VMEM_BUDGET,
                                     max(32 * 1024 * 1024, 2 * vmem_est))),
        ),
    )(*args)

    out = out[:, :, :Cout].astype(jnp.float32).reshape(N, Ho, Wo, Cout)
    return jnp.transpose(out, (0, 3, 1, 2))  # NHWC -> NCHW


# ----------------------------- pure-JAX reference ------------------------------
def _bn_ref(x, gamma, beta, mean, var):
    return (x - mean) / jnp.sqrt(var + EPS) * gamma + beta


def reference(x_nchw, params, stride):
    x = jnp.transpose(x_nchw, (0, 2, 3, 1)).astype(jnp.float32)
    Cin = x.shape[-1]
    Cmid = params["w1"].shape[1]
    Cout = params["w3"].shape[1]
    dn = ("NHWC", "HWIO", "NHWC")

    h = lax.conv_general_dilated(x, params["w1"].reshape(1, 1, Cin, Cmid),
                                 (1, 1), "VALID", dimension_numbers=dn)
    h = jnp.clip(_bn_ref(h, *params["bn1"]), 0.0, 6.0)
    h = lax.conv_general_dilated(h, params["w2"].reshape(3, 3, 1, Cmid),
                                 (stride, stride), ((1, 1), (1, 1)),
                                 dimension_numbers=dn, feature_group_count=Cmid)
    h = jnp.clip(_bn_ref(h, *params["bn2"]), 0.0, 6.0)
    h = lax.conv_general_dilated(h, params["w3"].reshape(1, 1, Cmid, Cout),
                                 (1, 1), "VALID", dimension_numbers=dn)
    h = _bn_ref(h, *params["bn3"])
    if stride == 1:
        if Cin == Cout:
            sc = x
        else:
            sc = lax.conv_general_dilated(x, params["ws"].reshape(1, 1, Cin, Cout),
                                          (1, 1), "VALID", dimension_numbers=dn)
            sc = _bn_ref(sc, *params["bns"])
        h = h + sc
    return jnp.transpose(h, (0, 3, 1, 2))


# ----------------------------- deterministic params ----------------------------
def init_params(key, in_c, out_c, stride, expansion):
    mid = in_c * expansion
    ks = jax.random.split(key, 8)

    def bn(k, c):
        kg, kb, km, kv = jax.random.split(k, 4)
        return (jax.random.normal(kg, (c,)) * 0.1 + 1.0,               # gamma
                jax.random.normal(kb, (c,)) * 0.1,                     # beta
                jax.random.normal(km, (c,)) * 0.1,                     # running_mean
                jax.random.uniform(kv, (c,), minval=0.5, maxval=1.5))  # running_var

    p = {
        "w1": jax.random.normal(ks[0], (in_c, mid)) * 0.1,    # 1x1 expand (Cin, Cmid)
        "bn1": bn(ks[1], mid),
        "w2": jax.random.normal(ks[2], (3, 3, mid)) * 0.1,    # 3x3 depthwise (H, W, Cmid)
        "bn2": bn(ks[3], mid),
        "w3": jax.random.normal(ks[4], (mid, out_c)) * 0.1,   # 1x1 project (Cmid, Cout)
        "bn3": bn(ks[5], out_c),
    }
    if stride == 1 and in_c != out_c:
        p["ws"] = jax.random.normal(ks[6], (in_c, out_c)) * 0.1
        p["bns"] = bn(ks[7], out_c)
    return p


# -------------------------------------- main ------------------------------------
if __name__ == "__main__":
    root = jax.random.PRNGKey(0)
    kx1, kp1, kx2, kp2 = jax.random.split(root, 4)

    # Case 1: stride=1, Cin != Cout -> 1x1-conv shortcut fused into the kernel.
    in_c, out_c, stride, expansion = 4, 8, 1, 6
    x1 = jax.random.normal(kx1, (2, in_c, 16, 16), dtype=jnp.float32)  # NCHW
    p1 = init_params(kp1, in_c, out_c, stride, expansion)

    out1 = jax.block_until_ready(bottleneck_forward(x1, p1, stride))
    assert out1.shape == (2, out_c, 16, 16), out1.shape
    np.testing.assert_allclose(np.asarray(out1),
                               np.asarray(reference(x1, p1, stride)),
                               atol=2e-4, rtol=2e-4)

    # Case 2: stride=1, Cin == Cout -> identity shortcut.
    x2 = jax.random.normal(kx2, (2, out_c, 16, 16), dtype=jnp.float32)
    p2 = init_params(kp2, out_c, out_c, 1, expansion)
    out2 = jax.block_until_ready(bottleneck_forward(x2, p2, 1))
    np.testing.assert_allclose(np.asarray(out2),
                               np.asarray(reference(x2, p2, 1)),
                               atol=2e-4, rtol=2e-4)

    # Case 3: bf16 activations/weights at the HBM boundary (f32 accumulation
    # and f32 BN/ReLU6 epilogue inside the kernel).
    out_bf16 = jax.block_until_ready(
        bottleneck_forward(x1, p1, stride, compute_dtype=jnp.bfloat16))
    np.testing.assert_allclose(np.asarray(out_bf16),
                               np.asarray(reference(x1, p1, stride)),
                               atol=5e-2, rtol=5e-2)

    print("KERNEL_OK")
</pallas_src>

<mosaic_0001>
module attributes {stable_mosaic.version = 11 : i64} {
  func.func @_bottleneck_kernel(%arg0: i32, %arg1: memref<1x432x128xf32, #tpu.memory_space<vmem>>, %arg2: memref<128x128xf32, #tpu.memory_space<vmem>>, %arg3: memref<1x128xf32, #tpu.memory_space<vmem>>, %arg4: memref<9x128xf32, #tpu.memory_space<vmem>>, %arg5: memref<1x128xf32, #tpu.memory_space<vmem>>, %arg6: memref<128x128xf32, #tpu.memory_space<vmem>>, %arg7: memref<1x128xf32, #tpu.memory_space<vmem>>, %arg8: memref<1x256x128xf32, #tpu.memory_space<vmem>>, %arg9: memref<128x128xf32, #tpu.memory_space<vmem>>, %arg10: memref<1x128xf32, #tpu.memory_space<vmem>>, %arg11: memref<1x256x128xf32, #tpu.memory_space<vmem>>, %arg12: memref<18x24x128xf32, #tpu.memory_space<vmem>>) attributes {dimension_semantics = [#tpu.dimension_semantics<parallel>], iteration_bounds = array<i64: 2>, scalar_prefetch = 0 : i64, scratch_operands = 1 : i64, tpu.core_type = #tpu.core_type<tc>, window_params = [{transform_indices = @transform_0, window_bounds = array<i64: 1, 432, 128>}, {pipeline_mode = #tpu.pipeline_mode<synchronous>, transform_indices = @transform_1, window_bounds = array<i64: 128, 128>}, {pipeline_mode = #tpu.pipeline_mode<synchronous>, transform_indices = @transform_2, window_bounds = array<i64: 1, 128>}, {pipeline_mode = #tpu.pipeline_mode<synchronous>, transform_indices = @transform_3, window_bounds = array<i64: 9, 128>}, {pipeline_mode = #tpu.pipeline_mode<synchronous>, transform_indices = @transform_4, window_bounds = array<i64: 1, 128>}, {pipeline_mode = #tpu.pipeline_mode<synchronous>, transform_indices = @transform_5, window_bounds = array<i64: 128, 128>}, {pipeline_mode = #tpu.pipeline_mode<synchronous>, transform_indices = @transform_6, window_bounds = array<i64: 1, 128>}, {transform_indices = @transform_7, window_bounds = array<i64: 1, 256, 128>}, {pipeline_mode = #tpu.pipeline_mode<synchronous>, transform_indices = @transform_8, window_bounds = array<i64: 128, 128>}, {pipeline_mode = #tpu.pipeline_mode<synchronous>, transform_indices = @transform_9, window_bounds = array<i64: 1, 128>}, {transform_indices = @transform_10, window_bounds = array<i64: 1, 256, 128>}]} {
    %c0 = arith.constant 0 : index
    %c0_0 = arith.constant 0 : index
    %c0_1 = arith.constant 0 : index
    %0 = vector.load %arg1[%c0, %c0_0, %c0_1] : memref<1x432x128xf32, #tpu.memory_space<vmem>>, vector<1x432x128xf32>
    %1 = vector.shape_cast %0 : vector<1x432x128xf32> to vector<432x128xf32>
    %c0_2 = arith.constant 0 : index
    %c0_3 = arith.constant 0 : index
    %2 = vector.load %arg2[%c0_2, %c0_3] : memref<128x128xf32, #tpu.memory_space<vmem>>, vector<128x128xf32>
    %cst = arith.constant dense<0.000000e+00> : vector<432x128xf32>
    %3 = tpu.matmul %1, %2, %cst {dimension_numbers = #tpu.dot_dimension_numbers<[1], [0], [0], [1], [0, 0, 1, 1], [], []>} : vector<432x128xf32>, vector<128x128xf32>, vector<432x128xf32> -> vector<432x128xf32>
    %c0_4 = arith.constant 0 : index
    %c0_5 = arith.constant 0 : index
    %4 = vector.load %arg3[%c0_4, %c0_5] : memref<1x128xf32, #tpu.memory_space<vmem>>, vector<1x128xf32>
    %5 = vector.broadcast %4 : vector<1x128xf32> to vector<432x128xf32>
    %6 = arith.addf %3, %5 : vector<432x128xf32>
    %cst_6 = arith.constant 0.000000e+00 : f32
    %cst_7 = arith.constant 6.000000e+00 : f32
    %7 = vector.broadcast %cst_6 : f32 to vector<432x128xf32>
    %8 = arith.maximumf %7, %6 : vector<432x128xf32>
    %9 = vector.broadcast %cst_7 : f32 to vector<432x128xf32>
    %10 = arith.minimumf %9, %8 : vector<432x128xf32>
    %11 = vector.shape_cast %10 : vector<432x128xf32> to vector<18x24x128xf32>
    %12 = tpu.iota {dimensions = array<i32: 0>} : vector<18x24x1xi32>
    %13 = tpu.iota {dimensions = array<i32: 1>} : vector<18x24x1xi32>
    %c1_i32 = arith.constant 1 : i32
    %14 = vector.broadcast %c1_i32 : i32 to vector<18x24x1xi32>
    %15 = arith.cmpi sge, %12, %14 : vector<18x24x1xi32>
    %c16_i32 = arith.constant 16 : i32
    %16 = vector.broadcast %c16_i32 : i32 to vector<18x24x1xi32>
    %17 = arith.cmpi sle, %12, %16 : vector<18x24x1xi32>
    %18 = arith.andi %15, %17 : vector<18x24x1xi1>
    %c1_i32_8 = arith.constant 1 : i32
    %19 = vector.broadcast %c1_i32_8 : i32 to vector<18x24x1xi32>
    %20 = arith.cmpi sge, %13, %19 : vector<18x24x1xi32>
    %21 = arith.andi %18, %20 : vector<18x24x1xi1>
    %c16_i32_9 = arith.constant 16 : i32
    %22 = vector.broadcast %c16_i32_9 : i32 to vector<18x24x1xi32>
    %23 = arith.cmpi sle, %13, %22 : vector<18x24x1xi32>
    %24 = arith.andi %21, %23 : vector<18x24x1xi1>
    %cst_10 = arith.constant 0.000000e+00 : f32
    %25 = vector.shape_cast %24 : vector<18x24x1xi1> to vector<18x24x1xi1>
    %26 = vector.broadcast %25 : vector<18x24x1xi1> to vector<18x24x128xi1>
    %27 = vector.broadcast %cst_10 : f32 to vector<18x24x128xf32>
    %28 = arith.select %26, %11, %27 : vector<18x24x128xi1>, vector<18x24x128xf32>
    %c0_11 = arith.constant 0 : index
    %c0_12 = arith.constant 0 : index
    %c0_13 = arith.constant 0 : index
    %29 = vector.load %arg12[%c0_11, %c0_12, %c0_13] : memref<18x24x128xf32, #tpu.memory_space<vmem>>, vector<18x24x128xf32>
    tpu.vector_store %arg12[%c0_11, %c0_12, %c0_13], %28 {strides = array<i32>} : memref<18x24x128xf32, #tpu.memory_space<vmem>>, vector<18x24x128xf32>,
    %c0_14 = arith.constant 0 : index
    %c0_15 = arith.constant 0 : index
    %30 = vector.load %arg4[%c0_14, %c0_15] : memref<9x128xf32, #tpu.memory_space<vmem>>, vector<9x128xf32>
    %cst_16 = arith.constant 0.000000e+00 : f32
    %31 = vector.broadcast %cst_16 : f32 to vector<16x16x128xf32>
    %c0_17 = arith.constant 0 : index
    %c0_18 = arith.constant 0 : index
    %c0_19 = arith.constant 0 : index
    %32 = vector.load %arg12[%c0_17, %c0_18, %c0_19] : memref<18x24x128xf32, #tpu.memory_space<vmem>>, vector<16x16x128xf32>
    %33 = vector.extract_strided_slice %30 {offsets = [0, 0], sizes = [1, 128], strides = [1, 1]} : vector<9x128xf32> to vector<1x128xf32>
    %34 = vector.shape_cast %33 : vector<1x128xf32> to vector<128xf32>
    %35 = vector.shape_cast %34 : vector<128xf32> to vector<1x1x128xf32>
    %36 = vector.broadcast %35 : vector<1x1x128xf32> to vector<16x16x128xf32>
    %37 = arith.mulf %32, %36 : vector<16x16x128xf32>
    %38 = arith.addf %31, %37 : vector<16x16x128xf32>
    %c0_20 = arith.constant 0 : index
    %c1 = arith.constant 1 : index
    %c0_21 = arith.constant 0 : index
    %39 = vector.load %arg12[%c0_20, %c1, %c0_21] : memref<18x24x128xf32, #tpu.memory_space<vmem>>, vector<16x16x128xf32>
    %40 = vector.extract_strided_slice %30 {offsets = [1, 0], sizes = [1, 128], strides = [1, 1]} : vector<9x128xf32> to vector<1x128xf32>
    %41 = vector.shape_cast %40 : vector<1x128xf32> to vector<128xf32>
    %42 = vector.shape_cast %41 : vector<128xf32> to vector<1x1x128xf32>
    %43 = vector.broadcast %42 : vector<1x1x128xf32> to vector<16x16x128xf32>
    %44 = arith.mulf %39, %43 : vector<16x16x128xf32>
    %45 = arith.addf %38, %44 : vector<16x16x128xf32>
    %c0_22 = arith.constant 0 : index
    %c2 = arith.constant 2 : index
    %c0_23 = arith.constant 0 : index
    %46 = vector.load %arg12[%c0_22, %c2, %c0_23] : memref<18x24x128xf32, #tpu.memory_space<vmem>>, vector<16x16x128xf32>
    %47 = vector.extract_strided_slice %30 {offsets = [2, 0], sizes = [1, 128], strides = [1, 1]} : vector<9x128xf32> to vector<1x128xf32>
    %48 = vector.shape_cast %47 : vector<1x128xf32> to vector<128xf32>
    %49 = vector.shape_cast %48 : vector<128xf32> to vector<1x1x128xf32>
    %50 = vector.broadcast %49 : vector<1x1x128xf32> to vector<16x16x128xf32>
    %51 = arith.mulf %46, %50 : vector<16x16x128xf32>
    %52 = arith.addf %45, %51 : vector<16x16x128xf32>
    %c1_24 = arith.constant 1 : index
    %c0_25 = arith.constant 0 : index
    %c0_26 = arith.constant 0 : index
    %53 = vector.load %arg12[%c1_24, %c0_25, %c0_26] : memref<18x24x128xf32, #tpu.memory_space<vmem>>, vector<16x16x128xf32>
    %54 = vector.extract_strided_slice %30 {offsets = [3, 0], sizes = [1, 128], strides = [1, 1]} : vector<9x128xf32> to vector<1x128xf32>
    %55 = vector.shape_cast %54 : vector<1x128xf32> to vector<128xf32>
    %56 = vector.shape_cast %55 : vector<128xf32> to vector<1x1x128xf32>
    %57 = vector.broadcast %56 : vector<1x1x128xf32> to vector<16x16x128xf32>
    %58 = arith.mulf %53, %57 : vector<16x16x128xf32>
    %59 = arith.addf %52, %58 : vector<16x16x128xf32>
    %c1_27 = arith.constant 1 : index
    %c1_28 = arith.constant 1 : index
    %c0_29 = arith.constant 0 : index
    %60 = vector.load %arg12[%c1_27, %c1_28, %c0_29] : memref<18x24x128xf32, #tpu.memory_space<vmem>>, vector<16x16x128xf32>
    %61 = vector.extract_strided_slice %30 {offsets = [4, 0], sizes = [1, 128], strides = [1, 1]} : vector<9x128xf32> to vector<1x128xf32>
    %62 = vector.shape_cast %61 : vector<1x128xf32> to vector<128xf32>
    %63 = vector.shape_cast %62 : vector<128xf32> to vector<1x1x128xf32>
    %64 = vector.broadcast %63 : vector<1x1x128xf32> to vector<16x16x128xf32>
    %65 = arith.mulf %60, %64 : vector<16x16x128xf32>
    %66 = arith.addf %59, %65 : vector<16x16x128xf32>
    %c1_30 = arith.constant 1 : index
    %c2_31 = arith.constant 2 : index
    %c0_32 = arith.constant 0 : index
    %67 = vector.load %arg12[%c1_30, %c2_31, %c0_32] : memref<18x24x128xf32, #tpu.memory_space<vmem>>, vector<16x16x128xf32>
    %68 = vector.extract_strided_slice %30 {offsets = [5, 0], sizes = [1, 128], strides = [1, 1]} : vector<9x128xf32> to vector<1x128xf32>
    %69 = vector.shape_cast %68 : vector<1x128xf32> to vector<128xf32>
    %70 = vector.shape_cast %69 : vector<128xf32> to vector<1x1x128xf32>
    %71 = vector.broadcast %70 : vector<1x1x128xf32> to vector<16x16x128xf32>
    %72 = arith.mulf %67, %71 : vector<16x16x128xf32>
    %73 = arith.addf %66, %72 : vector<16x16x128xf32>
    %c2_33 = arith.constant 2 : index
    %c0_34 = arith.constant 0 : index
    %c0_35 = arith.constant 0 : index
    %74 = vector.load %arg12[%c2_33, %c0_34, %c0_35] : memref<18x24x128xf32, #tpu.memory_space<vmem>>, vector<16x16x128xf32>
    %75 = vector.extract_strided_slice %30 {offsets = [6, 0], sizes = [1, 128], strides = [1, 1]} : vector<9x128xf32> to vector<1x128xf32>
    %76 = vector.shape_cast %75 : vector<1x128xf32> to vector<128xf32>
    %77 = vector.shape_cast %76 : vector<128xf32> to vector<1x1x128xf32>
    %78 = vector.broadcast %77 : vector<1x1x128xf32> to vector<16x16x128xf32>
    %79 = arith.mulf %74, %78 : vector<16x16x128xf32>
    %80 = arith.addf %73, %79 : vector<16x16x128xf32>
    %c2_36 = arith.constant 2 : index
    %c1_37 = arith.constant 1 : index
    %c0_38 = arith.constant 0 : index
    %81 = vector.load %arg12[%c2_36, %c1_37, %c0_38] : memref<18x24x128xf32, #tpu.memory_space<vmem>>, vector<16x16x128xf32>
    %82 = vector.extract_strided_slice %30 {offsets = [7, 0], sizes = [1, 128], strides = [1, 1]} : vector<9x128xf32> to vector<1x128xf32>
    %83 = vector.shape_cast %82 : vector<1x128xf32> to vector<128xf32>
    %84 = vector.shape_cast %83 : vector<128xf32> to vector<1x1x128xf32>
    %85 = vector.broadcast %84 : vector<1x1x128xf32> to vector<16x16x128xf32>
    %86 = arith.mulf %81, %85 : vector<16x16x128xf32>
    %87 = arith.addf %80, %86 : vector<16x16x128xf32>
    %c2_39 = arith.constant 2 : index
    %c2_40 = arith.constant 2 : index
    %c0_41 = arith.constant 0 : index
    %88 = vector.load %arg12[%c2_39, %c2_40, %c0_41] : memref<18x24x128xf32, #tpu.memory_space<vmem>>, vector<16x16x128xf32>
    %89 = vector.extract_strided_slice %30 {offsets = [8, 0], sizes = [1, 128], strides = [1, 1]} : vector<9x128xf32> to vector<1x128xf32>
    %90 = vector.shape_cast %89 : vector<1x128xf32> to vector<128xf32>
    %91 = vector.shape_cast %90 : vector<128xf32> to vector<1x1x128xf32>
    %92 = vector.broadcast %91 : vector<1x1x128xf32> to vector<16x16x128xf32>
    %93 = arith.mulf %88, %92 : vector<16x16x128xf32>
    %94 = arith.addf %87, %93 : vector<16x16x128xf32>
    %c0_42 = arith.constant 0 : index
    %c0_43 = arith.constant 0 : index
    %95 = vector.load %arg5[%c0_42, %c0_43] : memref<1x128xf32, #tpu.memory_space<vmem>>, vector<1x128xf32>
    %96 = vector.shape_cast %95 : vector<1x128xf32> to vector<1x1x128xf32>
    %97 = vector.broadcast %96 : vector<1x1x128xf32> to vector<16x16x128xf32>
    %98 = arith.addf %94, %97 : vector<16x16x128xf32>
    %cst_44 = arith.constant 0.000000e+00 : f32
    %cst_45 = arith.constant 6.000000e+00 : f32
    %99 = vector.broadcast %cst_44 : f32 to vector<16x16x128xf32>
    %100 = arith.maximumf %99, %98 : vector<16x16x128xf32>
    %101 = vector.broadcast %cst_45 : f32 to vector<16x16x128xf32>
    %102 = arith.minimumf %101, %100 : vector<16x16x128xf32>
    %103 = vector.shape_cast %102 : vector<16x16x128xf32> to vector<256x128xf32>
    %c0_46 = arith.constant 0 : index
    %c0_47 = arith.constant 0 : index
    %104 = vector.load %arg6[%c0_46, %c0_47] : memref<128x128xf32, #tpu.memory_space<vmem>>, vector<128x128xf32>
    %cst_48 = arith.constant dense<0.000000e+00> : vector<256x128xf32>
    %105 = tpu.matmul %103, %104, %cst_48 {dimension_numbers = #tpu.dot_dimension_numbers<[1], [0], [0], [1], [0, 0, 1, 1], [], []>} : vector<256x128xf32>, vector<128x128xf32>, vector<256x128xf32> -> vector<256x128xf32>
    %c0_49 = arith.constant 0 : index
    %c0_50 = arith.constant 0 : index
    %106 = vector.load %arg7[%c0_49, %c0_50] : memref<1x128xf32, #tpu.memory_space<vmem>>, vector<1x128xf32>
    %107 = vector.broadcast %106 : vector<1x128xf32> to vector<256x128xf32>
    %108 = arith.addf %105, %107 : vector<256x128xf32>
    %c0_51 = arith.constant 0 : index
    %c0_52 = arith.constant 0 : index
    %c0_53 = arith.constant 0 : index
    %109 = vector.load %arg8[%c0_51, %c0_52, %c0_53] : memref<1x256x128xf32, #tpu.memory_space<vmem>>, vector<1x256x128xf32>
    %110 = vector.shape_cast %109 : vector<1x256x128xf32> to vector<256x128xf32>
    %c0_54 = arith.constant 0 : index
    %c0_55 = arith.constant 0 : index
    %111 = vector.load %arg9[%c0_54, %c0_55] : memref<128x128xf32, #tpu.memory_space<vmem>>, vector<128x128xf32>
    %cst_56 = arith.constant dense<0.000000e+00> : vector<256x128xf32>
    %112 = tpu.matmul %110, %111, %cst_56 {dimension_numbers = #tpu.dot_dimension_numbers<[1], [0], [0], [1], [0, 0, 1, 1], [], []>} : vector<256x128xf32>, vector<128x128xf32>, vector<256x128xf32> -> vector<256x128xf32>
    %c0_57 = arith.constant 0 : index
    %c0_58 = arith.constant 0 : index
    %113 = vector.load %arg10[%c0_57, %c0_58] : memref<1x128xf32, #tpu.memory_space<vmem>>, vector<1x128xf32>
    %114 = vector.broadcast %113 : vector<1x128xf32> to vector<256x128xf32>
    %115 = arith.addf %112, %114 : vector<256x128xf32>
    %116 = arith.addf %108, %115 : vector<256x128xf32>
    %c0_59 = arith.constant 0 : index
    %c0_60 = arith.constant 0 : index
    %c0_61 = arith.constant 0 : index
    %117 = vector.load %arg11[%c0_59, %c0_60, %c0_61] : memref<1x256x128xf32, #tpu.memory_space<vmem>>, vector<1x256x128xf32>
    %118 = vector.shape_cast %117 : vector<1x256x128xf32> to vector<256x128xf32>
    %119 = vector.shape_cast %116 : vector<256x128xf32> to vector<1x256x128xf32>
    tpu.vector_store %arg11[%c0_59, %c0_60, %c0_61], %119 {strides = array<i32>} : memref<1x256x128xf32, #tpu.memory_space<vmem>>, vector<1x256x128xf32>,
    return
  }
  func.func @transform_0(%arg0: i32) -> (i32, i32, i32) {
    %c0_i32 = arith.constant 0 : i32
    %c0_i32_0 = arith.constant 0 : i32
    %c0_i32_1 = arith.constant 0 : i32
    return %arg0, %c0_i32, %c0_i32_0 : i32, i32, i32
  }
  func.func @transform_1(%arg0: i32) -> (i32, i32) {
    %c0_i32 = arith.constant 0 : i32
    %c0_i32_0 = arith.constant 0 : i32
    %c0_i32_1 = arith.constant 0 : i32
    return %c0_i32, %c0_i32_0 : i32, i32
  }
  func.func @transform_2(%arg0: i32) -> (i32, i32) {
    %c0_i32 = arith.constant 0 : i32
    %c0_i32_0 = arith.constant 0 : i32
    %c0_i32_1 = arith.constant 0 : i32
    return %c0_i32, %c0_i32_0 : i32, i32
  }
  func.func @transform_3(%arg0: i32) -> (i32, i32) {
    %c0_i32 = arith.constant 0 : i32
    %c0_i32_0 = arith.constant 0 : i32
    %c0_i32_1 = arith.constant 0 : i32
    return %c0_i32, %c0_i32_0 : i32, i32
  }
  func.func @transform_4(%arg0: i32) -> (i32, i32) {
    %c0_i32 = arith.constant 0 : i32
    %c0_i32_0 = arith.constant 0 : i32
    %c0_i32_1 = arith.constant 0 : i32
    return %c0_i32, %c0_i32_0 : i32, i32
  }
  func.func @transform_5(%arg0: i32) -> (i32, i32) {
    %c0_i32 = arith.constant 0 : i32
    %c0_i32_0 = arith.constant 0 : i32
    %c0_i32_1 = arith.constant 0 : i32
    return %c0_i32, %c0_i32_0 : i32, i32
  }
  func.func @transform_6(%arg0: i32) -> (i32, i32) {
    %c0_i32 = arith.constant 0 : i32
    %c0_i32_0 = arith.constant 0 : i32
    %c0_i32_1 = arith.constant 0 : i32
    return %c0_i32, %c0_i32_0 : i32, i32
  }
  func.func @transform_7(%arg0: i32) -> (i32, i32, i32) {
    %c0_i32 = arith.constant 0 : i32
    %c0_i32_0 = arith.constant 0 : i32
    %c0_i32_1 = arith.constant 0 : i32
    return %arg0, %c0_i32, %c0_i32_0 : i32, i32, i32
  }
  func.func @transform_8(%arg0: i32) -> (i32, i32) {
    %c0_i32 = arith.constant 0 : i32
    %c0_i32_0 = arith.constant 0 : i32
    %c0_i32_1 = arith.constant 0 : i32
    return %c0_i32, %c0_i32_0 : i32, i32
  }
  func.func @transform_9(%arg0: i32) -> (i32, i32) {
    %c0_i32 = arith.constant 0 : i32
    %c0_i32_0 = arith.constant 0 : i32
    %c0_i32_1 = arith.constant 0 : i32
    return %c0_i32, %c0_i32_0 : i32, i32
  }
  func.func @transform_10(%arg0: i32) -> (i32, i32, i32) {
    %c0_i32 = arith.constant 0 : i32
    %c0_i32_0 = arith.constant 0 : i32
    %c0_i32_1 = arith.constant 0 : i32
    return %arg0, %c0_i32, %c0_i32_0 : i32, i32, i32
  }
}

</mosaic_0001>

<llo_original>
// kernel: tpu_custom_call.1
$region0: #{tpu_custom_call.1}
  #allocation0 [shape = 'u32[]', space=smem, size = 0x4, offset = 0x4, fixed_abs, tag = 'smem constant byte address 0x4 - core index']
  #allocation1 [shape = 'u32[144,128]{1,0:T(1,128)}', space=vmem, size = 0x12000, scoped, tag = 'internal scratch']
  #allocation2 [shape = 'f32[18,24,128]{2,1,0:T(8,128)}', space=vmem, size = 0x36000, scoped, tag = 'scratch operand']
  %s0 = inlined_call_operand.hbm [shape: f32[2,432,128], index: 0, kind: input, shape index: {}]
  %s1 = inlined_call_operand.hbm [shape: f32[128,128], index: 1, kind: input, shape index: {}]
  %s2 = inlined_call_operand.vmem [shape: f32[1,128], index: 2, kind: input, shape index: {}]
  %s3 = inlined_call_operand.hbm [shape: f32[9,128], index: 3, kind: input, shape index: {}]
  %s4 = inlined_call_operand.vmem [shape: f32[1,128], index: 4, kind: input, shape index: {}]
  %s5 = inlined_call_operand.hbm [shape: f32[128,128], index: 5, kind: input, shape index: {}]
  %s6 = inlined_call_operand.vmem [shape: f32[1,128], index: 6, kind: input, shape index: {}]
  %s7 = inlined_call_operand.hbm [shape: f32[2,256,128], index: 7, kind: input, shape index: {}]
  %s8 = inlined_call_operand.hbm [shape: f32[128,128], index: 8, kind: input, shape index: {}]
  %s9 = inlined_call_operand.vmem [shape: f32[1,128], index: 9, kind: input, shape index: {}]
  %s10 = inlined_call_operand.hbm [shape: f32[2,256,128], index: 10, kind: output, shape index: {}]
  %s11 = sld [smem:[#allocation0]]
  $region97: #{tpu_custom_call.1} parent=0
    _
  %s13 = ssub.s32 1, %s11
  %s14 = scalar_select 0, %s13, %s11
  $region1: #{tpu_custom_call.1} parent=0
    #allocation3 [shape = 'u8[442368]{0}', space=vmem, size = 0x6c000, scoped, tag = 'input window, operand 0']
    #allocation4 [shape = 's32[2]{0}', space=sflag, size = 0x8, scoped, tag = 'scoped memory for tpu_custom_call.1']
    #allocation5 [shape = 's32[2]{0}', space=sflag, size = 0x8, scoped, tag = 'scoped memory for tpu_custom_call.1']
    #allocation6 [shape = 'u8[65536]{0}', space=vmem, size = 0x10000, scoped, tag = 'input window, operand 1, single buffered']
    #allocation7 [shape = 's32[1]{0}', space=sflag, size = 0x4, scoped, tag = 'scoped memory for tpu_custom_call.1']
    #allocation8 [shape = 'u8[8192]{0}', space=vmem, size = 0x2000, scoped, tag = 'input window, operand 3, single buffered']
    #allocation9 [shape = 'u8[65536]{0}', space=vmem, size = 0x10000, scoped, tag = 'input window, operand 5, single buffered']
    #allocation10 [shape = 's32[1]{0}', space=sflag, size = 0x4, scoped, tag = 'scoped memory for tpu_custom_call.1']
    #allocation11 [shape = 'u8[262144]{0}', space=vmem, size = 0x40000, scoped, tag = 'input window, operand 7']
    #allocation12 [shape = 'u8[65536]{0}', space=vmem, size = 0x10000, scoped, tag = 'input window, operand 8, single buffered']
    #allocation13 [shape = 'u8[262144]{0}', space=vmem, size = 0x40000, scoped, tag = 'output window, operand 0']
    %15 = vsyncpa [#allocation4], 0
    %s16 = scalar_lea.sflag [#allocation4], 1
    %17 = vsyncpa %s16, 0
    %18 = vsyncpa [#allocation7], 0
    %19 = vsyncpa [#allocation10], 0
    %20 = vsyncpa [#allocation5], 0
    %s21 = scalar_lea.sflag [#allocation5], 1
    %22 = vsyncpa %s21, 0
    loop: start=0, step=1, limit=4
    $region2: #{tpu_custom_call.1} parent=1 // loop_pre_header
      _
    $region3: #{tpu_custom_call.1} parent=1 // loop_header
      %s24 = sphi 0, %s28
      %p25 = scmp.ge.s32.totalorder %s24, 4
      %s34 = sphi 0, %s36
      %s37 = sphi 0, %s34
      %s38 = sphi 0, %s37
      %s54 = sphi 0, %s38
      %s58 = sphi 0, %s58
      %s60 = sphi 0, %s58
      %s61 = sphi 0, %s60
      %s75 = sphi 0, %s61
      %s79 = sphi 0, %s79
      %s81 = sphi 0, %s79
      %s82 = sphi 0, %s81
      %s96 = sphi 0, %s82
      %s100 = sphi 0, %s100
      %s102 = sphi 0, %s100
      %s103 = sphi 0, %s102
      %s117 = sphi 0, %s103
      %s121 = sphi 0, %s121
      %s123 = sphi 0, %s121
      %s124 = sphi 0, %s123
      %s138 = sphi 0, %s124
      %s142 = sphi 0, %s142
      %s144 = sphi 0, %s142
      %s145 = sphi 0, %s144
      %s159 = sphi 0, %s145
      %s163 = sphi 0, %s163
      %s165 = sphi 0, %s163
      %s166 = sphi 0, %s165
      %s180 = sphi 0, %s166
      %s186 = sphi 0, %s188
      %s189 = sphi 0, %s186
      %s190 = sphi 0, %s189
      %s206 = sphi 0, %s190
      %s210 = sphi 0, %s210
      %s212 = sphi 0, %s210
      %s213 = sphi 0, %s212
      %s227 = sphi 0, %s213
      %s231 = sphi 0, %s231
      %s233 = sphi 0, %s231
      %s234 = sphi 0, %s233
      %s248 = sphi 0, %s234
      %s254 = sphi 0, %s256
      %s257 = sphi 0, %s254
      %s258 = sphi 0, %s257
      %s274 = sphi 0, %s258
    $region4: #{tpu_custom_call.1} parent=1 // loop_header_branch
      %27 = sbr.rel (%p25) target = $region8
    $region5: #{tpu_custom_call.1} parent=1 // loop_body
      %s29 = ssub.s32 %s24, 1
      %s30 = ssub.s32 %s24, 2
      %s31 = sadd.s32 %s24, 1
      %s32 = ssub.s32 %s24, %s31
      %p33 = scmp.eq.s32.totalorder %s32, 0
      %s35 = sadd.s32 %s34, 1
      %s36 = scalar_select %p33, %s34, %s35
      %p39 = pneg %p33
      %p40 = scmp.eq.s32.totalorder %s24, 1
      %p41 = por %p39, %p40
      %p42 = scmp.ne.s32.totalorder %s34, %s37
      %p43 = scmp.eq.s32.totalorder %s24, 0
      %p44 = por %p42, %p43
      %p45 = scmp.ne.s32.totalorder %s34, %s37
      %p46 = scmp.eq.s32.totalorder %s29, 1
      %p47 = por %p45, %p46
      %p48 = scmp.ne.s32.totalorder %s37, %s38
      %p49 = scmp.eq.s32.totalorder %s29, 0
      %p50 = por %p48, %p49
      %p51 = scmp.ne.s32.totalorder %s37, %s38
      %p52 = scmp.eq.s32.totalorder %s30, 1
      %p53 = por %p51, %p52
      %p55 = scmp.ne.s32.totalorder %s38, %s54
      %p56 = scmp.eq.s32.totalorder %s30, 0
      %p57 = por %p55, %p56
      %s59 = sadd.s32 %s58, 1
      %p62 = scmp.eq.s32.totalorder %s24, 1
      %p63 = scmp.ne.s32.totalorder %s58, %s60
      %p64 = scmp.eq.s32.totalorder %s24, 0
      %p65 = por %p63, %p64
      %p66 = scmp.ne.s32.totalorder %s58, %s60
      %p67 = scmp.eq.s32.totalorder %s29, 1
      %p68 = por %p66, %p67
      %p69 = scmp.ne.s32.totalorder %s60, %s61
      %p70 = scmp.eq.s32.totalorder %s29, 0
      %p71 = por %p69, %p70
      %p72 = scmp.ne.s32.totalorder %s60, %s61
      %p73 = scmp.eq.s32.totalorder %s30, 1
      %p74 = por %p72, %p73
      %p76 = scmp.ne.s32.totalorder %s61, %s75
      %p77 = scmp.eq.s32.totalorder %s30, 0
      %p78 = por %p76, %p77
      %s80 = sadd.s32 %s79, 1
      %p83 = scmp.eq.s32.totalorder %s24, 1
      %p84 = scmp.ne.s32.totalorder %s79, %s81
      %p85 = scmp.eq.s32.totalorder %s24, 0
      %p86 = por %p84, %p85
      %p87 = scmp.ne.s32.totalorder %s79, %s81
      %p88 = scmp.eq.s32.totalorder %s29, 1
      %p89 = por %p87, %p88
      %p90 = scmp.ne.s32.totalorder %s81, %s82
      %p91 = scmp.eq.s32.totalorder %s29, 0
      %p92 = por %p90, %p91
      %p93 = scmp.ne.s32.totalorder %s81, %s82
      %p94 = scmp.eq.s32.totalorder %s30, 1
      %p95 = por %p93, %p94
      %p97 = scmp.ne.s32.totalorder %s82, %s96
      %p98 = scmp.eq.s32.totalorder %s30, 0
      %p99 = por %p97, %p98
      %s101 = sadd.s32 %s100, 1
      %p104 = scmp.eq.s32.totalorder %s24, 1
      %p105 = scmp.ne.s32.totalorder %s100, %s102
      %p106 = scmp.eq.s32.totalorder %s24, 0
      %p107 = por %p105, %p106
      %p108 = scmp.ne.s32.totalorder %s100, %s102
      %p109 = scmp.eq.s32.totalorder %s29, 1
      %p110 = por %p108, %p109
      %p111 = scmp.ne.s32.totalorder %s102, %s103
      %p112 = scmp.eq.s32.totalorder %s29, 0
      %p113 = por %p111, %p112
      %p114 = scmp.ne.s32.totalorder %s102, %s103
      %p115 = scmp.eq.s32.totalorder %s30, 1
      %p116 = por %p114, %p115
      %p118 = scmp.ne.s32.totalorder %s103, %s117
      %p119 = scmp.eq.s32.totalorder %s30, 0
      %p120 = por %p118, %p119
      %s122 = sadd.s32 %s121, 1
      %p125 = scmp.eq.s32.totalorder %s24, 1
      %p126 = scmp.ne.s32.totalorder %s121, %s123
      %p127 = scmp.eq.s32.totalorder %s24, 0
      %p128 = por %p126, %p127
      %p129 = scmp.ne.s32.totalorder %s121, %s123
      %p130 = scmp.eq.s32.totalorder %s29, 1
      %p131 = por %p129, %p130
      %p132 = scmp.ne.s32.totalorder %s123, %s124
      %p133 = scmp.eq.s32.totalorder %s29, 0
      %p134 = por %p132, %p133
      %p135 = scmp.ne.s32.totalorder %s123, %s124
      %p136 = scmp.eq.s32.totalorder %s30, 1
      %p137 = por %p135, %p136
      %p139 = scmp.ne.s32.totalorder %s124, %s138
      %p140 = scmp.eq.s32.totalorder %s30, 0
      %p141 = por %p139, %p140
      %s143 = sadd.s32 %s142, 1
      %p146 = scmp.eq.s32.totalorder %s24, 1
      %p147 = scmp.ne.s32.totalorder %s142, %s144
      %p148 = scmp.eq.s32.totalorder %s24, 0
      %p149 = por %p147, %p148
      %p150 = scmp.ne.s32.totalorder %s142, %s144
      %p151 = scmp.eq.s32.totalorder %s29, 1
      %p152 = por %p150, %p151
      %p153 = scmp.ne.s32.totalorder %s144, %s145
      %p154 = scmp.eq.s32.totalorder %s29, 0
      %p155 = por %p153, %p154
      %p156 = scmp.ne.s32.totalorder %s144, %s145
      %p157 = scmp.eq.s32.totalorder %s30, 1
      %p158 = por %p156, %p157
      %p160 = scmp.ne.s32.totalorder %s145, %s159
      %p161 = scmp.eq.s32.totalorder %s30, 0
      %p162 = por %p160, %p161
      %s164 = sadd.s32 %s163, 1
      %p167 = scmp.eq.s32.totalorder %s24, 1
      %p168 = scmp.ne.s32.totalorder %s163, %s165
      %p169 = scmp.eq.s32.totalorder %s24, 0
      %p170 = por %p168, %p169
      %p171 = scmp.ne.s32.totalorder %s163, %s165
      %p172 = scmp.eq.s32.totalorder %s29, 1
      %p173 = por %p171, %p172
      %p174 = scmp.ne.s32.totalorder %s165, %s166
      %p175 = scmp.eq.s32.totalorder %s29, 0
      %p176 = por %p174, %p175
      %p177 = scmp.ne.s32.totalorder %s165, %s166
      %p178 = scmp.eq.s32.totalorder %s30, 1
      %p179 = por %p177, %p178
      %p181 = scmp.ne.s32.totalorder %s166, %s180
      %p182 = scmp.eq.s32.totalorder %s30, 0
      %p183 = por %p181, %p182
      %s184 = ssub.s32 %s24, %s31
      %p185 = scmp.eq.s32.totalorder %s184, 0
      %s187 = sadd.s32 %s186, 1
      %s188 = scalar_select %p185, %s186, %s187
      %p191 = pneg %p185
      %p192 = scmp.eq.s32.totalorder %s24, 1
      %p193 = por %p191, %p192
      %p194 = scmp.ne.s32.totalorder %s186, %s189
      %p195 = scmp.eq.s32.totalorder %s24, 0
      %p196 = por %p194, %p195
      %p197 = scmp.ne.s32.totalorder %s186, %s189
      %p198 = scmp.eq.s32.totalorder %s29, 1
      %p199 = por %p197, %p198
      %p200 = scmp.ne.s32.totalorder %s189, %s190
      %p201 = scmp.eq.s32.totalorder %s29, 0
      %p202 = por %p200, %p201
      %p203 = scmp.ne.s32.totalorder %s189, %s190
      %p204 = scmp.eq.s32.totalorder %s30, 1
      %p205 = por %p203, %p204
      %p207 = scmp.ne.s32.totalorder %s190, %s206
      %p208 = scmp.eq.s32.totalorder %s30, 0
      %p209 = por %p207, %p208
      %s211 = sadd.s32 %s210, 1
      %p214 = scmp.eq.s32.totalorder %s24, 1
      %p215 = scmp.ne.s32.totalorder %s210, %s212
      %p216 = scmp.eq.s32.totalorder %s24, 0
      %p217 = por %p215, %p216
      %p218 = scmp.ne.s32.totalorder %s210, %s212
      %p219 = scmp.eq.s32.totalorder %s29, 1
      %p220 = por %p218, %p219
      %p221 = scmp.ne.s32.totalorder %s212, %s213
      %p222 = scmp.eq.s32.totalorder %s29, 0
      %p223 = por %p221, %p222
      %p224 = scmp.ne.s32.totalorder %s212, %s213
      %p225 = scmp.eq.s32.totalorder %s30, 1
      %p226 = por %p224, %p225
      %p228 = scmp.ne.s32.totalorder %s213, %s227
      %p229 = scmp.eq.s32.totalorder %s30, 0
      %p230 = por %p228, %p229
      %s232 = sadd.s32 %s231, 1
      %p235 = scmp.eq.s32.totalorder %s24, 1
      %p236 = scmp.ne.s32.totalorder %s231, %s233
      %p237 = scmp.eq.s32.totalorder %s24, 0
      %p238 = por %p236, %p237
      %p239 = scmp.ne.s32.totalorder %s231, %s233
      %p240 = scmp.eq.s32.totalorder %s29, 1
      %p241 = por %p239, %p240
      %p242 = scmp.ne.s32.totalorder %s233, %s234
      %p243 = scmp.eq.s32.totalorder %s29, 0
      %p244 = por %p242, %p243
      %p245 = scmp.ne.s32.totalorder %s233, %s234
      %p246 = scmp.eq.s32.totalorder %s30, 1
      %p247 = por %p245, %p246
      %p249 = scmp.ne.s32.totalorder %s234, %s248
      %p250 = scmp.eq.s32.totalorder %s30, 0
      %p251 = por %p249, %p250
      %s252 = ssub.s32 %s24, %s31
      %p253 = scmp.eq.s32.totalorder %s252, 0
      %s255 = sadd.s32 %s254, 1
      %s256 = scalar_select %p253, %s254, %s255
      %p259 = pneg %p253
      %p260 = scmp.eq.s32.totalorder %s24, 1
      %p261 = por %p259, %p260
      %p262 = scmp.ne.s32.totalorder %s254, %s257
      %p263 = scmp.eq.s32.totalorder %s24, 0
      %p264 = por %p262, %p263
      %p265 = scmp.ne.s32.totalorder %s254, %s257
      %p266 = scmp.eq.s32.totalorder %s29, 1
      %p267 = por %p265, %p266
      %p268 = scmp.ne.s32.totalorder %s257, %s258
      %p269 = scmp.eq.s32.totalorder %s29, 0
      %p270 = por %p268, %p269
      %p271 = scmp.ne.s32.totalorder %s257, %s258
      %p272 = scmp.eq.s32.totalorder %s30, 1
      %p273 = por %p271, %p272
      %p275 = scmp.ne.s32.totalorder %s258, %s274
      %p276 = scmp.eq.s32.totalorder %s30, 0
      %p277 = por %p275, %p276
      %p278 = scmp.le.s32.totalorder 1, %s24
      %p279 = scmp.lt.s32.totalorder %s24, 3
      %p280 = pnand %p278, %p279
      %p281 = pneg %p280
      // Predicated region
      $region9: #{tpu_custom_call.1} parent=5 // pred_check
        _
      $region10: #{tpu_custom_call.1} parent=5 // pred_check_branch
        %283 = sbr.rel (%p280) target = $region12
      $region11: #{tpu_custom_call.1} parent=5 // pred_region
        %s284 = ssub.s32 %s24, 1
        // Predicated region
        $region13: #{tpu_custom_call.1} parent=11 // pred_check
          %p285 = pneg %p71
        $region14: #{tpu_custom_call.1} parent=11 // pred_check_branch
          %287 = sbr.rel (%p285) target = $region16
        $region15: #{tpu_custom_call.1} parent=11 // pred_region
          %s289 = ssub.s32 2048, 2048
          %290 = vsyncadd [#allocation7], %s289
          %s291 = sshll.u32 [#allocation6], 4
          %s292 = int_to_ptr.vmem [resolvable:$true] %s291
          %297 = dma.hbm_to_vmem [thread:$0]  %s1, 2048, %s292, [#allocation7], 128, 128, 8
        $region16: #{tpu_custom_call.1} parent=11 // pred_fallthru
          _
        // Predicated region
        $region17: #{tpu_custom_call.1} parent=11 // pred_check
          %p298 = pneg %p92
        $region18: #{tpu_custom_call.1} parent=11 // pred_check_branch
          %300 = sbr.rel (%p298) target = $region20
        $region19: #{tpu_custom_call.1} parent=11 // pred_region
          _
        $region20: #{tpu_custom_call.1} parent=11 // pred_fallthru
          _
        // Predicated region
        $region21: #{tpu_custom_call.1} parent=11 // pred_check
          %p301 = pneg %p113
        $region22: #{tpu_custom_call.1} parent=11 // pred_check_branch
          %303 = sbr.rel (%p301) target = $region24
        $region23: #{tpu_custom_call.1} parent=11 // pred_region
          %s305 = ssub.s32 256, 256
          %306 = vsyncadd [#allocation7], %s305
          %s307 = sshll.u32 [#allocation8], 4
          %s308 = int_to_ptr.vmem [resolvable:$true] %s307
          %313 = dma.hbm_to_vmem [thread:$0]  %s3, 256, %s308, [#allocation7], 128, 128, 8
        $region24: #{tpu_custom_call.1} parent=11 // pred_fallthru
          _
        // Predicated region
        $region25: #{tpu_custom_call.1} parent=11 // pred_check
          %p314 = pneg %p134
        $region26: #{tpu_custom_call.1} parent=11 // pred_check_branch
          %316 = sbr.rel (%p314) target = $region28
        $region27: #{tpu_custom_call.1} parent=11 // pred_region
          _
        $region28: #{tpu_custom_call.1} parent=11 // pred_fallthru
          _
        // Predicated region
        $region29: #{tpu_custom_call.1} parent=11 // pred_check
          %p317 = pneg %p155
        $region30: #{tpu_custom_call.1} parent=11 // pred_check_branch
          %319 = sbr.rel (%p317) target = $region32
        $region31: #{tpu_custom_call.1} parent=11 // pred_region
          %s321 = ssub.s32 2048, 2048
          %322 = vsyncadd [#allocation10], %s321
          %s323 = sshll.u32 [#allocation9], 4
          %s324 = int_to_ptr.vmem [resolvable:$true] %s323
          %329 = dma.hbm_to_vmem [thread:$0]  %s5, 2048, %s324, [#allocation10], 128, 128, 8
        $region32: #{tpu_custom_call.1} parent=11 // pred_fallthru
          _
        // Predicated region
        $region33: #{tpu_custom_call.1} parent=11 // pred_check
          %p330 = pneg %p176
        $region34: #{tpu_custom_call.1} parent=11 // pred_check_branch
          %332 = sbr.rel (%p330) target = $region36
        $region35: #{tpu_custom_call.1} parent=11 // pred_region
          _
        $region36: #{tpu_custom_call.1} parent=11 // pred_fallthru
          _
        // Predicated region
        $region37: #{tpu_custom_call.1} parent=11 // pred_check
          %p333 = pneg %p223
        $region38: #{tpu_custom_call.1} parent=11 // pred_check_branch
          %335 = sbr.rel (%p333) target = $region40
        $region39: #{tpu_custom_call.1} parent=11 // pred_region
          %s337 = ssub.s32 2048, 2048
          %338 = vsyncadd [#allocation7], %s337
          %s339 = sshll.u32 [#allocation12], 4
          %s340 = int_to_ptr.vmem [resolvable:$true] %s339
          %345 = dma.hbm_to_vmem [thread:$0]  %s8, 2048, %s340, [#allocation7], 128, 128, 8
        $region40: #{tpu_custom_call.1} parent=11 // pred_fallthru
          _
        // Predicated region
        $region41: #{tpu_custom_call.1} parent=11 // pred_check
          %p346 = pneg %p244
        $region42: #{tpu_custom_call.1} parent=11 // pred_check_branch
          %348 = sbr.rel (%p346) target = $region44
        $region43: #{tpu_custom_call.1} parent=11 // pred_region
          _
        $region44: #{tpu_custom_call.1} parent=11 // pred_fallthru
          _
      $region12: #{tpu_custom_call.1} parent=5 // pred_fallthru
        _
      %p349 = scmp.lt.s32.totalorder %s24, 2
      // Predicated region
      $region45: #{tpu_custom_call.1} parent=5 // pred_check
        %p350 = pneg %p349
      $region46: #{tpu_custom_call.1} parent=5 // pred_check_branch
        %352 = sbr.rel (%p350) target = $region48
      $region47: #{tpu_custom_call.1} parent=5 // pred_region
        // Predicated region
        $region49: #{tpu_custom_call.1} parent=47 // pred_check
          %p353 = pneg %p44
        $region50: #{tpu_custom_call.1} parent=47 // pred_check_branch
          %355 = sbr.rel (%p353) target = $region52
        $region51: #{tpu_custom_call.1} parent=47 // pred_region
          %s356 = sand.u32 %s24, 1
          %s357 = scalar_lea.sflag [#allocation4], %s356
          %s358 = sand.u32 %s34, 1
          %s359 = smul.addr %s358, 432
          %s360 = scalar_lea.vmem [#allocation3], %s359
          %s362 = ssub.s32 6912, 6912
          %363 = vsyncadd %s357, %s362
          %s364 = smul.addr %s24, 54
          %s365 = smul.addr %s364, 128
          %s366 = scalar_lea.hbm %s0, %s365
          %s367 = sshll.u32 %s360, 4
          %s368 = int_to_ptr.vmem [resolvable:$true] %s367
          %373 = dma.hbm_to_vmem [thread:$0]  %s366, 6912, %s368, %s357, 128, 128, 8
        $region52: #{tpu_custom_call.1} parent=47 // pred_fallthru
          _
        // Predicated region
        $region53: #{tpu_custom_call.1} parent=47 // pred_check
          %p374 = pneg %p196
        $region54: #{tpu_custom_call.1} parent=47 // pred_check_branch
          %376 = sbr.rel (%p374) target = $region56
        $region55: #{tpu_custom_call.1} parent=47 // pred_region
          %s377 = sand.u32 %s24, 1
          %s378 = scalar_lea.sflag [#allocation4], %s377
          %s379 = sand.u32 %s186, 1
          %s380 = smul.addr %s379, 256
          %s381 = scalar_lea.vmem [#allocation11], %s380
          %s383 = ssub.s32 4096, 4096
          %384 = vsyncadd %s378, %s383
          %s385 = smul.addr %s24, 32
          %s386 = smul.addr %s385, 128
          %s387 = scalar_lea.hbm %s7, %s386
          %s388 = sshll.u32 %s381, 4
          %s389 = int_to_ptr.vmem [resolvable:$true] %s388
          %394 = dma.hbm_to_vmem [thread:$0]  %s387, 4096, %s389, %s378, 128, 128, 8
        $region56: #{tpu_custom_call.1} parent=47 // pred_fallthru
          _
      $region48: #{tpu_custom_call.1} parent=5 // pred_fallthru
        _
      %p395 = scmp.le.s32.totalorder 1, %s24
      %p396 = scmp.lt.s32.totalorder %s24, 3
      %p397 = pnand %p395, %p396
      %p398 = pneg %p397
      // Predicated region
      $region57: #{tpu_custom_call.1} parent=5 // pred_check
        _
      $region58: #{tpu_custom_call.1} parent=5 // pred_check_branch
        %400 = sbr.rel (%p397) target = $region60
      $region59: #{tpu_custom_call.1} parent=5 // pred_region
        %s401 = ssub.s32 %s24, 1
        %s402 = sand.u32 %s29, 1
        %s403 = scalar_lea.sflag [#allocation4], %s402
        %s404 = sand.u32 %s37, 1
        %s405 = smul.addr %s404, 432
        %s406 = scalar_lea.vmem [#allocation3], %s405
        // Predicated region
        $region61: #{tpu_custom_call.1} parent=59 // pred_check
          %p407 = pneg %p50
        $region62: #{tpu_custom_call.1} parent=59 // pred_check_branch
          %409 = sbr.rel (%p407) target = $region64
        $region63: #{tpu_custom_call.1} parent=59 // pred_region
          %410 = dma.done %s403, 6912
        $region64: #{tpu_custom_call.1} parent=59 // pred_fallthru
          _
        // Predicated region
        $region65: #{tpu_custom_call.1} parent=59 // pred_check
          %p411 = pneg %p71
        $region66: #{tpu_custom_call.1} parent=59 // pred_check_branch
          %413 = sbr.rel (%p411) target = $region68
        $region67: #{tpu_custom_call.1} parent=59 // pred_region
          %414 = dma.done [#allocation7], 2048
        $region68: #{tpu_custom_call.1} parent=59 // pred_fallthru
          _
        // Predicated region
        $region69: #{tpu_custom_call.1} parent=59 // pred_check
          %p415 = pneg %p113
        $region70: #{tpu_custom_call.1} parent=59 // pred_check_branch
          %417 = sbr.rel (%p415) target = $region72
        $region71: #{tpu_custom_call.1} parent=59 // pred_region
          %418 = dma.done [#allocation7], 256
        $region72: #{tpu_custom_call.1} parent=59 // pred_fallthru
          _
        // Predicated region
        $region73: #{tpu_custom_call.1} parent=59 // pred_check
          %p419 = pneg %p155
        $region74: #{tpu_custom_call.1} parent=59 // pred_check_branch
          %421 = sbr.rel (%p419) target = $region76
        $region75: #{tpu_custom_call.1} parent=59 // pred_region
          %422 = dma.done [#allocation10], 2048
        $region76: #{tpu_custom_call.1} parent=59 // pred_fallthru
          _
        %s423 = sand.u32 %s29, 1
        %s424 = scalar_lea.sflag [#allocation4], %s423
        %s425 = sand.u32 %s189, 1
        %s426 = smul.addr %s425, 256
        %s427 = scalar_lea.vmem [#allocation11], %s426
        // Predicated region
        $region77: #{tpu_custom_call.1} parent=59 // pred_check
          %p428 = pneg %p202
        $region78: #{tpu_custom_call.1} parent=59 // pred_check_branch
          %430 = sbr.rel (%p428) target = $region80
        $region79: #{tpu_custom_call.1} parent=59 // pred_region
          %431 = dma.done %s424, 4096
        $region80: #{tpu_custom_call.1} parent=59 // pred_fallthru
          _
        // Predicated region
        $region81: #{tpu_custom_call.1} parent=59 // pred_check
          %p432 = pneg %p223
        $region82: #{tpu_custom_call.1} parent=59 // pred_check_branch
          %434 = sbr.rel (%p432) target = $region84
        $region83: #{tpu_custom_call.1} parent=59 // pred_region
          %435 = dma.done [#allocation7], 2048
        $region84: #{tpu_custom_call.1} parent=59 // pred_fallthru
          _
        %s436 = sand.u32 %s29, 1
        %s437 = scalar_lea.sflag [#allocation4], %s436
        %s438 = sand.u32 %s37, 1
        %s439 = smul.addr %s438, 432
        %s440 = scalar_lea.vmem [#allocation3], %s439
        %p441 = pneg %p50
        %p442 = pneg %p47
        %p443 = pneg %p71
        %p444 = pneg %p68
        %p445 = pneg %p92
        %p446 = pneg %p89
        %p447 = pneg %p113
        %p448 = pneg %p110
        %p449 = pneg %p134
        %p450 = pneg %p131
        %p451 = pneg %p155
        %p452 = pneg %p152
        %p453 = pneg %p176
        %p454 = pneg %p173
        %s455 = sand.u32 %s29, 1
        %s456 = scalar_lea.sflag [#allocation4], %s455
        %s457 = sand.u32 %s189, 1
        %s458 = smul.addr %s457, 256
        %s459 = scalar_lea.vmem [#allocation11], %s458
        %p460 = pneg %p202
        %p461 = pneg %p199
        %p462 = pneg %p223
        %p463 = pneg %p220
        %p464 = pneg %p244
        %p465 = pneg %p241
        %p466 = pneg %p270
        %p467 = pneg %p267
        %s468 = sand.u32 %s257, 1
        %s469 = scalar_lea.sflag [#allocation5], %s468
        %s470 = sand.u32 %s257, 1
        %s471 = smul.addr %s470, 256
        %s472 = scalar_lea.vmem [#allocation13], %s471
        %v473 = vld [vmem:[%s406] sm:$0xff]
        %v474 = vld [vmem:[%s406 + $0x8] sm:$0xff]
        %v475 = vld [vmem:[%s406 + $0x10] sm:$0xff]
        %v476 = vld [vmem:[%s406 + $0x18] sm:$0xff]
        %v477 = vld [vmem:[%s406 + $0x20] sm:$0xff]
        %v478 = vld [vmem:[%s406 + $0x28] sm:$0xff]
        %v479 = vld [vmem:[%s406 + $0x30] sm:$0xff]
        %v480 = vld [vmem:[%s406 + $0x38] sm:$0xff]
        %v481 = vld [vmem:[%s406 + $0x40] sm:$0xff]
        %v482 = vld [vmem:[%s406 + $0x48] sm:$0xff]
        %v483 = vld [vmem:[%s406 + $0x50] sm:$0xff]
        %v484 = vld [vmem:[%s406 + $0x58] sm:$0xff]
        %v485 = vld [vmem:[%s406 + $0x60] sm:$0xff]
        %v486 = vld [vmem:[%s406 + $0x68] sm:$0xff]
        %v487 = vld [vmem:[%s406 + $0x70] sm:$0xff]
        %v488 = vld [vmem:[%s406 + $0x78] sm:$0xff]
        %v489 = vld [vmem:[%s406 + $0x80] sm:$0xff]
        %v490 = vld [vmem:[%s406 + $0x88] sm:$0xff]
        %v491 = vld [vmem:[%s406 + $0x90] sm:$0xff]
        %v492 = vld [vmem:[%s406 + $0x98] sm:$0xff]
        %v493 = vld [vmem:[%s406 + $0xa0] sm:$0xff]
        %v494 = vld [vmem:[%s406 + $0xa8] sm:$0xff]
        %v495 = vld [vmem:[%s406 + $0xb0] sm:$0xff]
        %v496 = vld [vmem:[%s406 + $0xb8] sm:$0xff]
        %v497 = vld [vmem:[%s406 + $0xc0] sm:$0xff]
        %v498 = vld [vmem:[%s406 + $0xc8] sm:$0xff]
        %v499 = vld [vmem:[%s406 + $0xd0] sm:$0xff]
        %v500 = vld [vmem:[%s406 + $0xd8] sm:$0xff]
        %v501 = vld [vmem:[%s406 + $0xe0] sm:$0xff]
        %v502 = vld [vmem:[%s406 + $0xe8] sm:$0xff]
        %v503 = vld [vmem:[%s406 + $0xf0] sm:$0xff]
        %v504 = vld [vmem:[%s406 + $0xf8] sm:$0xff]
        %v505 = vld [vmem:[%s406 + $0x100] sm:$0xff]
        %v506 = vld [vmem:[%s406 + $0x108] sm:$0xff]
        %v507 = vld [vmem:[%s406 + $0x110] sm:$0xff]
        %v508 = vld [vmem:[%s406 + $0x118] sm:$0xff]
        %v509 = vld [vmem:[%s406 + $0x120] sm:$0xff]
        %v510 = vld [vmem:[%s406 + $0x128] sm:$0xff]
        %v511 = vld [vmem:[%s406 + $0x130] sm:$0xff]
        %v512 = vld [vmem:[%s406 + $0x138] sm:$0xff]
        %v513 = vld [vmem:[%s406 + $0x140] sm:$0xff]
        %v514 = vld [vmem:[%s406 + $0x148] sm:$0xff]
        %v515 = vld [vmem:[%s406 + $0x150] sm:$0xff]
        %v516 = vld [vmem:[%s406 + $0x158] sm:$0xff]
        %v517 = vld [vmem:[%s406 + $0x160] sm:$0xff]
        %v518 = vld [vmem:[%s406 + $0x168] sm:$0xff]
        %v519 = vld [vmem:[%s406 + $0x170] sm:$0xff]
        %v520 = vld [vmem:[%s406 + $0x178] sm:$0xff]
        %v521 = vld [vmem:[%s406 + $0x180] sm:$0xff]
        %v522 = vld [vmem:[%s406 + $0x188] sm:$0xff]
        %v523 = vld [vmem:[%s406 + $0x190] sm:$0xff]
        %v524 = vld [vmem:[%s406 + $0x198] sm:$0xff]
        %v525 = vld [vmem:[%s406 + $0x1a0] sm:$0xff]
        %v526 = vld [vmem:[%s406 + $0x1a8] sm:$0xff]
        %v527 = vld [vmem:[#allocation6] sm:$0xff]
        %v528 = vld [vmem:[#allocation6 + $0x8] sm:$0xff]
        %v529 = vld [vmem:[#allocation6 + $0x10] sm:$0xff]
        %v530 = vld [vmem:[#allocation6 + $0x18] sm:$0xff]
        %v531 = vld [vmem:[#allocation6 + $0x20] sm:$0xff]
        %v532 = vld [vmem:[#allocation6 + $0x28] sm:$0xff]
        %v533 = vld [vmem:[#allocation6 + $0x30] sm:$0xff]
        %v534 = vld [vmem:[#allocation6 + $0x38] sm:$0xff]
        %v535 = vld [vmem:[#allocation6 + $0x40] sm:$0xff]
        %v536 = vld [vmem:[#allocation6 + $0x48] sm:$0xff]
        %v537 = vld [vmem:[#allocation6 + $0x50] sm:$0xff]
        %v538 = vld [vmem:[#allocation6 + $0x58] sm:$0xff]
        %v539 = vld [vmem:[#allocation6 + $0x60] sm:$0xff]
        %v540 = vld [vmem:[#allocation6 + $0x68] sm:$0xff]
        %v541 = vld [vmem:[#allocation6 + $0x70] sm:$0xff]
        %v542 = vld [vmem:[#allocation6 + $0x78] sm:$0xff]
        %v543 = vld [vmem:[%s2] sm:$0x1]
        %v545 = vlaneseq
        %v546 = vshrl.u32 %v545, 7
        %v547 = vsub.s32 0, %v546
        %v548 = vrot.slane %v543, %v547
        %550 = vmatprep.subr.mxu0 0.0
        %551 = vmatpush1.msra.mxu0 %v527
        %552 = vmatprep.subr.mxu0 0.0
        %553 = vmatpush1.msra.mxu0 %v528
        %554 = vmatprep.subr.mxu0 0.0
        %555 = vmatpush1.msra.mxu0 %v529
        %556 = vmatprep.subr.mxu0 0.0
        %557 = vmatpush1.msra.mxu0 %v530
        %558 = vmatprep.subr.mxu0 0.0
        %559 = vmatpush1.msra.mxu0 %v531
        %560 = vmatprep.subr.mxu0 0.0
        %561 = vmatpush1.msra.mxu0 %v532
        %562 = vmatprep.subr.mxu0 0.0
        %563 = vmatpush1.msra.mxu0 %v533
        %564 = vmatprep.subr.mxu0 0.0
        %565 = vmatpush1.msra.mxu0 %v534
        %566 = vmatprep.subr.mxu0 0.0
        %567 = vmatpush1.msra.mxu0 %v535
        %568 = vmatprep.subr.mxu0 0.0
        %569 = vmatpush1.msra.mxu0 %v536
        %570 = vmatprep.subr.mxu0 0.0
        %571 = vmatpush1.msra.mxu0 %v537
        %572 = vmatprep.subr.mxu0 0.0
        %573 = vmatpush1.msra.mxu0 %v538
        %574 = vmatprep.subr.mxu0 0.0
        %575 = vmatpush1.msra.mxu0 %v539
        %576 = vmatprep.subr.mxu0 0.0
        %577 = vmatpush1.msra.mxu0 %v540
        %578 = vmatprep.subr.mxu0 0.0
        %579 = vmatpush1.msra.mxu0 %v541
        %580 = vmatprep.subr.mxu0 0.0
        %581 = vmatpush1.msra.mxu0 %v542
        %582 = vmatprep.subr.mxu0 0.0
        %583 = vmatpush1.msra.mxu0 0.0
        %584 = vmatprep.subr.mxu0 0.0
        %585 = vmatpush1.msra.mxu0 0.0
        %586 = vmatprep.subr.mxu0 0.0
        %587 = vmatpush1.msra.mxu0 0.0
        %588 = vmatprep.subr.mxu0 0.0
        %589 = vmatpush1.msra.mxu0 0.0
        %590 = vmatprep.subr.mxu0 0.0
        %591 = vmatpush1.msra.mxu0 0.0
        %592 = vmatprep.subr.mxu0 0.0
        %593 = vmatpush1.msra.mxu0 0.0
        %594 = vmatprep.subr.mxu0 0.0
        %595 = vmatpush1.msra.mxu0 0.0
        %596 = vmatprep.subr.mxu0 0.0
        %597 = vmatpush1.msra.mxu0 0.0
        %598 = vmatprep.subr.mxu0 0.0
        %599 = vmatpush1.msra.mxu0 0.0
        %600 = vmatprep.subr.mxu0 0.0
        %601 = vmatpush1.msra.mxu0 0.0
        %602 = vmatprep.subr.mxu0 0.0
        %603 = vmatpush1.msra.mxu0 0.0
        %604 = vmatprep.subr.mxu0 0.0
        %605 = vmatpush1.msra.mxu0 0.0
        %606 = vmatprep.subr.mxu0 0.0
        %607 = vmatpush1.msra.mxu0 0.0
        %608 = vmatprep.subr.mxu0 0.0
        %609 = vmatpush1.msra.mxu0 0.0
        %610 = vmatprep.subr.mxu0 0.0
        %611 = vmatpush1.msra.mxu0 0.0
        %612 = vmatprep.subr.mxu0 0.0
        %613 = vmatpush1.msra.mxu0 0.0
        %614 = vmatprep.mubr.f32.mxu0 0.0
        %615 = vmatmul.mubr.f32.gmra.mrb[0].mxu0 %v473
        %v616 = vpop.f32.mrb[0].mxu0
        %v617 = vadd.f32 %v548, %v616
        %v618 = vpop.f32.mrb[0].mxu0
        %619 = vmatprep.mubr.f32.mxu0 0.0
        %620 = vmatmul.mubr.f32.gmra.mrb[0].mxu0 %v474
        %v621 = vpop.f32.mrb[0].mxu0
        %v622 = vadd.f32 %v548, %v621
        %v623 = vpop.f32.mrb[0].mxu0
        %624 = vmatprep.mubr.f32.mxu0 0.0
        %625 = vmatmul.mubr.f32.gmra.mrb[0].mxu0 %v475
        %v626 = vpop.f32.mrb[0].mxu0
        %v627 = vadd.f32 %v548, %v626
        %v628 = vpop.f32.mrb[0].mxu0
        %629 = vmatprep.mubr.f32.mxu0 0.0
        %630 = vmatmul.mubr.f32.gmra.mrb[0].mxu0 %v476
        %v631 = vpop.f32.mrb[0].mxu0
        %v632 = vadd.f32 %v548, %v631
        %v633 = vpop.f32.mrb[0].mxu0
        %634 = vmatprep.mubr.f32.mxu0 0.0
        %635 = vmatmul.mubr.f32.gmra.mrb[0].mxu0 %v477
        %v636 = vpop.f32.mrb[0].mxu0
        %v637 = vadd.f32 %v548, %v636
        %v638 = vpop.f32.mrb[0].mxu0
        %639 = vmatprep.mubr.f32.mxu0 0.0
        %640 = vmatmul.mubr.f32.gmra.mrb[0].mxu0 %v478
        %v641 = vpop.f32.mrb[0].mxu0
        %v642 = vadd.f32 %v548, %v641
        %v643 = vpop.f32.mrb[0].mxu0
        %644 = vmatprep.mubr.f32.mxu0 0.0
        %645 = vmatmul.mubr.f32.gmra.mrb[0].mxu0 %v479
        %v646 = vpop.f32.mrb[0].mxu0
        %v647 = vadd.f32 %v548, %v646
        %v648 = vpop.f32.mrb[0].mxu0
        %649 = vmatprep.mubr.f32.mxu0 0.0
        %650 = vmatmul.mubr.f32.gmra.mrb[0].mxu0 %v480
        %v651 = vpop.f32.mrb[0].mxu0
        %v652 = vadd.f32 %v548, %v651
        %v653 = vpop.f32.mrb[0].mxu0
        %654 = vmatprep.mubr.f32.mxu0 0.0
        %655 = vmatmul.mubr.f32.gmra.mrb[0].mxu0 %v481
        %v656 = vpop.f32.mrb[0].mxu0
        %v657 = vadd.f32 %v548, %v656
        %v658 = vpop.f32.mrb[0].mxu0
        %659 = vmatprep.mubr.f32.mxu0 0.0
        %660 = vmatmul.mubr.f32.gmra.mrb[0].mxu0 %v482
        %v661 = vpop.f32.mrb[0].mxu0
        %v662 = vadd.f32 %v548, %v661
        %v663 = vpop.f32.mrb[0].mxu0
        %664 = vmatprep.mubr.f32.mxu0 0.0
        %665 = vmatmul.mubr.f32.gmra.mrb[0].mxu0 %v483
        %v666 = vpop.f32.mrb[0].mxu0
        %v667 = vadd.f32 %v548, %v666
        %v668 = vpop.f32.mrb[0].mxu0
        %669 = vmatprep.mubr.f32.mxu0 0.0
        %670 = vmatmul.mubr.f32.gmra.mrb[0].mxu0 %v484
        %v671 = vpop.f32.mrb[0].mxu0
        %v672 = vadd.f32 %v548, %v671
        %v673 = vpop.f32.mrb[0].mxu0
        %674 = vmatprep.mubr.f32.mxu0 0.0
        %675 = vmatmul.mubr.f32.gmra.mrb[0].mxu0 %v485
        %v676 = vpop.f32.mrb[0].mxu0
        %v677 = vadd.f32 %v548, %v676
        %v678 = vpop.f32.mrb[0].mxu0
        %679 = vmatprep.mubr.f32.mxu0 0.0
        %680 = vmatmul.mubr.f32.gmra.mrb[0].mxu0 %v486
        %v681 = vpop.f32.mrb[0].mxu0
        %v682 = vadd.f32 %v548, %v681
        %v683 = vpop.f32.mrb[0].mxu0
        %684 = vmatprep.mubr.f32.mxu0 0.0
        %685 = vmatmul.mubr.f32.gmra.mrb[0].mxu0 %v487
        %v686 = vpop.f32.mrb[0].mxu0
        %v687 = vadd.f32 %v548, %v686
        %v688 = vpop.f32.mrb[0].mxu0
        %689 = vmatprep.mubr.f32.mxu0 0.0
        %690 = vmatmul.mubr.f32.gmra.mrb[0].mxu0 %v488
        %v691 = vpop.f32.mrb[0].mxu0
        %v692 = vadd.f32 %v548, %v691
        %v693 = vpop.f32.mrb[0].mxu0
        %694 = vmatprep.mubr.f32.mxu0 0.0
        %695 = vmatmul.mubr.f32.gmra.mrb[0].mxu0 %v489
        %v696 = vpop.f32.mrb[0].mxu0
        %v697 = vadd.f32 %v548, %v696
        %v698 = vpop.f32.mrb[0].mxu0
        %699 = vmatprep.mubr.f32.mxu0 0.0
        %700 = vmatmul.mubr.f32.gmra.mrb[0].mxu0 %v490
        %v701 = vpop.f32.mrb[0].mxu0
        %v702 = vadd.f32 %v548, %v701
        %v703 = vpop.f32.mrb[0].mxu0
        %704 = vmatprep.mubr.f32.mxu0 0.0
        %705 = vmatmul.mubr.f32.gmra.mrb[0].mxu0 %v491
        %v706 = vpop.f32.mrb[0].mxu0
        %v707 = vadd.f32 %v548, %v706
        %v708 = vpop.f32.mrb[0].mxu0
        %709 = vmatprep.mubr.f32.mxu0 0.0
        %710 = vmatmul.mubr.f32.gmra.mrb[0].mxu0 %v492
        %v711 = vpop.f32.mrb[0].mxu0
        %v712 = vadd.f32 %v548, %v711
        %v713 = vpop.f32.mrb[0].mxu0
        %714 = vmatprep.mubr.f32.mxu0 0.0
        %715 = vmatmul.mubr.f32.gmra.mrb[0].mxu0 %v493
        %v716 = vpop.f32.mrb[0].mxu0
        %v717 = vadd.f32 %v548, %v716
        %v718 = vpop.f32.mrb[0].mxu0
        %719 = vmatprep.mubr.f32.mxu0 0.0
        %720 = vmatmul.mubr.f32.gmra.mrb[0].mxu0 %v494
        %v721 = vpop.f32.mrb[0].mxu0
        %v722 = vadd.f32 %v548, %v721
        %v723 = vpop.f32.mrb[0].mxu0
        %724 = vmatprep.mubr.f32.mxu0 0.0
        %725 = vmatmul.mubr.f32.gmra.mrb[0].mxu0 %v495
        %v726 = vpop.f32.mrb[0].mxu0
        %v727 = vadd.f32 %v548, %v726
        %v728 = vpop.f32.mrb[0].mxu0
        %729 = vmatprep.mubr.f32.mxu0 0.0
        %730 = vmatmul.mubr.f32.gmra.mrb[0].mxu0 %v496
        %v731 = vpop.f32.mrb[0].mxu0
        %v732 = vadd.f32 %v548, %v731
        %v733 = vpop.f32.mrb[0].mxu0
        %734 = vmatprep.mubr.f32.mxu0 0.0
        %735 = vmatmul.mubr.f32.gmra.mrb[0].mxu0 %v497
        %v736 = vpop.f32.mrb[0].mxu0
        %v737 = vadd.f32 %v548, %v736
        %v738 = vpop.f32.mrb[0].mxu0
        %739 = vmatprep.mubr.f32.mxu0 0.0
        %740 = vmatmul.mubr.f32.gmra.mrb[0].mxu0 %v498
        %v741 = vpop.f32.mrb[0].mxu0
        %v742 = vadd.f32 %v548, %v741
        %v743 = vpop.f32.mrb[0].mxu0
        %744 = vmatprep.mubr.f32.mxu0 0.0
        %745 = vmatmul.mubr.f32.gmra.mrb[0].mxu0 %v499
        %v746 = vpop.f32.mrb[0].mxu0
        %v747 = vadd.f32 %v548, %v746
        %v748 = vpop.f32.mrb[0].mxu0
        %749 = vmatprep.mubr.f32.mxu0 0.0
        %750 = vmatmul.mubr.f32.gmra.mrb[0].mxu0 %v500
        %v751 = vpop.f32.mrb[0].mxu0
        %v752 = vadd.f32 %v548, %v751
        %v753 = vpop.f32.mrb[0].mxu0
        %754 = vmatprep.mubr.f32.mxu0 0.0
        %755 = vmatmul.mubr.f32.gmra.mrb[0].mxu0 %v501
        %v756 = vpop.f32.mrb[0].mxu0
        %v757 = vadd.f32 %v548, %v756
        %v758 = vpop.f32.mrb[0].mxu0
        %759 = vmatprep.mubr.f32.mxu0 0.0
        %760 = vmatmul.mubr.f32.gmra.mrb[0].mxu0 %v502
        %v761 = vpop.f32.mrb[0].mxu0
        %v762 = vadd.f32 %v548, %v761
        %v763 = vpop.f32.mrb[0].mxu0
        %764 = vmatprep.mubr.f32.mxu0 0.0
        %765 = vmatmul.mubr.f32.gmra.mrb[0].mxu0 %v503
        %v766 = vpop.f32.mrb[0].mxu0
        %v767 = vadd.f32 %v548, %v766
        %v768 = vpop.f32.mrb[0].mxu0
        %769 = vmatprep.mubr.f32.mxu0 0.0
        %770 = vmatmul.mubr.f32.gmra.mrb[0].mxu0 %v504
        %v771 = vpop.f32.mrb[0].mxu0
        %v772 = vadd.f32 %v548, %v771
        %v773 = vpop.f32.mrb[0].mxu0
        %774 = vmatprep.mubr.f32.mxu0 0.0
        %775 = vmatmul.mubr.f32.gmra.mrb[0].mxu0 %v505
        %v776 = vpop.f32.mrb[0].mxu0
        %v777 = vadd.f32 %v548, %v776
        %v778 = vpop.f32.mrb[0].mxu0
        %779 = vmatprep.mubr.f32.mxu0 0.0
        %780 = vmatmul.mubr.f32.gmra.mrb[0].mxu0 %v506
        %v781 = vpop.f32.mrb[0].mxu0
        %v782 = vadd.f32 %v548, %v781
        %v783 = vpop.f32.mrb[0].mxu0
        %784 = vmatprep.mubr.f32.mxu0 0.0
        %785 = vmatmul.mubr.f32.gmra.mrb[0].mxu0 %v507
        %v786 = vpop.f32.mrb[0].mxu0
        %v787 = vadd.f32 %v548, %v786
        %v788 = vpop.f32.mrb[0].mxu0
        %789 = vmatprep.mubr.f32.mxu0 0.0
        %790 = vmatmul.mubr.f32.gmra.mrb[0].mxu0 %v508
        %v791 = vpop.f32.mrb[0].mxu0
        %v792 = vadd.f32 %v548, %v791
        %v793 = vpop.f32.mrb[0].mxu0
        %794 = vmatprep.mubr.f32.mxu0 0.0
        %795 = vmatmul.mubr.f32.gmra.mrb[0].mxu0 %v509
        %v796 = vpop.f32.mrb[0].mxu0
        %v797 = vadd.f32 %v548, %v796
        %v798 = vpop.f32.mrb[0].mxu0
        %799 = vmatprep.mubr.f32.mxu0 0.0
        %800 = vmatmul.mubr.f32.gmra.mrb[0].mxu0 %v510
        %v801 = vpop.f32.mrb[0].mxu0
        %v802 = vadd.f32 %v548, %v801
        %v803 = vpop.f32.mrb[0].mxu0
        %804 = vmatprep.mubr.f32.mxu0 0.0
        %805 = vmatmul.mubr.f32.gmra.mrb[0].mxu0 %v511
        %v806 = vpop.f32.mrb[0].mxu0
        %v807 = vadd.f32 %v548, %v806
        %v808 = vpop.f32.mrb[0].mxu0
        %809 = vmatprep.mubr.f32.mxu0 0.0
        %810 = vmatmul.mubr.f32.gmra.mrb[0].mxu0 %v512
        %v811 = vpop.f32.mrb[0].mxu0
        %v812 = vadd.f32 %v548, %v811
        %v813 = vpop.f32.mrb[0].mxu0
        %814 = vmatprep.mubr.f32.mxu0 0.0
        %815 = vmatmul.mubr.f32.gmra.mrb[0].mxu0 %v513
        %v816 = vpop.f32.mrb[0].mxu0
        %v817 = vadd.f32 %v548, %v816
        %v818 = vpop.f32.mrb[0].mxu0
        %819 = vmatprep.mubr.f32.mxu0 0.0
        %820 = vmatmul.mubr.f32.gmra.mrb[0].mxu0 %v514
        %v821 = vpop.f32.mrb[0].mxu0
        %v822 = vadd.f32 %v548, %v821
        %v823 = vpop.f32.mrb[0].mxu0
        %824 = vmatprep.mubr.f32.mxu0 0.0
        %825 = vmatmul.mubr.f32.gmra.mrb[0].mxu0 %v515
        %v826 = vpop.f32.mrb[0].mxu0
        %v827 = vadd.f32 %v548, %v826
        %v828 = vpop.f32.mrb[0].mxu0
        %829 = vmatprep.mubr.f32.mxu0 0.0
        %830 = vmatmul.mubr.f32.gmra.mrb[0].mxu0 %v516
        %v831 = vpop.f32.mrb[0].mxu0
        %v832 = vadd.f32 %v548, %v831
        %v833 = vpop.f32.mrb[0].mxu0
        %834 = vmatprep.mubr.f32.mxu0 0.0
        %835 = vmatmul.mubr.f32.gmra.mrb[0].mxu0 %v517
        %v836 = vpop.f32.mrb[0].mxu0
        %v837 = vadd.f32 %v548, %v836
        %v838 = vpop.f32.mrb[0].mxu0
        %839 = vmatprep.mubr.f32.mxu0 0.0
        %840 = vmatmul.mubr.f32.gmra.mrb[0].mxu0 %v518
        %v841 = vpop.f32.mrb[0].mxu0
        %v842 = vadd.f32 %v548, %v841
        %v843 = vpop.f32.mrb[0].mxu0
        %844 = vmatprep.mubr.f32.mxu0 0.0
        %845 = vmatmul.mubr.f32.gmra.mrb[0].mxu0 %v519
        %v846 = vpop.f32.mrb[0].mxu0
        %v847 = vadd.f32 %v548, %v846
        %v848 = vpop.f32.mrb[0].mxu0
        %849 = vmatprep.mubr.f32.mxu0 0.0
        %850 = vmatmul.mubr.f32.gmra.mrb[0].mxu0 %v520
        %v851 = vpop.f32.mrb[0].mxu0
        %v852 = vadd.f32 %v548, %v851
        %v853 = vpop.f32.mrb[0].mxu0
        %854 = vmatprep.mubr.f32.mxu0 0.0
        %855 = vmatmul.mubr.f32.gmra.mrb[0].mxu0 %v521
        %v856 = vpop.f32.mrb[0].mxu0
        %v857 = vadd.f32 %v548, %v856
        %v858 = vpop.f32.mrb[0].mxu0
        %859 = vmatprep.mubr.f32.mxu0 0.0
        %860 = vmatmul.mubr.f32.gmra.mrb[0].mxu0 %v522
        %v861 = vpop.f32.mrb[0].mxu0
        %v862 = vadd.f32 %v548, %v861
        %v863 = vpop.f32.mrb[0].mxu0
        %864 = vmatprep.mubr.f32.mxu0 0.0
        %865 = vmatmul.mubr.f32.gmra.mrb[0].mxu0 %v523
        %v866 = vpop.f32.mrb[0].mxu0
        %v867 = vadd.f32 %v548, %v866
        %v868 = vpop.f32.mrb[0].mxu0
        %869 = vmatprep.mubr.f32.mxu0 0.0
        %870 = vmatmul.mubr.f32.gmra.mrb[0].mxu0 %v524
        %v871 = vpop.f32.mrb[0].mxu0
        %v872 = vadd.f32 %v548, %v871
        %v873 = vpop.f32.mrb[0].mxu0
        %874 = vmatprep.mubr.f32.mxu0 0.0
        %875 = vmatmul.mubr.f32.gmra.mrb[0].mxu0 %v525
        %v876 = vpop.f32.mrb[0].mxu0
        %v877 = vadd.f32 %v548, %v876
        %v878 = vpop.f32.mrb[0].mxu0
        %879 = vmatprep.mubr.f32.mxu0 0.0
        %880 = vmatmul.mubr.f32.gmra.mrb[0].mxu0 %v526
        %v881 = vpop.f32.mrb[0].mxu0
        %v882 = vadd.f32 %v548, %v881
        %v883 = vpop.f32.mrb[0].mxu0
        %884 = vdwg.mxu0
        %v885 = vmax.f32 %v617, 0.0
        %v886 = vmax.f32 %v622, 0.0
        %v887 = vmax.f32 %v627, 0.0
        %v888 = vmax.f32 %v632, 0.0
        %v889 = vmax.f32 %v637, 0.0
        %v890 = vmax.f32 %v642, 0.0
        %v891 = vmax.f32 %v647, 0.0
        %v892 = vmax.f32 %v652, 0.0
        %v893 = vmax.f32 %v657, 0.0
        %v894 = vmax.f32 %v662, 0.0
        %v895 = vmax.f32 %v667, 0.0
        %v896 = vmax.f32 %v672, 0.0
        %v897 = vmax.f32 %v677, 0.0
        %v898 = vmax.f32 %v682, 0.0
        %v899 = vmax.f32 %v687, 0.0
        %v900 = vmax.f32 %v692, 0.0
        %v901 = vmax.f32 %v697, 0.0
        %v902 = vmax.f32 %v702, 0.0
        %v903 = vmax.f32 %v707, 0.0
        %v904 = vmax.f32 %v712, 0.0
        %v905 = vmax.f32 %v717, 0.0
        %v906 = vmax.f32 %v722, 0.0
        %v907 = vmax.f32 %v727, 0.0
        %v908 = vmax.f32 %v732, 0.0
        %v909 = vmax.f32 %v737, 0.0
        %v910 = vmax.f32 %v742, 0.0
        %v911 = vmax.f32 %v747, 0.0
        %v912 = vmax.f32 %v752, 0.0
        %v913 = vmax.f32 %v757, 0.0
        %v914 = vmax.f32 %v762, 0.0
        %v915 = vmax.f32 %v767, 0.0
        %v916 = vmax.f32 %v772, 0.0
        %v917 = vmax.f32 %v777, 0.0
        %v918 = vmax.f32 %v782, 0.0
        %v919 = vmax.f32 %v787, 0.0
        %v920 = vmax.f32 %v792, 0.0
        %v921 = vmax.f32 %v797, 0.0
        %v922 = vmax.f32 %v802, 0.0
        %v923 = vmax.f32 %v807, 0.0
        %v924 = vmax.f32 %v812, 0.0
        %v925 = vmax.f32 %v817, 0.0
        %v926 = vmax.f32 %v822, 0.0
        %v927 = vmax.f32 %v827, 0.0
        %v928 = vmax.f32 %v832, 0.0
        %v929 = vmax.f32 %v837, 0.0
        %v930 = vmax.f32 %v842, 0.0
        %v931 = vmax.f32 %v847, 0.0
        %v932 = vmax.f32 %v852, 0.0
        %v933 = vmax.f32 %v857, 0.0
        %v934 = vmax.f32 %v862, 0.0
        %v935 = vmax.f32 %v867, 0.0
        %v936 = vmax.f32 %v872, 0.0
        %v937 = vmax.f32 %v877, 0.0
        %v938 = vmax.f32 %v882, 0.0
        %v939 = vmin.f32 %v885, 6.0
        %v940 = vmin.f32 %v886, 6.0
        %v941 = vmin.f32 %v887, 6.0
        %v942 = vmin.f32 %v888, 6.0
        %v943 = vmin.f32 %v889, 6.0
        %v944 = vmin.f32 %v890, 6.0
        %v945 = vmin.f32 %v891, 6.0
        %v946 = vmin.f32 %v892, 6.0
        %v947 = vmin.f32 %v893, 6.0
        %v948 = vmin.f32 %v894, 6.0
        %v949 = vmin.f32 %v895, 6.0
        %v950 = vmin.f32 %v896, 6.0
        %v951 = vmin.f32 %v897, 6.0
        %v952 = vmin.f32 %v898, 6.0
        %v953 = vmin.f32 %v899, 6.0
        %v954 = vmin.f32 %v900, 6.0
        %v955 = vmin.f32 %v901, 6.0
        %v956 = vmin.f32 %v902, 6.0
        %v957 = vmin.f32 %v903, 6.0
        %v958 = vmin.f32 %v904, 6.0
        %v959 = vmin.f32 %v905, 6.0
        %v960 = vmin.f32 %v906, 6.0
        %v961 = vmin.f32 %v907, 6.0
        %v962 = vmin.f32 %v908, 6.0
        %v963 = vmin.f32 %v909, 6.0
        %v964 = vmin.f32 %v910, 6.0
        %v965 = vmin.f32 %v911, 6.0
        %v966 = vmin.f32 %v912, 6.0
        %v967 = vmin.f32 %v913, 6.0
        %v968 = vmin.f32 %v914, 6.0
        %v969 = vmin.f32 %v915, 6.0
        %v970 = vmin.f32 %v916, 6.0
        %v971 = vmin.f32 %v917, 6.0
        %v972 = vmin.f32 %v918, 6.0
        %v973 = vmin.f32 %v919, 6.0
        %v974 = vmin.f32 %v920, 6.0
        %v975 = vmin.f32 %v921, 6.0
        %v976 = vmin.f32 %v922, 6.0
        %v977 = vmin.f32 %v923, 6.0
        %v978 = vmin.f32 %v924, 6.0
        %v979 = vmin.f32 %v925, 6.0
        %v980 = vmin.f32 %v926, 6.0
        %v981 = vmin.f32 %v927, 6.0
        %v982 = vmin.f32 %v928, 6.0
        %v983 = vmin.f32 %v929, 6.0
        %v984 = vmin.f32 %v930, 6.0
        %v985 = vmin.f32 %v931, 6.0
        %v986 = vmin.f32 %v932, 6.0
        %v987 = vmin.f32 %v933, 6.0
        %v988 = vmin.f32 %v934, 6.0
        %v989 = vmin.f32 %v935, 6.0
        %v990 = vmin.f32 %v936, 6.0
        %v991 = vmin.f32 %v937, 6.0
        %v992 = vmin.f32 %v938, 6.0
        %v993 = vlaneseq
        %v994 = vshrl.u32 %v993, 7
        %v995 = vadd.s32 %v994, 8
        %v996 = vadd.s32 %v994, 16
        %vm997 = vcmp.ge.s32.totalorder %v994, 1
        %vm998 = vcmp.ge.s32.totalorder %v995, 1
        %vm999 = vcmp.ge.s32.totalorder %v996, 1
        %vm1000 = vmand 0, %vm997
        %vm1001 = vmand 0, %vm998
        %vm1002 = vmand 0, %vm999
        %vm1003 = vmand 1, %vm997
        %vm1004 = vmand 1, %vm998
        %vm1005 = vmand 1, %vm999
        %vm1006 = vcmp.le.s32.totalorder %v994, 16
        %vm1007 = vcmp.le.s32.totalorder %v995, 16
        %vm1008 = vcmp.le.s32.totalorder %v996, 16
        %vm1009 = vmand %vm1000, %vm1006
        %vm1010 = vmand %vm1001, %vm1007
        %vm1011 = vmand %vm1002, %vm1008
        %vm1012 = vmand %vm1003, %vm1006
        %vm1013 = vmand %vm1004, %vm1007
        %vm1014 = vmand %vm1005, %vm1008
        %v1015 = vsel %vm1009, 1, 0
        %v1016 = vsel %vm1010, 1, 0
        %v1017 = vsel %vm1011, 1, 0
        %v1018 = vsel %vm1012, 1, 0
        %v1019 = vsel %vm1013, 1, 0
        %v1020 = vsel %vm1014, 1, 0
        %vm1021 = vcmp.eq.s32.totalorder %v1015, 1
        %vm1022 = vcmp.eq.s32.totalorder %v1016, 1
        %vm1023 = vcmp.eq.s32.totalorder %v1017, 1
        %vm1024 = vcmp.eq.s32.totalorder %v1018, 1
        %vm1025 = vcmp.eq.s32.totalorder %v1019, 1
        %vm1026 = vcmp.eq.s32.totalorder %v1020, 1
        %v1027 = vsel %vm1021, %v939, 0.0
        %v1028 = vsel %vm1022, %v940, 0.0
        %v1029 = vsel %vm1023, %v941, 0.0
        %v1030 = vsel %vm1024, %v942, 0.0
        %v1031 = vsel %vm1025, %v943, 0.0
        %v1032 = vsel %vm1026, %v944, 0.0
        %v1033 = vsel %vm1024, %v945, 0.0
        %v1034 = vsel %vm1025, %v946, 0.0
        %v1035 = vsel %vm1026, %v947, 0.0
        %v1036 = vsel %vm1024, %v948, 0.0
        %v1037 = vsel %vm1025, %v949, 0.0
        %v1038 = vsel %vm1026, %v950, 0.0
        %v1039 = vsel %vm1024, %v951, 0.0
        %v1040 = vsel %vm1025, %v952, 0.0
        %v1041 = vsel %vm1026, %v953, 0.0
        %v1042 = vsel %vm1024, %v954, 0.0
        %v1043 = vsel %vm1025, %v955, 0.0
        %v1044 = vsel %vm1026, %v956, 0.0
        %v1045 = vsel %vm1024, %v957, 0.0
        %v1046 = vsel %vm1025, %v958, 0.0
        %v1047 = vsel %vm1026, %v959, 0.0
        %v1048 = vsel %vm1024, %v960, 0.0
        %v1049 = vsel %vm1025, %v961, 0.0
        %v1050 = vsel %vm1026, %v962, 0.0
        %v1051 = vsel %vm1024, %v963, 0.0
        %v1052 = vsel %vm1025, %v964, 0.0
        %v1053 = vsel %vm1026, %v965, 0.0
        %v1054 = vsel %vm1024, %v966, 0.0
        %v1055 = vsel %vm1025, %v967, 0.0
        %v1056 = vsel %vm1026, %v968, 0.0
        %v1057 = vsel %vm1024, %v969, 0.0
        %v1058 = vsel %vm1025, %v970, 0.0
        %v1059 = vsel %vm1026, %v971, 0.0
        %v1060 = vsel %vm1024, %v972, 0.0
        %v1061 = vsel %vm1025, %v973, 0.0
        %v1062 = vsel %vm1026, %v974, 0.0
        %v1063 = vsel %vm1024, %v975, 0.0
        %v1064 = vsel %vm1025, %v976, 0.0
        %v1065 = vsel %vm1026, %v977, 0.0
        %v1066 = vsel %vm1024, %v978, 0.0
        %v1067 = vsel %vm1025, %v979, 0.0
        %v1068 = vsel %vm1026, %v980, 0.0
        %v1069 = vsel %vm1024, %v981, 0.0
        %v1070 = vsel %vm1025, %v982, 0.0
        %v1071 = vsel %vm1026, %v983, 0.0
        %v1072 = vsel %vm1024, %v984, 0.0
        %v1073 = vsel %vm1025, %v985, 0.0
        %v1074 = vsel %vm1026, %v986, 0.0
        %v1075 = vsel %vm1024, %v987, 0.0
        %v1076 = vsel %vm1025, %v988, 0.0
        %v1077 = vsel %vm1026, %v989, 0.0
        %v1078 = vsel %vm1021, %v990, 0.0
        %v1079 = vsel %vm1022, %v991, 0.0
        %v1080 = vsel %vm1023, %v992, 0.0
        %1081 = vst [vmem:[#allocation2] sm:$0xff] %v1027
        %1082 = vst [vmem:[#allocation2 + $0x8] sm:$0xff] %v1028
        %1083 = vst [vmem:[#allocation2 + $0x10] sm:$0xff] %v1029
        %1084 = vst [vmem:[#allocation2 + $0x18] sm:$0xff] %v1030
        %1085 = vst [vmem:[#allocation2 + $0x20] sm:$0xff] %v1031
        %1086 = vst [vmem:[#allocation2 + $0x28] sm:$0xff] %v1032
        %1087 = vst [vmem:[#allocation2 + $0x30] sm:$0xff] %v1033
        %1088 = vst [vmem:[#allocation2 + $0x38] sm:$0xff] %v1034
        %1089 = vst [vmem:[#allocation2 + $0x40] sm:$0xff] %v1035
        %1090 = vst [vmem:[#allocation2 + $0x48] sm:$0xff] %v1036
        %1091 = vst [vmem:[#allocation2 + $0x50] sm:$0xff] %v1037
        %1092 = vst [vmem:[#allocation2 + $0x58] sm:$0xff] %v1038
        %1093 = vst [vmem:[#allocation2 + $0x60] sm:$0xff] %v1039
        %1094 = vst [vmem:[#allocation2 + $0x68] sm:$0xff] %v1040
        %1095 = vst [vmem:[#allocation2 + $0x70] sm:$0xff] %v1041
        %1096 = vst [vmem:[#allocation2 + $0x78] sm:$0xff] %v1042
        %1097 = vst [vmem:[#allocation2 + $0x80] sm:$0xff] %v1043
        %1098 = vst [vmem:[#allocation2 + $0x88] sm:$0xff] %v1044
        %1099 = vst [vmem:[#allocation2 + $0x90] sm:$0xff] %v1045
        %1100 = vst [vmem:[#allocation2 + $0x98] sm:$0xff] %v1046
        %1101 = vst [vmem:[#allocation2 + $0xa0] sm:$0xff] %v1047
        %1102 = vst [vmem:[#allocation2 + $0xa8] sm:$0xff] %v1048
        %1103 = vst [vmem:[#allocation2 + $0xb0] sm:$0xff] %v1049
        %1104 = vst [vmem:[#allocation2 + $0xb8] sm:$0xff] %v1050
        %1105 = vst [vmem:[#allocation2 + $0xc0] sm:$0xff] %v1051
        %1106 = vst [vmem:[#allocation2 + $0xc8] sm:$0xff] %v1052
        %1107 = vst [vmem:[#allocation2 + $0xd0] sm:$0xff] %v1053
        %1108 = vst [vmem:[#allocation2 + $0xd8] sm:$0xff] %v1054
        %1109 = vst [vmem:[#allocation2 + $0xe0] sm:$0xff] %v1055
        %1110 = vst [vmem:[#allocation2 + $0xe8] sm:$0xff] %v1056
        %1111 = vst [vmem:[#allocation2 + $0xf0] sm:$0xff] %v1057
        %1112 = vst [vmem:[#allocation2 + $0xf8] sm:$0xff] %v1058
        %1113 = vst [vmem:[#allocation2 + $0x100] sm:$0xff] %v1059
        %1114 = vst [vmem:[#allocation2 + $0x108] sm:$0xff] %v1060
        %1115 = vst [vmem:[#allocation2 + $0x110] sm:$0xff] %v1061
        %1116 = vst [vmem:[#allocation2 + $0x118] sm:$0xff] %v1062
        %1117 = vst [vmem:[#allocation2 + $0x120] sm:$0xff] %v1063
        %1118 = vst [vmem:[#allocation2 + $0x128] sm:$0xff] %v1064
        %1119 = vst [vmem:[#allocation2 + $0x130] sm:$0xff] %v1065
        %1120 = vst [vmem:[#allocation2 + $0x138] sm:$0xff] %v1066
        %1121 = vst [vmem:[#allocation2 + $0x140] sm:$0xff] %v1067
        %1122 = vst [vmem:[#allocation2 + $0x148] sm:$0xff] %v1068
        %1123 = vst [vmem:[#allocation2 + $0x150] sm:$0xff] %v1069
        %1124 = vst [vmem:[#allocation2 + $0x158] sm:$0xff] %v1070
        %1125 = vst [vmem:[#allocation2 + $0x160] sm:$0xff] %v1071
        %1126 = vst [vmem:[#allocation2 + $0x168] sm:$0xff] %v1072
        %1127 = vst [vmem:[#allocation2 + $0x170] sm:$0xff] %v1073
        %1128 = vst [vmem:[#allocation2 + $0x178] sm:$0xff] %v1074
        %1129 = vst [vmem:[#allocation2 + $0x180] sm:$0xff] %v1075
        %1130 = vst [vmem:[#allocation2 + $0x188] sm:$0xff] %v1076
        %1131 = vst [vmem:[#allocation2 + $0x190] sm:$0xff] %v1077
        %1132 = vst [vmem:[#allocation2 + $0x198] sm:$0xff] %v1078
        %1133 = vst [vmem:[#allocation2 + $0x1a0] sm:$0xff] %v1079
        %1134 = vst [vmem:[#allocation2 + $0x1a8] sm:$0xff] %v1080
        %v1135 = vld [vmem:[#allocation8] sm:$0xff]
        %v1136 = vld [vmem:[#allocation8 + $0x8] sm:$0x1]
        %v1137 = vld [vmem:[#allocation2] sm:$0xff]
        %v1138 = vld [vmem:[#allocation2 + $0x8] sm:$0xff]
        %v1139 = vld [vmem:[#allocation2 + $0x18] sm:$0xff]
        %v1140 = vld [vmem:[#allocation2 + $0x20] sm:$0xff]
        %v1141 = vld [vmem:[#allocation2 + $0x30] sm:$0xff]
        %v1142 = vld [vmem:[#allocation2 + $0x38] sm:$0xff]
        %v1143 = vld [vmem:[#allocation2 + $0x48] sm:$0xff]
        %v1144 = vld [vmem:[#allocation2 + $0x50] sm:$0xff]
        %v1145 = vld [vmem:[#allocation2 + $0x60] sm:$0xff]
        %v1146 = vld [vmem:[#allocation2 + $0x68] sm:$0xff]
        %v1147 = vld [vmem:[#allocation2 + $0x78] sm:$0xff]
        %v1148 = vld [vmem:[#allocation2 + $0x80] sm:$0xff]
        %v1149 = vld [vmem:[#allocation2 + $0x90] sm:$0xff]
        %v1150 = vld [vmem:[#allocation2 + $0x98] sm:$0xff]
        %v1151 = vld [vmem:[#allocation2 + $0xa8] sm:$0xff]
        %v1152 = vld [vmem:[#allocation2 + $0xb0] sm:$0xff]
        %v1153 = vld [vmem:[#allocation2 + $0xc0] sm:$0xff]
        %v1154 = vld [vmem:[#allocation2 + $0xc8] sm:$0xff]
        %v1155 = vld [vmem:[#allocation2 + $0xd8] sm:$0xff]
        %v1156 = vld [vmem:[#allocation2 + $0xe0] sm:$0xff]
        %v1157 = vld [vmem:[#allocation2 + $0xf0] sm:$0xff]
        %v1158 = vld [vmem:[#allocation2 + $0xf8] sm:$0xff]
        %v1159 = vld [vmem:[#allocation2 + $0x108] sm:$0xff]
        %v1160 = vld [vmem:[#allocation2 + $0x110] sm:$0xff]
        %v1161 = vld [vmem:[#allocation2 + $0x120] sm:$0xff]
        %v1162 = vld [vmem:[#allocation2 + $0x128] sm:$0xff]
        %v1163 = vld [vmem:[#allocation2 + $0x138] sm:$0xff]
        %v1164 = vld [vmem:[#allocation2 + $0x140] sm:$0xff]
        %v1165 = vld [vmem:[#allocation2 + $0x150] sm:$0xff]
        %v1166 = vld [vmem:[#allocation2 + $0x158] sm:$0xff]
        %v1167 = vld [vmem:[#allocation2 + $0x168] sm:$0xff]
        %v1168 = vld [vmem:[#allocation2 + $0x170] sm:$0xff]
        %v1169 = vlaneseq
        %v1170 = vshrl.u32 %v1169, 7
        %v1171 = vsub.s32 0, %v1170
        %v1172 = vrot.slane %v1135, %v1171
        %v1173 = vmul.f32 %v1137, %v1172
        %v1174 = vmul.f32 %v1138, %v1172
        %v1175 = vmul.f32 %v1139, %v1172
        %v1176 = vmul.f32 %v1140, %v1172
        %v1177 = vmul.f32 %v1141, %v1172
        %v1178 = vmul.f32 %v1142, %v1172
        %v1179 = vmul.f32 %v1143, %v1172
        %v1180 = vmul.f32 %v1144, %v1172
        %v1181 = vmul.f32 %v1145, %v1172
        %v1182 = vmul.f32 %v1146, %v1172
        %v1183 = vmul.f32 %v1147, %v1172
        %v1184 = vmul.f32 %v1148, %v1172
        %v1185 = vmul.f32 %v1149, %v1172
        %v1186 = vmul.f32 %v1150, %v1172
        %v1187 = vmul.f32 %v1151, %v1172
        %v1188 = vmul.f32 %v1152, %v1172
        %v1189 = vmul.f32 %v1153, %v1172
        %v1190 = vmul.f32 %v1154, %v1172
        %v1191 = vmul.f32 %v1155, %v1172
        %v1192 = vmul.f32 %v1156, %v1172
        %v1193 = vmul.f32 %v1157, %v1172
        %v1194 = vmul.f32 %v1158, %v1172
        %v1195 = vmul.f32 %v1159, %v1172
        %v1196 = vmul.f32 %v1160, %v1172
        %v1197 = vmul.f32 %v1161, %v1172
        %v1198 = vmul.f32 %v1162, %v1172
        %v1199 = vmul.f32 %v1163, %v1172
        %v1200 = vmul.f32 %v1164, %v1172
        %v1201 = vmul.f32 %v1165, %v1172
        %v1202 = vmul.f32 %v1166, %v1172
        %v1203 = vmul.f32 %v1167, %v1172
        %v1204 = vmul.f32 %v1168, %v1172
        %v1205 = vadd.f32 %v1173, 0.0
        %v1206 = vadd.f32 %v1174, 0.0
        %v1207 = vadd.f32 %v1175, 0.0
        %v1208 = vadd.f32 %v1176, 0.0
        %v1209 = vadd.f32 %v1177, 0.0
        %v1210 = vadd.f32 %v1178, 0.0
        %v1211 = vadd.f32 %v1179, 0.0
        %v1212 = vadd.f32 %v1180, 0.0
        %v1213 = vadd.f32 %v1181, 0.0
        %v1214 = vadd.f32 %v1182, 0.0
        %v1215 = vadd.f32 %v1183, 0.0
        %v1216 = vadd.f32 %v1184, 0.0
        %v1217 = vadd.f32 %v1185, 0.0
        %v1218 = vadd.f32 %v1186, 0.0
        %v1219 = vadd.f32 %v1187, 0.0
        %v1220 = vadd.f32 %v1188, 0.0
        %v1221 = vadd.f32 %v1189, 0.0
        %v1222 = vadd.f32 %v1190, 0.0
        %v1223 = vadd.f32 %v1191, 0.0
        %v1224 = vadd.f32 %v1192, 0.0
        %v1225 = vadd.f32 %v1193, 0.0
        %v1226 = vadd.f32 %v1194, 0.0
        %v1227 = vadd.f32 %v1195, 0.0
        %v1228 = vadd.f32 %v1196, 0.0
        %v1229 = vadd.f32 %v1197, 0.0
        %v1230 = vadd.f32 %v1198, 0.0
        %v1231 = vadd.f32 %v1199, 0.0
        %v1232 = vadd.f32 %v1200, 0.0
        %v1233 = vadd.f32 %v1201, 0.0
        %v1234 = vadd.f32 %v1202, 0.0
        %v1235 = vadd.f32 %v1203, 0.0
        %v1236 = vadd.f32 %v1204, 0.0
        %v1237 = vld [vmem:[#allocation2 + $0x1] sm:$0xff]
        %v1238 = vld [vmem:[#allocation2 + $0x9] sm:$0xff]
        %v1239 = vld [vmem:[#allocation2 + $0x19] sm:$0xff]
        %v1240 = vld [vmem:[#allocation2 + $0x21] sm:$0xff]
        %v1241 = vld [vmem:[#allocation2 + $0x31] sm:$0xff]
        %v1242 = vld [vmem:[#allocation2 + $0x39] sm:$0xff]
        %v1243 = vld [vmem:[#allocation2 + $0x49] sm:$0xff]
        %v1244 = vld [vmem:[#allocation2 + $0x51] sm:$0xff]
        %v1245 = vld [vmem:[#allocation2 + $0x61] sm:$0xff]
        %v1246 = vld [vmem:[#allocation2 + $0x69] sm:$0xff]
        %v1247 = vld [vmem:[#allocation2 + $0x79] sm:$0xff]
        %v1248 = vld [vmem:[#allocation2 + $0x81] sm:$0xff]
        %v1249 = vld [vmem:[#allocation2 + $0x91] sm:$0xff]
        %v1250 = vld [vmem:[#allocation2 + $0x99] sm:$0xff]
        %v1251 = vld [vmem:[#allocation2 + $0xa9] sm:$0xff]
        %v1252 = vld [vmem:[#allocation2 + $0xb1] sm:$0xff]
        %v1253 = vld [vmem:[#allocation2 + $0xc1] sm:$0xff]
        %v1254 = vld [vmem:[#allocation2 + $0xc9] sm:$0xff]
        %v1255 = vld [vmem:[#allocation2 + $0xd9] sm:$0xff]
        %v1256 = vld [vmem:[#allocation2 + $0xe1] sm:$0xff]
        %v1257 = vld [vmem:[#allocation2 + $0xf1] sm:$0xff]
        %v1258 = vld [vmem:[#allocation2 + $0xf9] sm:$0xff]
        %v1259 = vld [vmem:[#allocation2 + $0x109] sm:$0xff]
        %v1260 = vld [vmem:[#allocation2 + $0x111] sm:$0xff]
        %v1261 = vld [vmem:[#allocation2 + $0x121] sm:$0xff]
        %v1262 = vld [vmem:[#allocation2 + $0x129] sm:$0xff]
        %v1263 = vld [vmem:[#allocation2 + $0x139] sm:$0xff]
        %v1264 = vld [vmem:[#allocation2 + $0x141] sm:$0xff]
        %v1265 = vld [vmem:[#allocation2 + $0x151] sm:$0xff]
        %v1266 = vld [vmem:[#allocation2 + $0x159] sm:$0xff]
        %v1267 = vld [vmem:[#allocation2 + $0x169] sm:$0xff]
        %v1268 = vld [vmem:[#allocation2 + $0x171] sm:$0xff]
        %v1269 = vlaneseq
        %v1270 = vshrl.u32 %v1269, 7
        %v1271 = vsub.s32 1, %v1270
        %v1272 = vrot.slane %v1135, %v1271
        %v1273 = vmul.f32 %v1237, %v1272
        %v1274 = vmul.f32 %v1238, %v1272
        %v1275 = vmul.f32 %v1239, %v1272
        %v1276 = vmul.f32 %v1240, %v1272
        %v1277 = vmul.f32 %v1241, %v1272
        %v1278 = vmul.f32 %v1242, %v1272
        %v1279 = vmul.f32 %v1243, %v1272
        %v1280 = vmul.f32 %v1244, %v1272
        %v1281 = vmul.f32 %v1245, %v1272
        %v1282 = vmul.f32 %v1246, %v1272
        %v1283 = vmul.f32 %v1247, %v1272
        %v1284 = vmul.f32 %v1248, %v1272
        %v1285 = vmul.f32 %v1249, %v1272
        %v1286 = vmul.f32 %v1250, %v1272
        %v1287 = vmul.f32 %v1251, %v1272
        %v1288 = vmul.f32 %v1252, %v1272
        %v1289 = vmul.f32 %v1253, %v1272
        %v1290 = vmul.f32 %v1254, %v1272
        %v1291 = vmul.f32 %v1255, %v1272
        %v1292 = vmul.f32 %v1256, %v1272
        %v1293 = vmul.f32 %v1257, %v1272
        %v1294 = vmul.f32 %v1258, %v1272
        %v1295 = vmul.f32 %v1259, %v1272
        %v1296 = vmul.f32 %v1260, %v1272
        %v1297 = vmul.f32 %v1261, %v1272
        %v1298 = vmul.f32 %v1262, %v1272
        %v1299 = vmul.f32 %v1263, %v1272
        %v1300 = vmul.f32 %v1264, %v1272
        %v1301 = vmul.f32 %v1265, %v1272
        %v1302 = vmul.f32 %v1266, %v1272
        %v1303 = vmul.f32 %v1267, %v1272
        %v1304 = vmul.f32 %v1268, %v1272
        %v1305 = vadd.f32 %v1205, %v1273
        %v1306 = vadd.f32 %v1206, %v1274
        %v1307 = vadd.f32 %v1207, %v1275
        %v1308 = vadd.f32 %v1208, %v1276
        %v1309 = vadd.f32 %v1209, %v1277
        %v1310 = vadd.f32 %v1210, %v1278
        %v1311 = vadd.f32 %v1211, %v1279
        %v1312 = vadd.f32 %v1212, %v1280
        %v1313 = vadd.f32 %v1213, %v1281
        %v1314 = vadd.f32 %v1214, %v1282
        %v1315 = vadd.f32 %v1215, %v1283
        %v1316 = vadd.f32 %v1216, %v1284
        %v1317 = vadd.f32 %v1217, %v1285
        %v1318 = vadd.f32 %v1218, %v1286
        %v1319 = vadd.f32 %v1219, %v1287
        %v1320 = vadd.f32 %v1220, %v1288
        %v1321 = vadd.f32 %v1221, %v1289
        %v1322 = vadd.f32 %v1222, %v1290
        %v1323 = vadd.f32 %v1223, %v1291
        %v1324 = vadd.f32 %v1224, %v1292
        %v1325 = vadd.f32 %v1225, %v1293
        %v1326 = vadd.f32 %v1226, %v1294
        %v1327 = vadd.f32 %v1227, %v1295
        %v1328 = vadd.f32 %v1228, %v1296
        %v1329 = vadd.f32 %v1229, %v1297
        %v1330 = vadd.f32 %v1230, %v1298
        %v1331 = vadd.f32 %v1231, %v1299
        %v1332 = vadd.f32 %v1232, %v1300
        %v1333 = vadd.f32 %v1233, %v1301
        %v1334 = vadd.f32 %v1234, %v1302
        %v1335 = vadd.f32 %v1235, %v1303
        %v1336 = vadd.f32 %v1236, %v1304
        %v1337 = vld [vmem:[#allocation2 + $0x2] sm:$0xff]
        %v1338 = vld [vmem:[#allocation2 + $0xa] sm:$0xff]
        %v1339 = vld [vmem:[#allocation2 + $0x1a] sm:$0xff]
        %v1340 = vld [vmem:[#allocation2 + $0x22] sm:$0xff]
        %v1341 = vld [vmem:[#allocation2 + $0x32] sm:$0xff]
        %v1342 = vld [vmem:[#allocation2 + $0x3a] sm:$0xff]
        %v1343 = vld [vmem:[#allocation2 + $0x4a] sm:$0xff]
        %v1344 = vld [vmem:[#allocation2 + $0x52] sm:$0xff]
        %v1345 = vld [vmem:[#allocation2 + $0x62] sm:$0xff]
        %v1346 = vld [vmem:[#allocation2 + $0x6a] sm:$0xff]
        %v1347 = vld [vmem:[#allocation2 + $0x7a] sm:$0xff]
        %v1348 = vld [vmem:[#allocation2 + $0x82] sm:$0xff]
        %v1349 = vld [vmem:[#allocation2 + $0x92] sm:$0xff]
        %v1350 = vld [vmem:[#allocation2 + $0x9a] sm:$0xff]
        %v1351 = vld [vmem:[#allocation2 + $0xaa] sm:$0xff]
        %v1352 = vld [vmem:[#allocation2 + $0xb2] sm:$0xff]
        %v1353 = vld [vmem:[#allocation2 + $0xc2] sm:$0xff]
        %v1354 = vld [vmem:[#allocation2 + $0xca] sm:$0xff]
        %v1355 = vld [vmem:[#allocation2 + $0xda] sm:$0xff]
        %v1356 = vld [vmem:[#allocation2 + $0xe2] sm:$0xff]
        %v1357 = vld [vmem:[#allocation2 + $0xf2] sm:$0xff]
        %v1358 = vld [vmem:[#allocation2 + $0xfa] sm:$0xff]
        %v1359 = vld [vmem:[#allocation2 + $0x10a] sm:$0xff]
        %v1360 = vld [vmem:[#allocation2 + $0x112] sm:$0xff]
        %v1361 = vld [vmem:[#allocation2 + $0x122] sm:$0xff]
        %v1362 = vld [vmem:[#allocation2 + $0x12a] sm:$0xff]
        %v1363 = vld [vmem:[#allocation2 + $0x13a] sm:$0xff]
        %v1364 = vld [vmem:[#allocation2 + $0x142] sm:$0xff]
        %v1365 = vld [vmem:[#allocation2 + $0x152] sm:$0xff]
        %v1366 = vld [vmem:[#allocation2 + $0x15a] sm:$0xff]
        %v1367 = vld [vmem:[#allocation2 + $0x16a] sm:$0xff]
        %v1368 = vld [vmem:[#allocation2 + $0x172] sm:$0xff]
        %v1369 = vlaneseq
        %v1370 = vshrl.u32 %v1369, 7
        %v1371 = vsub.s32 2, %v1370
        %v1372 = vrot.slane %v1135, %v1371
        %v1373 = vmul.f32 %v1337, %v1372
        %v1374 = vmul.f32 %v1338, %v1372
        %v1375 = vmul.f32 %v1339, %v1372
        %v1376 = vmul.f32 %v1340, %v1372
        %v1377 = vmul.f32 %v1341, %v1372
        %v1378 = vmul.f32 %v1342, %v1372
        %v1379 = vmul.f32 %v1343, %v1372
        %v1380 = vmul.f32 %v1344, %v1372
        %v1381 = vmul.f32 %v1345, %v1372
        %v1382 = vmul.f32 %v1346, %v1372
        %v1383 = vmul.f32 %v1347, %v1372
        %v1384 = vmul.f32 %v1348, %v1372
        %v1385 = vmul.f32 %v1349, %v1372
        %v1386 = vmul.f32 %v1350, %v1372
        %v1387 = vmul.f32 %v1351, %v1372
        %v1388 = vmul.f32 %v1352, %v1372
        %v1389 = vmul.f32 %v1353, %v1372
        %v1390 = vmul.f32 %v1354, %v1372
        %v1391 = vmul.f32 %v1355, %v1372
        %v1392 = vmul.f32 %v1356, %v1372
        %v1393 = vmul.f32 %v1357, %v1372
        %v1394 = vmul.f32 %v1358, %v1372
        %v1395 = vmul.f32 %v1359, %v1372
        %v1396 = vmul.f32 %v1360, %v1372
        %v1397 = vmul.f32 %v1361, %v1372
        %v1398 = vmul.f32 %v1362, %v1372
        %v1399 = vmul.f32 %v1363, %v1372
        %v1400 = vmul.f32 %v1364, %v1372
        %v1401 = vmul.f32 %v1365, %v1372
        %v1402 = vmul.f32 %v1366, %v1372
        %v1403 = vmul.f32 %v1367, %v1372
        %v1404 = vmul.f32 %v1368, %v1372
        %v1405 = vadd.f32 %v1305, %v1373
        %v1406 = vadd.f32 %v1306, %v1374
        %v1407 = vadd.f32 %v1307, %v1375
        %v1408 = vadd.f32 %v1308, %v1376
        %v1409 = vadd.f32 %v1309, %v1377
        %v1410 = vadd.f32 %v1310, %v1378
        %v1411 = vadd.f32 %v1311, %v1379
        %v1412 = vadd.f32 %v1312, %v1380
        %v1413 = vadd.f32 %v1313, %v1381
        %v1414 = vadd.f32 %v1314, %v1382
        %v1415 = vadd.f32 %v1315, %v1383
        %v1416 = vadd.f32 %v1316, %v1384
        %v1417 = vadd.f32 %v1317, %v1385
        %v1418 = vadd.f32 %v1318, %v1386
        %v1419 = vadd.f32 %v1319, %v1387
        %v1420 = vadd.f32 %v1320, %v1388
        %v1421 = vadd.f32 %v1321, %v1389
        %v1422 = vadd.f32 %v1322, %v1390
        %v1423 = vadd.f32 %v1323, %v1391
        %v1424 = vadd.f32 %v1324, %v1392
        %v1425 = vadd.f32 %v1325, %v1393
        %v1426 = vadd.f32 %v1326, %v1394
        %v1427 = vadd.f32 %v1327, %v1395
        %v1428 = vadd.f32 %v1328, %v1396
        %v1429 = vadd.f32 %v1329, %v1397
        %v1430 = vadd.f32 %v1330, %v1398
        %v1431 = vadd.f32 %v1331, %v1399
        %v1432 = vadd.f32 %v1332, %v1400
        %v1433 = vadd.f32 %v1333, %v1401
        %v1434 = vadd.f32 %v1334, %v1402
        %v1435 = vadd.f32 %v1335, %v1403
        %v1436 = vadd.f32 %v1336, %v1404
        %s1437 = scalar_lea.vmem [#allocation2], 24
        %v1438 = vld [vmem:[%s1437] sm:$0xff]
        %v1439 = vld [vmem:[%s1437 + $0x8] sm:$0xff]
        %v1440 = vld [vmem:[%s1437 + $0x18] sm:$0xff]
        %v1441 = vld [vmem:[%s1437 + $0x20] sm:$0xff]
        %v1442 = vld [vmem:[%s1437 + $0x30] sm:$0xff]
        %v1443 = vld [vmem:[%s1437 + $0x38] sm:$0xff]
        %v1444 = vld [vmem:[%s1437 + $0x48] sm:$0xff]
        %v1445 = vld [vmem:[%s1437 + $0x50] sm:$0xff]
        %v1446 = vld [vmem:[%s1437 + $0x60] sm:$0xff]
        %v1447 = vld [vmem:[%s1437 + $0x68] sm:$0xff]
        %v1448 = vld [vmem:[%s1437 + $0x78] sm:$0xff]
        %v1449 = vld [vmem:[%s1437 + $0x80] sm:$0xff]
        %v1450 = vld [vmem:[%s1437 + $0x90] sm:$0xff]
        %v1451 = vld [vmem:[%s1437 + $0x98] sm:$0xff]
        %v1452 = vld [vmem:[%s1437 + $0xa8] sm:$0xff]
        %v1453 = vld [vmem:[%s1437 + $0xb0] sm:$0xff]
        %v1454 = vld [vmem:[%s1437 + $0xc0] sm:$0xff]
        %v1455 = vld [vmem:[%s1437 + $0xc8] sm:$0xff]
        %v1456 = vld [vmem:[%s1437 + $0xd8] sm:$0xff]
        %v1457 = vld [vmem:[%s1437 + $0xe0] sm:$0xff]
        %v1458 = vld [vmem:[%s1437 + $0xf0] sm:$0xff]
        %v1459 = vld [vmem:[%s1437 + $0xf8] sm:$0xff]
        %v1460 = vld [vmem:[%s1437 + $0x108] sm:$0xff]
        %v1461 = vld [vmem:[%s1437 + $0x110] sm:$0xff]
        %v1462 = vld [vmem:[%s1437 + $0x120] sm:$0xff]
        %v1463 = vld [vmem:[%s1437 + $0x128] sm:$0xff]
        %v1464 = vld [vmem:[%s1437 + $0x138] sm:$0xff]
        %v1465 = vld [vmem:[%s1437 + $0x140] sm:$0xff]
        %v1466 = vld [vmem:[%s1437 + $0x150] sm:$0xff]
        %v1467 = vld [vmem:[%s1437 + $0x158] sm:$0xff]
        %v1468 = vld [vmem:[%s1437 + $0x168] sm:$0xff]
        %v1469 = vld [vmem:[%s1437 + $0x170] sm:$0xff]
        %v1470 = vlaneseq
        %v1471 = vshrl.u32 %v1470, 7
        %v1472 = vsub.s32 3, %v1471
        %v1473 = vrot.slane %v1135, %v1472
        %v1474 = vmul.f32 %v1438, %v1473
        %v1475 = vmul.f32 %v1439, %v1473
        %v1476 = vmul.f32 %v1440, %v1473
        %v1477 = vmul.f32 %v1441, %v1473
        %v1478 = vmul.f32 %v1442, %v1473
        %v1479 = vmul.f32 %v1443, %v1473
        %v1480 = vmul.f32 %v1444, %v1473
        %v1481 = vmul.f32 %v1445, %v1473
        %v1482 = vmul.f32 %v1446, %v1473
        %v1483 = vmul.f32 %v1447, %v1473
        %v1484 = vmul.f32 %v1448, %v1473
        %v1485 = vmul.f32 %v1449, %v1473
        %v1486 = vmul.f32 %v1450, %v1473
        %v1487 = vmul.f32 %v1451, %v1473
        %v1488 = vmul.f32 %v1452, %v1473
        %v1489 = vmul.f32 %v1453, %v1473
        %v1490 = vmul.f32 %v1454, %v1473
        %v1491 = vmul.f32 %v1455, %v1473
        %v1492 = vmul.f32 %v1456, %v1473
        %v1493 = vmul.f32 %v1457, %v1473
        %v1494 = vmul.f32 %v1458, %v1473
        %v1495 = vmul.f32 %v1459, %v1473
        %v1496 = vmul.f32 %v1460, %v1473
        %v1497 = vmul.f32 %v1461, %v1473
        %v1498 = vmul.f32 %v1462, %v1473
        %v1499 = vmul.f32 %v1463, %v1473
        %v1500 = vmul.f32 %v1464, %v1473
        %v1501 = vmul.f32 %v1465, %v1473
        %v1502 = vmul.f32 %v1466, %v1473
        %v1503 = vmul.f32 %v1467, %v1473
        %v1504 = vmul.f32 %v1468, %v1473
        %v1505 = vmul.f32 %v1469, %v1473
        %v1506 = vadd.f32 %v1405, %v1474
        %v1507 = vadd.f32 %v1406, %v1475
        %v1508 = vadd.f32 %v1407, %v1476
        %v1509 = vadd.f32 %v1408, %v1477
        %v1510 = vadd.f32 %v1409, %v1478
        %v1511 = vadd.f32 %v1410, %v1479
        %v1512 = vadd.f32 %v1411, %v1480
        %v1513 = vadd.f32 %v1412, %v1481
        %v1514 = vadd.f32 %v1413, %v1482
        %v1515 = vadd.f32 %v1414, %v1483
        %v1516 = vadd.f32 %v1415, %v1484
        %v1517 = vadd.f32 %v1416, %v1485
        %v1518 = vadd.f32 %v1417, %v1486
        %v1519 = vadd.f32 %v1418, %v1487
        %v1520 = vadd.f32 %v1419, %v1488
        %v1521 = vadd.f32 %v1420, %v1489
        %v1522 = vadd.f32 %v1421, %v1490
        %v1523 = vadd.f32 %v1422, %v1491
        %v1524 = vadd.f32 %v1423, %v1492
        %v1525 = vadd.f32 %v1424, %v1493
        %v1526 = vadd.f32 %v1425, %v1494
        %v1527 = vadd.f32 %v1426, %v1495
        %v1528 = vadd.f32 %v1427, %v1496
        %v1529 = vadd.f32 %v1428, %v1497
        %v1530 = vadd.f32 %v1429, %v1498
        %v1531 = vadd.f32 %v1430, %v1499
        %v1532 = vadd.f32 %v1431, %v1500
        %v1533 = vadd.f32 %v1432, %v1501
        %v1534 = vadd.f32 %v1433, %v1502
        %v1535 = vadd.f32 %v1434, %v1503
        %v1536 = vadd.f32 %v1435, %v1504
        %v1537 = vadd.f32 %v1436, %v1505
        %v1538 = vld [vmem:[%s1437 + $0x1] sm:$0xff]
        %v1539 = vld [vmem:[%s1437 + $0x9] sm:$0xff]
        %v1540 = vld [vmem:[%s1437 + $0x19] sm:$0xff]
        %v1541 = vld [vmem:[%s1437 + $0x21] sm:$0xff]
        %v1542 = vld [vmem:[%s1437 + $0x31] sm:$0xff]
        %v1543 = vld [vmem:[%s1437 + $0x39] sm:$0xff]
        %v1544 = vld [vmem:[%s1437 + $0x49] sm:$0xff]
        %v1545 = vld [vmem:[%s1437 + $0x51] sm:$0xff]
        %v1546 = vld [vmem:[%s1437 + $0x61] sm:$0xff]
        %v1547 = vld [vmem:[%s1437 + $0x69] sm:$0xff]
        %v1548 = vld [vmem:[%s1437 + $0x79] sm:$0xff]
        %v1549 = vld [vmem:[%s1437 + $0x81] sm:$0xff]
        %v1550 = vld [vmem:[%s1437 + $0x91] sm:$0xff]
        %v1551 = vld [vmem:[%s1437 + $0x99] sm:$0xff]
        %v1552 = vld [vmem:[%s1437 + $0xa9] sm:$0xff]
        %v1553 = vld [vmem:[%s1437 + $0xb1] sm:$0xff]
        %v1554 = vld [vmem:[%s1437 + $0xc1] sm:$0xff]
        %v1555 = vld [vmem:[%s1437 + $0xc9] sm:$0xff]
        %v1556 = vld [vmem:[%s1437 + $0xd9] sm:$0xff]
        %v1557 = vld [vmem:[%s1437 + $0xe1] sm:$0xff]
        %v1558 = vld [vmem:[%s1437 + $0xf1] sm:$0xff]
        %v1559 = vld [vmem:[%s1437 + $0xf9] sm:$0xff]
        %v1560 = vld [vmem:[%s1437 + $0x109] sm:$0xff]
        %v1561 = vld [vmem:[%s1437 + $0x111] sm:$0xff]
        %v1562 = vld [vmem:[%s1437 + $0x121] sm:$0xff]
        %v1563 = vld [vmem:[%s1437 + $0x129] sm:$0xff]
        %v1564 = vld [vmem:[%s1437 + $0x139] sm:$0xff]
        %v1565 = vld [vmem:[%s1437 + $0x141] sm:$0xff]
        %v1566 = vld [vmem:[%s1437 + $0x151] sm:$0xff]
        %v1567 = vld [vmem:[%s1437 + $0x159] sm:$0xff]
        %v1568 = vld [vmem:[%s1437 + $0x169] sm:$0xff]
        %v1569 = vld [vmem:[%s1437 + $0x171] sm:$0xff]
        %v1570 = vlaneseq
        %v1571 = vshrl.u32 %v1570, 7
        %v1572 = vsub.s32 4, %v1571
        %v1573 = vrot.slane %v1135, %v1572
        %v1574 = vmul.f32 %v1538, %v1573
        %v1575 = vmul.f32 %v1539, %v1573
        %v1576 = vmul.f32 %v1540, %v1573
        %v1577 = vmul.f32 %v1541, %v1573
        %v1578 = vmul.f32 %v1542, %v1573
        %v1579 = vmul.f32 %v1543, %v1573
        %v1580 = vmul.f32 %v1544, %v1573
        %v1581 = vmul.f32 %v1545, %v1573
        %v1582 = vmul.f32 %v1546, %v1573
        %v1583 = vmul.f32 %v1547, %v1573
        %v1584 = vmul.f32 %v1548, %v1573
        %v1585 = vmul.f32 %v1549, %v1573
        %v1586 = vmul.f32 %v1550, %v1573
        %v1587 = vmul.f32 %v1551, %v1573
        %v1588 = vmul.f32 %v1552, %v1573
        %v1589 = vmul.f32 %v1553, %v1573
        %v1590 = vmul.f32 %v1554, %v1573
        %v1591 = vmul.f32 %v1555, %v1573
        %v1592 = vmul.f32 %v1556, %v1573
        %v1593 = vmul.f32 %v1557, %v1573
        %v1594 = vmul.f32 %v1558, %v1573
        %v1595 = vmul.f32 %v1559, %v1573
        %v1596 = vmul.f32 %v1560, %v1573
        %v1597 = vmul.f32 %v1561, %v1573
        %v1598 = vmul.f32 %v1562, %v1573
        %v1599 = vmul.f32 %v1563, %v1573
        %v1600 = vmul.f32 %v1564, %v1573
        %v1601 = vmul.f32 %v1565, %v1573
        %v1602 = vmul.f32 %v1566, %v1573
        %v1603 = vmul.f32 %v1567, %v1573
        %v1604 = vmul.f32 %v1568, %v1573
        %v1605 = vmul.f32 %v1569, %v1573
        %v1606 = vadd.f32 %v1506, %v1574
        %v1607 = vadd.f32 %v1507, %v1575
        %v1608 = vadd.f32 %v1508, %v1576
        %v1609 = vadd.f32 %v1509, %v1577
        %v1610 = vadd.f32 %v1510, %v1578
        %v1611 = vadd.f32 %v1511, %v1579
        %v1612 = vadd.f32 %v1512, %v1580
        %v1613 = vadd.f32 %v1513, %v1581
        %v1614 = vadd.f32 %v1514, %v1582
        %v1615 = vadd.f32 %v1515, %v1583
        %v1616 = vadd.f32 %v1516, %v1584
        %v1617 = vadd.f32 %v1517, %v1585
        %v1618 = vadd.f32 %v1518, %v1586
        %v1619 = vadd.f32 %v1519, %v1587
        %v1620 = vadd.f32 %v1520, %v1588
        %v1621 = vadd.f32 %v1521, %v1589
        %v1622 = vadd.f32 %v1522, %v1590
        %v1623 = vadd.f32 %v1523, %v1591
        %v1624 = vadd.f32 %v1524, %v1592
        %v1625 = vadd.f32 %v1525, %v1593
        %v1626 = vadd.f32 %v1526, %v1594
        %v1627 = vadd.f32 %v1527, %v1595
        %v1628 = vadd.f32 %v1528, %v1596
        %v1629 = vadd.f32 %v1529, %v1597
        %v1630 = vadd.f32 %v1530, %v1598
        %v1631 = vadd.f32 %v1531, %v1599
        %v1632 = vadd.f32 %v1532, %v1600
        %v1633 = vadd.f32 %v1533, %v1601
        %v1634 = vadd.f32 %v1534, %v1602
        %v1635 = vadd.f32 %v1535, %v1603
        %v1636 = vadd.f32 %v1536, %v1604
        %v1637 = vadd.f32 %v1537, %v1605
        %v1638 = vld [vmem:[%s1437 + $0x2] sm:$0xff]
        %v1639 = vld [vmem:[%s1437 + $0xa] sm:$0xff]
        %v1640 = vld [vmem:[%s1437 + $0x1a] sm:$0xff]
        %v1641 = vld [vmem:[%s1437 + $0x22] sm:$0xff]
        %v1642 = vld [vmem:[%s1437 + $0x32] sm:$0xff]
        %v1643 = vld [vmem:[%s1437 + $0x3a] sm:$0xff]
        %v1644 = vld [vmem:[%s1437 + $0x4a] sm:$0xff]
        %v1645 = vld [vmem:[%s1437 + $0x52] sm:$0xff]
        %v1646 = vld [vmem:[%s1437 + $0x62] sm:$0xff]
        %v1647 = vld [vmem:[%s1437 + $0x6a] sm:$0xff]
        %v1648 = vld [vmem:[%s1437 + $0x7a] sm:$0xff]
        %v1649 = vld [vmem:[%s1437 + $0x82] sm:$0xff]
        %v1650 = vld [vmem:[%s1437 + $0x92] sm:$0xff]
        %v1651 = vld [vmem:[%s1437 + $0x9a] sm:$0xff]
        %v1652 = vld [vmem:[%s1437 + $0xaa] sm:$0xff]
        %v1653 = vld [vmem:[%s1437 + $0xb2] sm:$0xff]
        %v1654 = vld [vmem:[%s1437 + $0xc2] sm:$0xff]
        %v1655 = vld [vmem:[%s1437 + $0xca] sm:$0xff]
        %v1656 = vld [vmem:[%s1437 + $0xda] sm:$0xff]
        %v1657 = vld [vmem:[%s1437 + $0xe2] sm:$0xff]
        %v1658 = vld [vmem:[%s1437 + $0xf2] sm:$0xff]
        %v1659 = vld [vmem:[%s1437 + $0xfa] sm:$0xff]
        %v1660 = vld [vmem:[%s1437 + $0x10a] sm:$0xff]
        %v1661 = vld [vmem:[%s1437 + $0x112] sm:$0xff]
        %v1662 = vld [vmem:[%s1437 + $0x122] sm:$0xff]
        %v1663 = vld [vmem:[%s1437 + $0x12a] sm:$0xff]
        %v1664 = vld [vmem:[%s1437 + $0x13a] sm:$0xff]
        %v1665 = vld [vmem:[%s1437 + $0x142] sm:$0xff]
        %v1666 = vld [vmem:[%s1437 + $0x152] sm:$0xff]
        %v1667 = vld [vmem:[%s1437 + $0x15a] sm:$0xff]
        %v1668 = vld [vmem:[%s1437 + $0x16a] sm:$0xff]
        %v1669 = vld [vmem:[%s1437 + $0x172] sm:$0xff]
        %v1670 = vlaneseq
        %v1671 = vshrl.u32 %v1670, 7
        %v1672 = vsub.s32 5, %v1671
        %v1673 = vrot.slane %v1135, %v1672
        %v1674 = vmul.f32 %v1638, %v1673
        %v1675 = vmul.f32 %v1639, %v1673
        %v1676 = vmul.f32 %v1640, %v1673
        %v1677 = vmul.f32 %v1641, %v1673
        %v1678 = vmul.f32 %v1642, %v1673
        %v1679 = vmul.f32 %v1643, %v1673
        %v1680 = vmul.f32 %v1644, %v1673
        %v1681 = vmul.f32 %v1645, %v1673
        %v1682 = vmul.f32 %v1646, %v1673
        %v1683 = vmul.f32 %v1647, %v1673
        %v1684 = vmul.f32 %v1648, %v1673
        %v1685 = vmul.f32 %v1649, %v1673
        %v1686 = vmul.f32 %v1650, %v1673
        %v1687 = vmul.f32 %v1651, %v1673
        %v1688 = vmul.f32 %v1652, %v1673
        %v1689 = vmul.f32 %v1653, %v1673
        %v1690 = vmul.f32 %v1654, %v1673
        %v1691 = vmul.f32 %v1655, %v1673
        %v1692 = vmul.f32 %v1656, %v1673
        %v1693 = vmul.f32 %v1657, %v1673
        %v1694 = vmul.f32 %v1658, %v1673
        %v1695 = vmul.f32 %v1659, %v1673
        %v1696 = vmul.f32 %v1660, %v1673
        %v1697 = vmul.f32 %v1661, %v1673
        %v1698 = vmul.f32 %v1662, %v1673
        %v1699 = vmul.f32 %v1663, %v1673
        %v1700 = vmul.f32 %v1664, %v1673
        %v1701 = vmul.f32 %v1665, %v1673
        %v1702 = vmul.f32 %v1666, %v1673
        %v1703 = vmul.f32 %v1667, %v1673
        %v1704 = vmul.f32 %v1668, %v1673
        %v1705 = vmul.f32 %v1669, %v1673
        %v1706 = vadd.f32 %v1606, %v1674
        %v1707 = vadd.f32 %v1607, %v1675
        %v1708 = vadd.f32 %v1608, %v1676
        %v1709 = vadd.f32 %v1609, %v1677
        %v1710 = vadd.f32 %v1610, %v1678
        %v1711 = vadd.f32 %v1611, %v1679
        %v1712 = vadd.f32 %v1612, %v1680
        %v1713 = vadd.f32 %v1613, %v1681
        %v1714 = vadd.f32 %v1614, %v1682
        %v1715 = vadd.f32 %v1615, %v1683
        %v1716 = vadd.f32 %v1616, %v1684
        %v1717 = vadd.f32 %v1617, %v1685
        %v1718 = vadd.f32 %v1618, %v1686
        %v1719 = vadd.f32 %v1619, %v1687
        %v1720 = vadd.f32 %v1620, %v1688
        %v1721 = vadd.f32 %v1621, %v1689
        %v1722 = vadd.f32 %v1622, %v1690
        %v1723 = vadd.f32 %v1623, %v1691
        %v1724 = vadd.f32 %v1624, %v1692
        %v1725 = vadd.f32 %v1625, %v1693
        %v1726 = vadd.f32 %v1626, %v1694
        %v1727 = vadd.f32 %v1627, %v1695
        %v1728 = vadd.f32 %v1628, %v1696
        %v1729 = vadd.f32 %v1629, %v1697
        %v1730 = vadd.f32 %v1630, %v1698
        %v1731 = vadd.f32 %v1631, %v1699
        %v1732 = vadd.f32 %v1632, %v1700
        %v1733 = vadd.f32 %v1633, %v1701
        %v1734 = vadd.f32 %v1634, %v1702
        %v1735 = vadd.f32 %v1635, %v1703
        %v1736 = vadd.f32 %v1636, %v1704
        %v1737 = vadd.f32 %v1637, %v1705
        %s1738 = scalar_lea.vmem [#allocation2], 48
        %v1739 = vld [vmem:[%s1738] sm:$0xff]
        %v1740 = vld [vmem:[%s1738 + $0x8] sm:$0xff]
        %v1741 = vld [vmem:[%s1738 + $0x18] sm:$0xff]
        %v1742 = vld [vmem:[%s1738 + $0x20] sm:$0xff]
        %v1743 = vld [vmem:[%s1738 + $0x30] sm:$0xff]
        %v1744 = vld [vmem:[%s1738 + $0x38] sm:$0xff]
        %v1745 = vld [vmem:[%s1738 + $0x48] sm:$0xff]
        %v1746 = vld [vmem:[%s1738 + $0x50] sm:$0xff]
        %v1747 = vld [vmem:[%s1738 + $0x60] sm:$0xff]
        %v1748 = vld [vmem:[%s1738 + $0x68] sm:$0xff]
        %v1749 = vld [vmem:[%s1738 + $0x78] sm:$0xff]
        %v1750 = vld [vmem:[%s1738 + $0x80] sm:$0xff]
        %v1751 = vld [vmem:[%s1738 + $0x90] sm:$0xff]
        %v1752 = vld [vmem:[%s1738 + $0x98] sm:$0xff]
        %v1753 = vld [vmem:[%s1738 + $0xa8] sm:$0xff]
        %v1754 = vld [vmem:[%s1738 + $0xb0] sm:$0xff]
        %v1755 = vld [vmem:[%s1738 + $0xc0] sm:$0xff]
        %v1756 = vld [vmem:[%s1738 + $0xc8] sm:$0xff]
        %v1757 = vld [vmem:[%s1738 + $0xd8] sm:$0xff]
        %v1758 = vld [vmem:[%s1738 + $0xe0] sm:$0xff]
        %v1759 = vld [vmem:[%s1738 + $0xf0] sm:$0xff]
        %v1760 = vld [vmem:[%s1738 + $0xf8] sm:$0xff]
        %v1761 = vld [vmem:[%s1738 + $0x108] sm:$0xff]
        %v1762 = vld [vmem:[%s1738 + $0x110] sm:$0xff]
        %v1763 = vld [vmem:[%s1738 + $0x120] sm:$0xff]
        %v1764 = vld [vmem:[%s1738 + $0x128] sm:$0xff]
        %v1765 = vld [vmem:[%s1738 + $0x138] sm:$0xff]
        %v1766 = vld [vmem:[%s1738 + $0x140] sm:$0xff]
        %v1767 = vld [vmem:[%s1738 + $0x150] sm:$0xff]
        %v1768 = vld [vmem:[%s1738 + $0x158] sm:$0xff]
        %v1769 = vld [vmem:[%s1738 + $0x168] sm:$0xff]
        %v1770 = vld [vmem:[%s1738 + $0x170] sm:$0xff]
        %v1771 = vlaneseq
        %v1772 = vshrl.u32 %v1771, 7
        %v1773 = vsub.s32 6, %v1772
        %v1774 = vrot.slane %v1135, %v1773
        %v1775 = vmul.f32 %v1739, %v1774
        %v1776 = vmul.f32 %v1740, %v1774
        %v1777 = vmul.f32 %v1741, %v1774
        %v1778 = vmul.f32 %v1742, %v1774
        %v1779 = vmul.f32 %v1743, %v1774
        %v1780 = vmul.f32 %v1744, %v1774
        %v1781 = vmul.f32 %v1745, %v1774
        %v1782 = vmul.f32 %v1746, %v1774
        %v1783 = vmul.f32 %v1747, %v1774
        %v1784 = vmul.f32 %v1748, %v1774
        %v1785 = vmul.f32 %v1749, %v1774
        %v1786 = vmul.f32 %v1750, %v1774
        %v1787 = vmul.f32 %v1751, %v1774
        %v1788 = vmul.f32 %v1752, %v1774
        %v1789 = vmul.f32 %v1753, %v1774
        %v1790 = vmul.f32 %v1754, %v1774
        %v1791 = vmul.f32 %v1755, %v1774
        %v1792 = vmul.f32 %v1756, %v1774
        %v1793 = vmul.f32 %v1757, %v1774
        %v1794 = vmul.f32 %v1758, %v1774
        %v1795 = vmul.f32 %v1759, %v1774
        %v1796 = vmul.f32 %v1760, %v1774
        %v1797 = vmul.f32 %v1761, %v1774
        %v1798 = vmul.f32 %v1762, %v1774
        %v1799 = vmul.f32 %v1763, %v1774
        %v1800 = vmul.f32 %v1764, %v1774
        %v1801 = vmul.f32 %v1765, %v1774
        %v1802 = vmul.f32 %v1766, %v1774
        %v1803 = vmul.f32 %v1767, %v1774
        %v1804 = vmul.f32 %v1768, %v1774
        %v1805 = vmul.f32 %v1769, %v1774
        %v1806 = vmul.f32 %v1770, %v1774
        %v1807 = vadd.f32 %v1706, %v1775
        %v1808 = vadd.f32 %v1707, %v1776
        %v1809 = vadd.f32 %v1708, %v1777
        %v1810 = vadd.f32 %v1709, %v1778
        %v1811 = vadd.f32 %v1710, %v1779
        %v1812 = vadd.f32 %v1711, %v1780
        %v1813 = vadd.f32 %v1712, %v1781
        %v1814 = vadd.f32 %v1713, %v1782
        %v1815 = vadd.f32 %v1714, %v1783
        %v1816 = vadd.f32 %v1715, %v1784
        %v1817 = vadd.f32 %v1716, %v1785
        %v1818 = vadd.f32 %v1717, %v1786
        %v1819 = vadd.f32 %v1718, %v1787
        %v1820 = vadd.f32 %v1719, %v1788
        %v1821 = vadd.f32 %v1720, %v1789
        %v1822 = vadd.f32 %v1721, %v1790
        %v1823 = vadd.f32 %v1722, %v1791
        %v1824 = vadd.f32 %v1723, %v1792
        %v1825 = vadd.f32 %v1724, %v1793
        %v1826 = vadd.f32 %v1725, %v1794
        %v1827 = vadd.f32 %v1726, %v1795
        %v1828 = vadd.f32 %v1727, %v1796
        %v1829 = vadd.f32 %v1728, %v1797
        %v1830 = vadd.f32 %v1729, %v1798
        %v1831 = vadd.f32 %v1730, %v1799
        %v1832 = vadd.f32 %v1731, %v1800
        %v1833 = vadd.f32 %v1732, %v1801
        %v1834 = vadd.f32 %v1733, %v1802
        %v1835 = vadd.f32 %v1734, %v1803
        %v1836 = vadd.f32 %v1735, %v1804
        %v1837 = vadd.f32 %v1736, %v1805
        %v1838 = vadd.f32 %v1737, %v1806
        %v1839 = vld [vmem:[%s1738 + $0x1] sm:$0xff]
        %v1840 = vld [vmem:[%s1738 + $0x9] sm:$0xff]
        %v1841 = vld [vmem:[%s1738 + $0x19] sm:$0xff]
        %v1842 = vld [vmem:[%s1738 + $0x21] sm:$0xff]
        %v1843 = vld [vmem:[%s1738 + $0x31] sm:$0xff]
        %v1844 = vld [vmem:[%s1738 + $0x39] sm:$0xff]
        %v1845 = vld [vmem:[%s1738 + $0x49] sm:$0xff]
        %v1846 = vld [vmem:[%s1738 + $0x51] sm:$0xff]
        %v1847 = vld [vmem:[%s1738 + $0x61] sm:$0xff]
        %v1848 = vld [vmem:[%s1738 + $0x69] sm:$0xff]
        %v1849 = vld [vmem:[%s1738 + $0x79] sm:$0xff]
        %v1850 = vld [vmem:[%s1738 + $0x81] sm:$0xff]
        %v1851 = vld [vmem:[%s1738 + $0x91] sm:$0xff]
        %v1852 = vld [vmem:[%s1738 + $0x99] sm:$0xff]
        %v1853 = vld [vmem:[%s1738 + $0xa9] sm:$0xff]
        %v1854 = vld [vmem:[%s1738 + $0xb1] sm:$0xff]
        %v1855 = vld [vmem:[%s1738 + $0xc1] sm:$0xff]
        %v1856 = vld [vmem:[%s1738 + $0xc9] sm:$0xff]
        %v1857 = vld [vmem:[%s1738 + $0xd9] sm:$0xff]
        %v1858 = vld [vmem:[%s1738 + $0xe1] sm:$0xff]
        %v1859 = vld [vmem:[%s1738 + $0xf1] sm:$0xff]
        %v1860 = vld [vmem:[%s1738 + $0xf9] sm:$0xff]
        %v1861 = vld [vmem:[%s1738 + $0x109] sm:$0xff]
        %v1862 = vld [vmem:[%s1738 + $0x111] sm:$0xff]
        %v1863 = vld [vmem:[%s1738 + $0x121] sm:$0xff]
        %v1864 = vld [vmem:[%s1738 + $0x129] sm:$0xff]
        %v1865 = vld [vmem:[%s1738 + $0x139] sm:$0xff]
        %v1866 = vld [vmem:[%s1738 + $0x141] sm:$0xff]
        %v1867 = vld [vmem:[%s1738 + $0x151] sm:$0xff]
        %v1868 = vld [vmem:[%s1738 + $0x159] sm:$0xff]
        %v1869 = vld [vmem:[%s1738 + $0x169] sm:$0xff]
        %v1870 = vld [vmem:[%s1738 + $0x171] sm:$0xff]
        %v1871 = vlaneseq
        %v1872 = vshrl.u32 %v1871, 7
        %v1873 = vsub.s32 7, %v1872
        %v1874 = vrot.slane %v1135, %v1873
        %v1875 = vmul.f32 %v1839, %v1874
        %v1876 = vmul.f32 %v1840, %v1874
        %v1877 = vmul.f32 %v1841, %v1874
        %v1878 = vmul.f32 %v1842, %v1874
        %v1879 = vmul.f32 %v1843, %v1874
        %v1880 = vmul.f32 %v1844, %v1874
        %v1881 = vmul.f32 %v1845, %v1874
        %v1882 = vmul.f32 %v1846, %v1874
        %v1883 = vmul.f32 %v1847, %v1874
        %v1884 = vmul.f32 %v1848, %v1874
        %v1885 = vmul.f32 %v1849, %v1874
        %v1886 = vmul.f32 %v1850, %v1874
        %v1887 = vmul.f32 %v1851, %v1874
        %v1888 = vmul.f32 %v1852, %v1874
        %v1889 = vmul.f32 %v1853, %v1874
        %v1890 = vmul.f32 %v1854, %v1874
        %v1891 = vmul.f32 %v1855, %v1874
        %v1892 = vmul.f32 %v1856, %v1874
        %v1893 = vmul.f32 %v1857, %v1874
        %v1894 = vmul.f32 %v1858, %v1874
        %v1895 = vmul.f32 %v1859, %v1874
        %v1896 = vmul.f32 %v1860, %v1874
        %v1897 = vmul.f32 %v1861, %v1874
        %v1898 = vmul.f32 %v1862, %v1874
        %v1899 = vmul.f32 %v1863, %v1874
        %v1900 = vmul.f32 %v1864, %v1874
        %v1901 = vmul.f32 %v1865, %v1874
        %v1902 = vmul.f32 %v1866, %v1874
        %v1903 = vmul.f32 %v1867, %v1874
        %v1904 = vmul.f32 %v1868, %v1874
        %v1905 = vmul.f32 %v1869, %v1874
        %v1906 = vmul.f32 %v1870, %v1874
        %v1907 = vadd.f32 %v1807, %v1875
        %v1908 = vadd.f32 %v1808, %v1876
        %v1909 = vadd.f32 %v1809, %v1877
        %v1910 = vadd.f32 %v1810, %v1878
        %v1911 = vadd.f32 %v1811, %v1879
        %v1912 = vadd.f32 %v1812, %v1880
        %v1913 = vadd.f32 %v1813, %v1881
        %v1914 = vadd.f32 %v1814, %v1882
        %v1915 = vadd.f32 %v1815, %v1883
        %v1916 = vadd.f32 %v1816, %v1884
        %v1917 = vadd.f32 %v1817, %v1885
        %v1918 = vadd.f32 %v1818, %v1886
        %v1919 = vadd.f32 %v1819, %v1887
        %v1920 = vadd.f32 %v1820, %v1888
        %v1921 = vadd.f32 %v1821, %v1889
        %v1922 = vadd.f32 %v1822, %v1890
        %v1923 = vadd.f32 %v1823, %v1891
        %v1924 = vadd.f32 %v1824, %v1892
        %v1925 = vadd.f32 %v1825, %v1893
        %v1926 = vadd.f32 %v1826, %v1894
        %v1927 = vadd.f32 %v1827, %v1895
        %v1928 = vadd.f32 %v1828, %v1896
        %v1929 = vadd.f32 %v1829, %v1897
        %v1930 = vadd.f32 %v1830, %v1898
        %v1931 = vadd.f32 %v1831, %v1899
        %v1932 = vadd.f32 %v1832, %v1900
        %v1933 = vadd.f32 %v1833, %v1901
        %v1934 = vadd.f32 %v1834, %v1902
        %v1935 = vadd.f32 %v1835, %v1903
        %v1936 = vadd.f32 %v1836, %v1904
        %v1937 = vadd.f32 %v1837, %v1905
        %v1938 = vadd.f32 %v1838, %v1906
        %v1939 = vld [vmem:[%s1738 + $0x2] sm:$0xff]
        %v1940 = vld [vmem:[%s1738 + $0xa] sm:$0xff]
        %v1941 = vld [vmem:[%s1738 + $0x1a] sm:$0xff]
        %v1942 = vld [vmem:[%s1738 + $0x22] sm:$0xff]
        %v1943 = vld [vmem:[%s1738 + $0x32] sm:$0xff]
        %v1944 = vld [vmem:[%s1738 + $0x3a] sm:$0xff]
        %v1945 = vld [vmem:[%s1738 + $0x4a] sm:$0xff]
        %v1946 = vld [vmem:[%s1738 + $0x52] sm:$0xff]
        %v1947 = vld [vmem:[%s1738 + $0x62] sm:$0xff]
        %v1948 = vld [vmem:[%s1738 + $0x6a] sm:$0xff]
        %v1949 = vld [vmem:[%s1738 + $0x7a] sm:$0xff]
        %v1950 = vld [vmem:[%s1738 + $0x82] sm:$0xff]
        %v1951 = vld [vmem:[%s1738 + $0x92] sm:$0xff]
        %v1952 = vld [vmem:[%s1738 + $0x9a] sm:$0xff]
        %v1953 = vld [vmem:[%s1738 + $0xaa] sm:$0xff]
        %v1954 = vld [vmem:[%s1738 + $0xb2] sm:$0xff]
        %v1955 = vld [vmem:[%s1738 + $0xc2] sm:$0xff]
        %v1956 = vld [vmem:[%s1738 + $0xca] sm:$0xff]
        %v1957 = vld [vmem:[%s1738 + $0xda] sm:$0xff]
        %v1958 = vld [vmem:[%s1738 + $0xe2] sm:$0xff]
        %v1959 = vld [vmem:[%s1738 + $0xf2] sm:$0xff]
        %v1960 = vld [vmem:[%s1738 + $0xfa] sm:$0xff]
        %v1961 = vld [vmem:[%s1738 + $0x10a] sm:$0xff]
        %v1962 = vld [vmem:[%s1738 + $0x112] sm:$0xff]
        %v1963 = vld [vmem:[%s1738 + $0x122] sm:$0xff]
        %v1964 = vld [vmem:[%s1738 + $0x12a] sm:$0xff]
        %v1965 = vld [vmem:[%s1738 + $0x13a] sm:$0xff]
        %v1966 = vld [vmem:[%s1738 + $0x142] sm:$0xff]
        %v1967 = vld [vmem:[%s1738 + $0x152] sm:$0xff]
        %v1968 = vld [vmem:[%s1738 + $0x15a] sm:$0xff]
        %v1969 = vld [vmem:[%s1738 + $0x16a] sm:$0xff]
        %v1970 = vld [vmem:[%s1738 + $0x172] sm:$0xff]
        %v1971 = vlaneseq
        %v1972 = vshrl.u32 %v1971, 7
        %v1973 = vsub.s32 0, %v1972
        %v1974 = vrot.slane %v1136, %v1973
        %v1975 = vmul.f32 %v1939, %v1974
        %v1976 = vmul.f32 %v1940, %v1974
        %v1977 = vmul.f32 %v1941, %v1974
        %v1978 = vmul.f32 %v1942, %v1974
        %v1979 = vmul.f32 %v1943, %v1974
        %v1980 = vmul.f32 %v1944, %v1974
        %v1981 = vmul.f32 %v1945, %v1974
        %v1982 = vmul.f32 %v1946, %v1974
        %v1983 = vmul.f32 %v1947, %v1974
        %v1984 = vmul.f32 %v1948, %v1974
        %v1985 = vmul.f32 %v1949, %v1974
        %v1986 = vmul.f32 %v1950, %v1974
        %v1987 = vmul.f32 %v1951, %v1974
        %v1988 = vmul.f32 %v1952, %v1974
        %v1989 = vmul.f32 %v1953, %v1974
        %v1990 = vmul.f32 %v1954, %v1974
        %v1991 = vmul.f32 %v1955, %v1974
        %v1992 = vmul.f32 %v1956, %v1974
        %v1993 = vmul.f32 %v1957, %v1974
        %v1994 = vmul.f32 %v1958, %v1974
        %v1995 = vmul.f32 %v1959, %v1974
        %v1996 = vmul.f32 %v1960, %v1974
        %v1997 = vmul.f32 %v1961, %v1974
        %v1998 = vmul.f32 %v1962, %v1974
        %v1999 = vmul.f32 %v1963, %v1974
        %v2000 = vmul.f32 %v1964, %v1974
        %v2001 = vmul.f32 %v1965, %v1974
        %v2002 = vmul.f32 %v1966, %v1974
        %v2003 = vmul.f32 %v1967, %v1974
        %v2004 = vmul.f32 %v1968, %v1974
        %v2005 = vmul.f32 %v1969, %v1974
        %v2006 = vmul.f32 %v1970, %v1974
        %v2007 = vadd.f32 %v1907, %v1975
        %v2008 = vadd.f32 %v1908, %v1976
        %v2009 = vadd.f32 %v1909, %v1977
        %v2010 = vadd.f32 %v1910, %v1978
        %v2011 = vadd.f32 %v1911, %v1979
        %v2012 = vadd.f32 %v1912, %v1980
        %v2013 = vadd.f32 %v1913, %v1981
        %v2014 = vadd.f32 %v1914, %v1982
        %v2015 = vadd.f32 %v1915, %v1983
        %v2016 = vadd.f32 %v1916, %v1984
        %v2017 = vadd.f32 %v1917, %v1985
        %v2018 = vadd.f32 %v1918, %v1986
        %v2019 = vadd.f32 %v1919, %v1987
        %v2020 = vadd.f32 %v1920, %v1988
        %v2021 = vadd.f32 %v1921, %v1989
        %v2022 = vadd.f32 %v1922, %v1990
        %v2023 = vadd.f32 %v1923, %v1991
        %v2024 = vadd.f32 %v1924, %v1992
        %v2025 = vadd.f32 %v1925, %v1993
        %v2026 = vadd.f32 %v1926, %v1994
        %v2027 = vadd.f32 %v1927, %v1995
        %v2028 = vadd.f32 %v1928, %v1996
        %v2029 = vadd.f32 %v1929, %v1997
        %v2030 = vadd.f32 %v1930, %v1998
        %v2031 = vadd.f32 %v1931, %v1999
        %v2032 = vadd.f32 %v1932, %v2000
        %v2033 = vadd.f32 %v1933, %v2001
        %v2034 = vadd.f32 %v1934, %v2002
        %v2035 = vadd.f32 %v1935, %v2003
        %v2036 = vadd.f32 %v1936, %v2004
        %v2037 = vadd.f32 %v1937, %v2005
        %v2038 = vadd.f32 %v1938, %v2006
        %v2039 = vld [vmem:[%s4] sm:$0x1]
        %v2041 = vlaneseq
        %v2042 = vshrl.u32 %v2041, 7
        %v2043 = vsub.s32 0, %v2042
        %v2044 = vrot.slane %v2039, %v2043
        %v2046 = vadd.f32 %v2007, %v2044
        %v2047 = vadd.f32 %v2008, %v2044
        %v2048 = vadd.f32 %v2009, %v2044
        %v2049 = vadd.f32 %v2010, %v2044
        %v2050 = vadd.f32 %v2011, %v2044
        %v2051 = vadd.f32 %v2012, %v2044
        %v2052 = vadd.f32 %v2013, %v2044
        %v2053 = vadd.f32 %v2014, %v2044
        %v2054 = vadd.f32 %v2015, %v2044
        %v2055 = vadd.f32 %v2016, %v2044
        %v2056 = vadd.f32 %v2017, %v2044
        %v2057 = vadd.f32 %v2018, %v2044
        %v2058 = vadd.f32 %v2019, %v2044
        %v2059 = vadd.f32 %v2020, %v2044
        %v2060 = vadd.f32 %v2021, %v2044
        %v2061 = vadd.f32 %v2022, %v2044
        %v2062 = vadd.f32 %v2023, %v2044
        %v2063 = vadd.f32 %v2024, %v2044
        %v2064 = vadd.f32 %v2025, %v2044
        %v2065 = vadd.f32 %v2026, %v2044
        %v2066 = vadd.f32 %v2027, %v2044
        %v2067 = vadd.f32 %v2028, %v2044
        %v2068 = vadd.f32 %v2029, %v2044
        %v2069 = vadd.f32 %v2030, %v2044
        %v2070 = vadd.f32 %v2031, %v2044
        %v2071 = vadd.f32 %v2032, %v2044
        %v2072 = vadd.f32 %v2033, %v2044
        %v2073 = vadd.f32 %v2034, %v2044
        %v2074 = vadd.f32 %v2035, %v2044
        %v2075 = vadd.f32 %v2036, %v2044
        %v2076 = vadd.f32 %v2037, %v2044
        %v2077 = vadd.f32 %v2038, %v2044
        %v2078 = vmax.f32 %v2046, 0.0
        %v2079 = vmax.f32 %v2047, 0.0
        %v2080 = vmax.f32 %v2048, 0.0
        %v2081 = vmax.f32 %v2049, 0.0
        %v2082 = vmax.f32 %v2050, 0.0
        %v2083 = vmax.f32 %v2051, 0.0
        %v2084 = vmax.f32 %v2052, 0.0
        %v2085 = vmax.f32 %v2053, 0.0
        %v2086 = vmax.f32 %v2054, 0.0
        %v2087 = vmax.f32 %v2055, 0.0
        %v2088 = vmax.f32 %v2056, 0.0
        %v2089 = vmax.f32 %v2057, 0.0
        %v2090 = vmax.f32 %v2058, 0.0
        %v2091 = vmax.f32 %v2059, 0.0
        %v2092 = vmax.f32 %v2060, 0.0
        %v2093 = vmax.f32 %v2061, 0.0
        %v2094 = vmax.f32 %v2062, 0.0
        %v2095 = vmax.f32 %v2063, 0.0
        %v2096 = vmax.f32 %v2064, 0.0
        %v2097 = vmax.f32 %v2065, 0.0
        %v2098 = vmax.f32 %v2066, 0.0
        %v2099 = vmax.f32 %v2067, 0.0
        %v2100 = vmax.f32 %v2068, 0.0
        %v2101 = vmax.f32 %v2069, 0.0
        %v2102 = vmax.f32 %v2070, 0.0
        %v2103 = vmax.f32 %v2071, 0.0
        %v2104 = vmax.f32 %v2072, 0.0
        %v2105 = vmax.f32 %v2073, 0.0
        %v2106 = vmax.f32 %v2074, 0.0
        %v2107 = vmax.f32 %v2075, 0.0
        %v2108 = vmax.f32 %v2076, 0.0
        %v2109 = vmax.f32 %v2077, 0.0
        %v2110 = vmin.f32 %v2078, 6.0
        %v2111 = vmin.f32 %v2079, 6.0
        %v2112 = vmin.f32 %v2080, 6.0
        %v2113 = vmin.f32 %v2081, 6.0
        %v2114 = vmin.f32 %v2082, 6.0
        %v2115 = vmin.f32 %v2083, 6.0
        %v2116 = vmin.f32 %v2084, 6.0
        %v2117 = vmin.f32 %v2085, 6.0
        %v2118 = vmin.f32 %v2086, 6.0
        %v2119 = vmin.f32 %v2087, 6.0
        %v2120 = vmin.f32 %v2088, 6.0
        %v2121 = vmin.f32 %v2089, 6.0
        %v2122 = vmin.f32 %v2090, 6.0
        %v2123 = vmin.f32 %v2091, 6.0
        %v2124 = vmin.f32 %v2092, 6.0
        %v2125 = vmin.f32 %v2093, 6.0
        %v2126 = vmin.f32 %v2094, 6.0
        %v2127 = vmin.f32 %v2095, 6.0
        %v2128 = vmin.f32 %v2096, 6.0
        %v2129 = vmin.f32 %v2097, 6.0
        %v2130 = vmin.f32 %v2098, 6.0
        %v2131 = vmin.f32 %v2099, 6.0
        %v2132 = vmin.f32 %v2100, 6.0
        %v2133 = vmin.f32 %v2101, 6.0
        %v2134 = vmin.f32 %v2102, 6.0
        %v2135 = vmin.f32 %v2103, 6.0
        %v2136 = vmin.f32 %v2104, 6.0
        %v2137 = vmin.f32 %v2105, 6.0
        %v2138 = vmin.f32 %v2106, 6.0
        %v2139 = vmin.f32 %v2107, 6.0
        %v2140 = vmin.f32 %v2108, 6.0
        %v2141 = vmin.f32 %v2109, 6.0
        %v2142 = vld [vmem:[#allocation9] sm:$0xff]
        %v2143 = vld [vmem:[#allocation9 + $0x8] sm:$0xff]
        %v2144 = vld [vmem:[#allocation9 + $0x10] sm:$0xff]
        %v2145 = vld [vmem:[#allocation9 + $0x18] sm:$0xff]
        %v2146 = vld [vmem:[#allocation9 + $0x20] sm:$0xff]
        %v2147 = vld [vmem:[#allocation9 + $0x28] sm:$0xff]
        %v2148 = vld [vmem:[#allocation9 + $0x30] sm:$0xff]
        %v2149 = vld [vmem:[#allocation9 + $0x38] sm:$0xff]
        %v2150 = vld [vmem:[#allocation9 + $0x40] sm:$0xff]
        %v2151 = vld [vmem:[#allocation9 + $0x48] sm:$0xff]
        %v2152 = vld [vmem:[#allocation9 + $0x50] sm:$0xff]
        %v2153 = vld [vmem:[#allocation9 + $0x58] sm:$0xff]
        %v2154 = vld [vmem:[#allocation9 + $0x60] sm:$0xff]
        %v2155 = vld [vmem:[#allocation9 + $0x68] sm:$0xff]
        %v2156 = vld [vmem:[#allocation9 + $0x70] sm:$0xff]
        %v2157 = vld [vmem:[#allocation9 + $0x78] sm:$0xff]
        %v2158 = vld [vmem:[%s6] sm:$0x1]
        %v2160 = vlaneseq
        %v2161 = vshrl.u32 %v2160, 7
        %v2162 = vsub.s32 0, %v2161
        %v2163 = vrot.slane %v2158, %v2162
        %2165 = vmatprep.subr.mxu0 0.0
        %2166 = vmatpush1.msra.mxu0 %v2142
        %2167 = vmatprep.subr.mxu0 0.0
        %2168 = vmatpush1.msra.mxu0 %v2143
        %2169 = vmatprep.subr.mxu0 0.0
        %2170 = vmatpush1.msra.mxu0 %v2144
        %2171 = vmatprep.subr.mxu0 0.0
        %2172 = vmatpush1.msra.mxu0 %v2145
        %2173 = vmatprep.subr.mxu0 0.0
        %2174 = vmatpush1.msra.mxu0 %v2146
        %2175 = vmatprep.subr.mxu0 0.0
        %2176 = vmatpush1.msra.mxu0 %v2147
        %2177 = vmatprep.subr.mxu0 0.0
        %2178 = vmatpush1.msra.mxu0 %v2148
        %2179 = vmatprep.subr.mxu0 0.0
        %2180 = vmatpush1.msra.mxu0 %v2149
        %2181 = vmatprep.subr.mxu0 0.0
        %2182 = vmatpush1.msra.mxu0 %v2150
        %2183 = vmatprep.subr.mxu0 0.0
        %2184 = vmatpush1.msra.mxu0 %v2151
        %2185 = vmatprep.subr.mxu0 0.0
        %2186 = vmatpush1.msra.mxu0 %v2152
        %2187 = vmatprep.subr.mxu0 0.0
        %2188 = vmatpush1.msra.mxu0 %v2153
        %2189 = vmatprep.subr.mxu0 0.0
        %2190 = vmatpush1.msra.mxu0 %v2154
        %2191 = vmatprep.subr.mxu0 0.0
        %2192 = vmatpush1.msra.mxu0 %v2155
        %2193 = vmatprep.subr.mxu0 0.0
        %2194 = vmatpush1.msra.mxu0 %v2156
        %2195 = vmatprep.subr.mxu0 0.0
        %2196 = vmatpush1.msra.mxu0 %v2157
        %2197 = vmatprep.subr.mxu0 0.0
        %2198 = vmatpush1.msra.mxu0 0.0
        %2199 = vmatprep.subr.mxu0 0.0
        %2200 = vmatpush1.msra.mxu0 0.0
        %2201 = vmatprep.subr.mxu0 0.0
        %2202 = vmatpush1.msra.mxu0 0.0
        %2203 = vmatprep.subr.mxu0 0.0
        %2204 = vmatpush1.msra.mxu0 0.0
        %2205 = vmatprep.subr.mxu0 0.0
        %2206 = vmatpush1.msra.mxu0 0.0
        %2207 = vmatprep.subr.mxu0 0.0
        %2208 = vmatpush1.msra.mxu0 0.0
        %2209 = vmatprep.subr.mxu0 0.0
        %2210 = vmatpush1.msra.mxu0 0.0
        %2211 = vmatprep.subr.mxu0 0.0
        %2212 = vmatpush1.msra.mxu0 0.0
        %2213 = vmatprep.subr.mxu0 0.0
        %2214 = vmatpush1.msra.mxu0 0.0
        %2215 = vmatprep.subr.mxu0 0.0
        %2216 = vmatpush1.msra.mxu0 0.0
        %2217 = vmatprep.subr.mxu0 0.0
        %2218 = vmatpush1.msra.mxu0 0.0
        %2219 = vmatprep.subr.mxu0 0.0
        %2220 = vmatpush1.msra.mxu0 0.0
        %2221 = vmatprep.subr.mxu0 0.0
        %2222 = vmatpush1.msra.mxu0 0.0
        %2223 = vmatprep.subr.mxu0 0.0
        %2224 = vmatpush1.msra.mxu0 0.0
        %2225 = vmatprep.subr.mxu0 0.0
        %2226 = vmatpush1.msra.mxu0 0.0
        %2227 = vmatprep.subr.mxu0 0.0
        %2228 = vmatpush1.msra.mxu0 0.0
        %2229 = vmatprep.mubr.f32.mxu0 0.0
        %2230 = vmatmul.mubr.f32.gmra.mrb[0].mxu0 %v2110
        %v2231 = vpop.f32.mrb[0].mxu0
        %v2232 = vadd.f32 %v2163, %v2231
        %v2233 = vpop.f32.mrb[0].mxu0
        %2234 = vmatprep.mubr.f32.mxu0 0.0
        %2235 = vmatmul.mubr.f32.gmra.mrb[0].mxu0 %v2111
        %v2236 = vpop.f32.mrb[0].mxu0
        %v2237 = vadd.f32 %v2163, %v2236
        %v2238 = vpop.f32.mrb[0].mxu0
        %2239 = vmatprep.mubr.f32.mxu0 0.0
        %2240 = vmatmul.mubr.f32.gmra.mrb[0].mxu0 %v2112
        %v2241 = vpop.f32.mrb[0].mxu0
        %v2242 = vadd.f32 %v2163, %v2241
        %v2243 = vpop.f32.mrb[0].mxu0
        %2244 = vmatprep.mubr.f32.mxu0 0.0
        %2245 = vmatmul.mubr.f32.gmra.mrb[0].mxu0 %v2113
        %v2246 = vpop.f32.mrb[0].mxu0
        %v2247 = vadd.f32 %v2163, %v2246
        %v2248 = vpop.f32.mrb[0].mxu0
        %2249 = vmatprep.mubr.f32.mxu0 0.0
        %2250 = vmatmul.mubr.f32.gmra.mrb[0].mxu0 %v2114
        %v2251 = vpop.f32.mrb[0].mxu0
        %v2252 = vadd.f32 %v2163, %v2251
        %v2253 = vpop.f32.mrb[0].mxu0
        %2254 = vmatprep.mubr.f32.mxu0 0.0
        %2255 = vmatmul.mubr.f32.gmra.mrb[0].mxu0 %v2115
        %v2256 = vpop.f32.mrb[0].mxu0
        %v2257 = vadd.f32 %v2163, %v2256
        %v2258 = vpop.f32.mrb[0].mxu0
        %2259 = vmatprep.mubr.f32.mxu0 0.0
        %2260 = vmatmul.mubr.f32.gmra.mrb[0].mxu0 %v2116
        %v2261 = vpop.f32.mrb[0].mxu0
        %v2262 = vadd.f32 %v2163, %v2261
        %v2263 = vpop.f32.mrb[0].mxu0
        %2264 = vmatprep.mubr.f32.mxu0 0.0
        %2265 = vmatmul.mubr.f32.gmra.mrb[0].mxu0 %v2117
        %v2266 = vpop.f32.mrb[0].mxu0
        %v2267 = vadd.f32 %v2163, %v2266
        %v2268 = vpop.f32.mrb[0].mxu0
        %2269 = vmatprep.mubr.f32.mxu0 0.0
        %2270 = vmatmul.mubr.f32.gmra.mrb[0].mxu0 %v2118
        %v2271 = vpop.f32.mrb[0].mxu0
        %v2272 = vadd.f32 %v2163, %v2271
        %v2273 = vpop.f32.mrb[0].mxu0
        %2274 = vmatprep.mubr.f32.mxu0 0.0
        %2275 = vmatmul.mubr.f32.gmra.mrb[0].mxu0 %v2119
        %v2276 = vpop.f32.mrb[0].mxu0
        %v2277 = vadd.f32 %v2163, %v2276
        %v2278 = vpop.f32.mrb[0].mxu0
        %2279 = vmatprep.mubr.f32.mxu0 0.0
        %2280 = vmatmul.mubr.f32.gmra.mrb[0].mxu0 %v2120
        %v2281 = vpop.f32.mrb[0].mxu0
        %v2282 = vadd.f32 %v2163, %v2281
        %v2283 = vpop.f32.mrb[0].mxu0
        %2284 = vmatprep.mubr.f32.mxu0 0.0
        %2285 = vmatmul.mubr.f32.gmra.mrb[0].mxu0 %v2121
        %v2286 = vpop.f32.mrb[0].mxu0
        %v2287 = vadd.f32 %v2163, %v2286
        %v2288 = vpop.f32.mrb[0].mxu0
        %2289 = vmatprep.mubr.f32.mxu0 0.0
        %2290 = vmatmul.mubr.f32.gmra.mrb[0].mxu0 %v2122
        %v2291 = vpop.f32.mrb[0].mxu0
        %v2292 = vadd.f32 %v2163, %v2291
        %v2293 = vpop.f32.mrb[0].mxu0
        %2294 = vmatprep.mubr.f32.mxu0 0.0
        %2295 = vmatmul.mubr.f32.gmra.mrb[0].mxu0 %v2123
        %v2296 = vpop.f32.mrb[0].mxu0
        %v2297 = vadd.f32 %v2163, %v2296
        %v2298 = vpop.f32.mrb[0].mxu0
        %2299 = vmatprep.mubr.f32.mxu0 0.0
        %2300 = vmatmul.mubr.f32.gmra.mrb[0].mxu0 %v2124
        %v2301 = vpop.f32.mrb[0].mxu0
        %v2302 = vadd.f32 %v2163, %v2301
        %v2303 = vpop.f32.mrb[0].mxu0
        %2304 = vmatprep.mubr.f32.mxu0 0.0
        %2305 = vmatmul.mubr.f32.gmra.mrb[0].mxu0 %v2125
        %v2306 = vpop.f32.mrb[0].mxu0
        %v2307 = vadd.f32 %v2163, %v2306
        %v2308 = vpop.f32.mrb[0].mxu0
        %2309 = vmatprep.mubr.f32.mxu0 0.0
        %2310 = vmatmul.mubr.f32.gmra.mrb[0].mxu0 %v2126
        %v2311 = vpop.f32.mrb[0].mxu0
        %v2312 = vadd.f32 %v2163, %v2311
        %v2313 = vpop.f32.mrb[0].mxu0
        %2314 = vmatprep.mubr.f32.mxu0 0.0
        %2315 = vmatmul.mubr.f32.gmra.mrb[0].mxu0 %v2127
        %v2316 = vpop.f32.mrb[0].mxu0
        %v2317 = vadd.f32 %v2163, %v2316
        %v2318 = vpop.f32.mrb[0].mxu0
        %2319 = vmatprep.mubr.f32.mxu0 0.0
        %2320 = vmatmul.mubr.f32.gmra.mrb[0].mxu0 %v2128
        %v2321 = vpop.f32.mrb[0].mxu0
        %v2322 = vadd.f32 %v2163, %v2321
        %v2323 = vpop.f32.mrb[0].mxu0
        %2324 = vmatprep.mubr.f32.mxu0 0.0
        %2325 = vmatmul.mubr.f32.gmra.mrb[0].mxu0 %v2129
        %v2326 = vpop.f32.mrb[0].mxu0
        %v2327 = vadd.f32 %v2163, %v2326
        %v2328 = vpop.f32.mrb[0].mxu0
        %2329 = vmatprep.mubr.f32.mxu0 0.0
        %2330 = vmatmul.mubr.f32.gmra.mrb[0].mxu0 %v2130
        %v2331 = vpop.f32.mrb[0].mxu0
        %v2332 = vadd.f32 %v2163, %v2331
        %v2333 = vpop.f32.mrb[0].mxu0
        %2334 = vmatprep.mubr.f32.mxu0 0.0
        %2335 = vmatmul.mubr.f32.gmra.mrb[0].mxu0 %v2131
        %v2336 = vpop.f32.mrb[0].mxu0
        %v2337 = vadd.f32 %v2163, %v2336
        %v2338 = vpop.f32.mrb[0].mxu0
        %2339 = vmatprep.mubr.f32.mxu0 0.0
        %2340 = vmatmul.mubr.f32.gmra.mrb[0].mxu0 %v2132
        %v2341 = vpop.f32.mrb[0].mxu0
        %v2342 = vadd.f32 %v2163, %v2341
        %v2343 = vpop.f32.mrb[0].mxu0
        %2344 = vmatprep.mubr.f32.mxu0 0.0
        %2345 = vmatmul.mubr.f32.gmra.mrb[0].mxu0 %v2133
        %v2346 = vpop.f32.mrb[0].mxu0
        %v2347 = vadd.f32 %v2163, %v2346
        %v2348 = vpop.f32.mrb[0].mxu0
        %2349 = vmatprep.mubr.f32.mxu0 0.0
        %2350 = vmatmul.mubr.f32.gmra.mrb[0].mxu0 %v2134
        %v2351 = vpop.f32.mrb[0].mxu0
        %v2352 = vadd.f32 %v2163, %v2351
        %v2353 = vpop.f32.mrb[0].mxu0
        %2354 = vmatprep.mubr.f32.mxu0 0.0
        %2355 = vmatmul.mubr.f32.gmra.mrb[0].mxu0 %v2135
        %v2356 = vpop.f32.mrb[0].mxu0
        %v2357 = vadd.f32 %v2163, %v2356
        %v2358 = vpop.f32.mrb[0].mxu0
        %2359 = vmatprep.mubr.f32.mxu0 0.0
        %2360 = vmatmul.mubr.f32.gmra.mrb[0].mxu0 %v2136
        %v2361 = vpop.f32.mrb[0].mxu0
        %v2362 = vadd.f32 %v2163, %v2361
        %v2363 = vpop.f32.mrb[0].mxu0
        %2364 = vmatprep.mubr.f32.mxu0 0.0
        %2365 = vmatmul.mubr.f32.gmra.mrb[0].mxu0 %v2137
        %v2366 = vpop.f32.mrb[0].mxu0
        %v2367 = vadd.f32 %v2163, %v2366
        %v2368 = vpop.f32.mrb[0].mxu0
        %2369 = vmatprep.mubr.f32.mxu0 0.0
        %2370 = vmatmul.mubr.f32.gmra.mrb[0].mxu0 %v2138
        %v2371 = vpop.f32.mrb[0].mxu0
        %v2372 = vadd.f32 %v2163, %v2371
        %v2373 = vpop.f32.mrb[0].mxu0
        %2374 = vmatprep.mubr.f32.mxu0 0.0
        %2375 = vmatmul.mubr.f32.gmra.mrb[0].mxu0 %v2139
        %v2376 = vpop.f32.mrb[0].mxu0
        %v2377 = vadd.f32 %v2163, %v2376
        %v2378 = vpop.f32.mrb[0].mxu0
        %2379 = vmatprep.mubr.f32.mxu0 0.0
        %2380 = vmatmul.mubr.f32.gmra.mrb[0].mxu0 %v2140
        %v2381 = vpop.f32.mrb[0].mxu0
        %v2382 = vadd.f32 %v2163, %v2381
        %v2383 = vpop.f32.mrb[0].mxu0
        %2384 = vmatprep.mubr.f32.mxu0 0.0
        %2385 = vmatmul.mubr.f32.gmra.mrb[0].mxu0 %v2141
        %v2386 = vpop.f32.mrb[0].mxu0
        %v2387 = vadd.f32 %v2163, %v2386
        %v2388 = vpop.f32.mrb[0].mxu0
        %2389 = vdwg.mxu0
        %v2390 = vld [vmem:[%s427] sm:$0xff]
        %v2391 = vld [vmem:[%s427 + $0x8] sm:$0xff]
        %v2392 = vld [vmem:[%s427 + $0x10] sm:$0xff]
        %v2393 = vld [vmem:[%s427 + $0x18] sm:$0xff]
        %v2394 = vld [vmem:[%s427 + $0x20] sm:$0xff]
        %v2395 = vld [vmem:[%s427 + $0x28] sm:$0xff]
        %v2396 = vld [vmem:[%s427 + $0x30] sm:$0xff]
        %v2397 = vld [vmem:[%s427 + $0x38] sm:$0xff]
        %v2398 = vld [vmem:[%s427 + $0x40] sm:$0xff]
        %v2399 = vld [vmem:[%s427 + $0x48] sm:$0xff]
        %v2400 = vld [vmem:[%s427 + $0x50] sm:$0xff]
        %v2401 = vld [vmem:[%s427 + $0x58] sm:$0xff]
        %v2402 = vld [vmem:[%s427 + $0x60] sm:$0xff]
        %v2403 = vld [vmem:[%s427 + $0x68] sm:$0xff]
        %v2404 = vld [vmem:[%s427 + $0x70] sm:$0xff]
        %v2405 = vld [vmem:[%s427 + $0x78] sm:$0xff]
        %v2406 = vld [vmem:[%s427 + $0x80] sm:$0xff]
        %v2407 = vld [vmem:[%s427 + $0x88] sm:$0xff]
        %v2408 = vld [vmem:[%s427 + $0x90] sm:$0xff]
        %v2409 = vld [vmem:[%s427 + $0x98] sm:$0xff]
        %v2410 = vld [vmem:[%s427 + $0xa0] sm:$0xff]
        %v2411 = vld [vmem:[%s427 + $0xa8] sm:$0xff]
        %v2412 = vld [vmem:[%s427 + $0xb0] sm:$0xff]
        %v2413 = vld [vmem:[%s427 + $0xb8] sm:$0xff]
        %v2414 = vld [vmem:[%s427 + $0xc0] sm:$0xff]
        %v2415 = vld [vmem:[%s427 + $0xc8] sm:$0xff]
        %v2416 = vld [vmem:[%s427 + $0xd0] sm:$0xff]
        %v2417 = vld [vmem:[%s427 + $0xd8] sm:$0xff]
        %v2418 = vld [vmem:[%s427 + $0xe0] sm:$0xff]
        %v2419 = vld [vmem:[%s427 + $0xe8] sm:$0xff]
        %v2420 = vld [vmem:[%s427 + $0xf0] sm:$0xff]
        %v2421 = vld [vmem:[%s427 + $0xf8] sm:$0xff]
        %v2422 = vld [vmem:[#allocation12] sm:$0xff]
        %v2423 = vld [vmem:[#allocation12 + $0x8] sm:$0xff]
        %v2424 = vld [vmem:[#allocation12 + $0x10] sm:$0xff]
        %v2425 = vld [vmem:[#allocation12 + $0x18] sm:$0xff]
        %v2426 = vld [vmem:[#allocation12 + $0x20] sm:$0xff]
        %v2427 = vld [vmem:[#allocation12 + $0x28] sm:$0xff]
        %v2428 = vld [vmem:[#allocation12 + $0x30] sm:$0xff]
        %v2429 = vld [vmem:[#allocation12 + $0x38] sm:$0xff]
        %v2430 = vld [vmem:[#allocation12 + $0x40] sm:$0xff]
        %v2431 = vld [vmem:[#allocation12 + $0x48] sm:$0xff]
        %v2432 = vld [vmem:[#allocation12 + $0x50] sm:$0xff]
        %v2433 = vld [vmem:[#allocation12 + $0x58] sm:$0xff]
        %v2434 = vld [vmem:[#allocation12 + $0x60] sm:$0xff]
        %v2435 = vld [vmem:[#allocation12 + $0x68] sm:$0xff]
        %v2436 = vld [vmem:[#allocation12 + $0x70] sm:$0xff]
        %v2437 = vld [vmem:[#allocation12 + $0x78] sm:$0xff]
        %v2438 = vld [vmem:[%s9] sm:$0x1]
        %v2440 = vlaneseq
        %v2441 = vshrl.u32 %v2440, 7
        %v2442 = vsub.s32 0, %v2441
        %v2443 = vrot.slane %v2438, %v2442
        %2445 = vmatprep.subr.mxu0 0.0
        %2446 = vmatpush1.msra.mxu0 %v2422
        %2447 = vmatprep.subr.mxu0 0.0
        %2448 = vmatpush1.msra.mxu0 %v2423
        %2449 = vmatprep.subr.mxu0 0.0
        %2450 = vmatpush1.msra.mxu0 %v2424
        %2451 = vmatprep.subr.mxu0 0.0
        %2452 = vmatpush1.msra.mxu0 %v2425
        %2453 = vmatprep.subr.mxu0 0.0
        %2454 = vmatpush1.msra.mxu0 %v2426
        %2455 = vmatprep.subr.mxu0 0.0
        %2456 = vmatpush1.msra.mxu0 %v2427
        %2457 = vmatprep.subr.mxu0 0.0
        %2458 = vmatpush1.msra.mxu0 %v2428
        %2459 = vmatprep.subr.mxu0 0.0
        %2460 = vmatpush1.msra.mxu0 %v2429
        %2461 = vmatprep.subr.mxu0 0.0
        %2462 = vmatpush1.msra.mxu0 %v2430
        %2463 = vmatprep.subr.mxu0 0.0
        %2464 = vmatpush1.msra.mxu0 %v2431
        %2465 = vmatprep.subr.mxu0 0.0
        %2466 = vmatpush1.msra.mxu0 %v2432
        %2467 = vmatprep.subr.mxu0 0.0
        %2468 = vmatpush1.msra.mxu0 %v2433
        %2469 = vmatprep.subr.mxu0 0.0
        %2470 = vmatpush1.msra.mxu0 %v2434
        %2471 = vmatprep.subr.mxu0 0.0
        %2472 = vmatpush1.msra.mxu0 %v2435
        %2473 = vmatprep.subr.mxu0 0.0
        %2474 = vmatpush1.msra.mxu0 %v2436
        %2475 = vmatprep.subr.mxu0 0.0
        %2476 = vmatpush1.msra.mxu0 %v2437
        %2477 = vmatprep.subr.mxu0 0.0
        %2478 = vmatpush1.msra.mxu0 0.0
        %2479 = vmatprep.subr.mxu0 0.0
        %2480 = vmatpush1.msra.mxu0 0.0
        %2481 = vmatprep.subr.mxu0 0.0
        %2482 = vmatpush1.msra.mxu0 0.0
        %2483 = vmatprep.subr.mxu0 0.0
        %2484 = vmatpush1.msra.mxu0 0.0
        %2485 = vmatprep.subr.mxu0 0.0
        %2486 = vmatpush1.msra.mxu0 0.0
        %2487 = vmatprep.subr.mxu0 0.0
        %2488 = vmatpush1.msra.mxu0 0.0
        %2489 = vmatprep.subr.mxu0 0.0
        %2490 = vmatpush1.msra.mxu0 0.0
        %2491 = vmatprep.subr.mxu0 0.0
        %2492 = vmatpush1.msra.mxu0 0.0
        %2493 = vmatprep.subr.mxu0 0.0
        %2494 = vmatpush1.msra.mxu0 0.0
        %2495 = vmatprep.subr.mxu0 0.0
        %2496 = vmatpush1.msra.mxu0 0.0
        %2497 = vmatprep.subr.mxu0 0.0
        %2498 = vmatpush1.msra.mxu0 0.0
        %2499 = vmatprep.subr.mxu0 0.0
        %2500 = vmatpush1.msra.mxu0 0.0
        %2501 = vmatprep.subr.mxu0 0.0
        %2502 = vmatpush1.msra.mxu0 0.0
        %2503 = vmatprep.subr.mxu0 0.0
        %2504 = vmatpush1.msra.mxu0 0.0
        %2505 = vmatprep.subr.mxu0 0.0
        %2506 = vmatpush1.msra.mxu0 0.0
        %2507 = vmatprep.subr.mxu0 0.0
        %2508 = vmatpush1.msra.mxu0 0.0
        %2509 = vmatprep.mubr.f32.mxu0 0.0
        %2510 = vmatmul.mubr.f32.gmra.mrb[0].mxu0 %v2390
        %v2511 = vpop.f32.mrb[0].mxu0
        %v2512 = vadd.f32 %v2443, %v2511
        %v2513 = vpop.f32.mrb[0].mxu0
        %2514 = vmatprep.mubr.f32.mxu0 0.0
        %2515 = vmatmul.mubr.f32.gmra.mrb[0].mxu0 %v2391
        %v2516 = vpop.f32.mrb[0].mxu0
        %v2517 = vadd.f32 %v2443, %v2516
        %v2518 = vpop.f32.mrb[0].mxu0
        %2519 = vmatprep.mubr.f32.mxu0 0.0
        %2520 = vmatmul.mubr.f32.gmra.mrb[0].mxu0 %v2392
        %v2521 = vpop.f32.mrb[0].mxu0
        %v2522 = vadd.f32 %v2443, %v2521
        %v2523 = vpop.f32.mrb[0].mxu0
        %2524 = vmatprep.mubr.f32.mxu0 0.0
        %2525 = vmatmul.mubr.f32.gmra.mrb[0].mxu0 %v2393
        %v2526 = vpop.f32.mrb[0].mxu0
        %v2527 = vadd.f32 %v2443, %v2526
        %v2528 = vpop.f32.mrb[0].mxu0
        %2529 = vmatprep.mubr.f32.mxu0 0.0
        %2530 = vmatmul.mubr.f32.gmra.mrb[0].mxu0 %v2394
        %v2531 = vpop.f32.mrb[0].mxu0
        %v2532 = vadd.f32 %v2443, %v2531
        %v2533 = vpop.f32.mrb[0].mxu0
        %2534 = vmatprep.mubr.f32.mxu0 0.0
        %2535 = vmatmul.mubr.f32.gmra.mrb[0].mxu0 %v2395
        %v2536 = vpop.f32.mrb[0].mxu0
        %v2537 = vadd.f32 %v2443, %v2536
        %v2538 = vpop.f32.mrb[0].mxu0
        %2539 = vmatprep.mubr.f32.mxu0 0.0
        %2540 = vmatmul.mubr.f32.gmra.mrb[0].mxu0 %v2396
        %v2541 = vpop.f32.mrb[0].mxu0
        %v2542 = vadd.f32 %v2443, %v2541
        %v2543 = vpop.f32.mrb[0].mxu0
        %2544 = vmatprep.mubr.f32.mxu0 0.0
        %2545 = vmatmul.mubr.f32.gmra.mrb[0].mxu0 %v2397
        %v2546 = vpop.f32.mrb[0].mxu0
        %v2547 = vadd.f32 %v2443, %v2546
        %v2548 = vpop.f32.mrb[0].mxu0
        %2549 = vmatprep.mubr.f32.mxu0 0.0
        %2550 = vmatmul.mubr.f32.gmra.mrb[0].mxu0 %v2398
        %v2551 = vpop.f32.mrb[0].mxu0
        %v2552 = vadd.f32 %v2443, %v2551
        %v2553 = vpop.f32.mrb[0].mxu0
        %2554 = vmatprep.mubr.f32.mxu0 0.0
        %2555 = vmatmul.mubr.f32.gmra.mrb[0].mxu0 %v2399
        %v2556 = vpop.f32.mrb[0].mxu0
        %v2557 = vadd.f32 %v2443, %v2556
        %v2558 = vpop.f32.mrb[0].mxu0
        %2559 = vmatprep.mubr.f32.mxu0 0.0
        %2560 = vmatmul.mubr.f32.gmra.mrb[0].mxu0 %v2400
        %v2561 = vpop.f32.mrb[0].mxu0
        %v2562 = vadd.f32 %v2443, %v2561
        %v2563 = vpop.f32.mrb[0].mxu0
        %2564 = vmatprep.mubr.f32.mxu0 0.0
        %2565 = vmatmul.mubr.f32.gmra.mrb[0].mxu0 %v2401
        %v2566 = vpop.f32.mrb[0].mxu0
        %v2567 = vadd.f32 %v2443, %v2566
        %v2568 = vpop.f32.mrb[0].mxu0
        %2569 = vmatprep.mubr.f32.mxu0 0.0
        %2570 = vmatmul.mubr.f32.gmra.mrb[0].mxu0 %v2402
        %v2571 = vpop.f32.mrb[0].mxu0
        %v2572 = vadd.f32 %v2443, %v2571
        %v2573 = vpop.f32.mrb[0].mxu0
        %2574 = vmatprep.mubr.f32.mxu0 0.0
        %2575 = vmatmul.mubr.f32.gmra.mrb[0].mxu0 %v2403
        %v2576 = vpop.f32.mrb[0].mxu0
        %v2577 = vadd.f32 %v2443, %v2576
        %v2578 = vpop.f32.mrb[0].mxu0
        %2579 = vmatprep.mubr.f32.mxu0 0.0
        %2580 = vmatmul.mubr.f32.gmra.mrb[0].mxu0 %v2404
        %v2581 = vpop.f32.mrb[0].mxu0
        %v2582 = vadd.f32 %v2443, %v2581
        %v2583 = vpop.f32.mrb[0].mxu0
        %2584 = vmatprep.mubr.f32.mxu0 0.0
        %2585 = vmatmul.mubr.f32.gmra.mrb[0].mxu0 %v2405
        %v2586 = vpop.f32.mrb[0].mxu0
        %v2587 = vadd.f32 %v2443, %v2586
        %v2588 = vpop.f32.mrb[0].mxu0
        %2589 = vmatprep.mubr.f32.mxu0 0.0
        %2590 = vmatmul.mubr.f32.gmra.mrb[0].mxu0 %v2406
        %v2591 = vpop.f32.mrb[0].mxu0
        %v2592 = vadd.f32 %v2443, %v2591
        %v2593 = vpop.f32.mrb[0].mxu0
        %2594 = vmatprep.mubr.f32.mxu0 0.0
        %2595 = vmatmul.mubr.f32.gmra.mrb[0].mxu0 %v2407
        %v2596 = vpop.f32.mrb[0].mxu0
        %v2597 = vadd.f32 %v2443, %v2596
        %v2598 = vpop.f32.mrb[0].mxu0
        %2599 = vmatprep.mubr.f32.mxu0 0.0
        %2600 = vmatmul.mubr.f32.gmra.mrb[0].mxu0 %v2408
        %v2601 = vpop.f32.mrb[0].mxu0
        %v2602 = vadd.f32 %v2443, %v2601
        %v2603 = vpop.f32.mrb[0].mxu0
        %2604 = vmatprep.mubr.f32.mxu0 0.0
        %2605 = vmatmul.mubr.f32.gmra.mrb[0].mxu0 %v2409
        %v2606 = vpop.f32.mrb[0].mxu0
        %v2607 = vadd.f32 %v2443, %v2606
        %v2608 = vpop.f32.mrb[0].mxu0
        %2609 = vmatprep.mubr.f32.mxu0 0.0
        %2610 = vmatmul.mubr.f32.gmra.mrb[0].mxu0 %v2410
        %v2611 = vpop.f32.mrb[0].mxu0
        %v2612 = vadd.f32 %v2443, %v2611
        %v2613 = vpop.f32.mrb[0].mxu0
        %2614 = vmatprep.mubr.f32.mxu0 0.0
        %2615 = vmatmul.mubr.f32.gmra.mrb[0].mxu0 %v2411
        %v2616 = vpop.f32.mrb[0].mxu0
        %v2617 = vadd.f32 %v2443, %v2616
        %v2618 = vpop.f32.mrb[0].mxu0
        %2619 = vmatprep.mubr.f32.mxu0 0.0
        %2620 = vmatmul.mubr.f32.gmra.mrb[0].mxu0 %v2412
        %v2621 = vpop.f32.mrb[0].mxu0
        %v2622 = vadd.f32 %v2443, %v2621
        %v2623 = vpop.f32.mrb[0].mxu0
        %2624 = vmatprep.mubr.f32.mxu0 0.0
        %2625 = vmatmul.mubr.f32.gmra.mrb[0].mxu0 %v2413
        %v2626 = vpop.f32.mrb[0].mxu0
        %v2627 = vadd.f32 %v2443, %v2626
        %v2628 = vpop.f32.mrb[0].mxu0
        %2629 = vmatprep.mubr.f32.mxu0 0.0
        %2630 = vmatmul.mubr.f32.gmra.mrb[0].mxu0 %v2414
        %v2631 = vpop.f32.mrb[0].mxu0
        %v2632 = vadd.f32 %v2443, %v2631
        %v2633 = vpop.f32.mrb[0].mxu0
        %2634 = vmatprep.mubr.f32.mxu0 0.0
        %2635 = vmatmul.mubr.f32.gmra.mrb[0].mxu0 %v2415
        %v2636 = vpop.f32.mrb[0].mxu0
        %v2637 = vadd.f32 %v2443, %v2636
        %v2638 = vpop.f32.mrb[0].mxu0
        %2639 = vmatprep.mubr.f32.mxu0 0.0
        %2640 = vmatmul.mubr.f32.gmra.mrb[0].mxu0 %v2416
        %v2641 = vpop.f32.mrb[0].mxu0
        %v2642 = vadd.f32 %v2443, %v2641
        %v2643 = vpop.f32.mrb[0].mxu0
        %2644 = vmatprep.mubr.f32.mxu0 0.0
        %2645 = vmatmul.mubr.f32.gmra.mrb[0].mxu0 %v2417
        %v2646 = vpop.f32.mrb[0].mxu0
        %v2647 = vadd.f32 %v2443, %v2646
        %v2648 = vpop.f32.mrb[0].mxu0
        %2649 = vmatprep.mubr.f32.mxu0 0.0
        %2650 = vmatmul.mubr.f32.gmra.mrb[0].mxu0 %v2418
        %v2651 = vpop.f32.mrb[0].mxu0
        %v2652 = vadd.f32 %v2443, %v2651
        %v2653 = vpop.f32.mrb[0].mxu0
        %2654 = vmatprep.mubr.f32.mxu0 0.0
        %2655 = vmatmul.mubr.f32.gmra.mrb[0].mxu0 %v2419
        %v2656 = vpop.f32.mrb[0].mxu0
        %v2657 = vadd.f32 %v2443, %v2656
        %v2658 = vpop.f32.mrb[0].mxu0
        %2659 = vmatprep.mubr.f32.mxu0 0.0
        %2660 = vmatmul.mubr.f32.gmra.mrb[0].mxu0 %v2420
        %v2661 = vpop.f32.mrb[0].mxu0
        %v2662 = vadd.f32 %v2443, %v2661
        %v2663 = vpop.f32.mrb[0].mxu0
        %2664 = vmatprep.mubr.f32.mxu0 0.0
        %2665 = vmatmul.mubr.f32.gmra.mrb[0].mxu0 %v2421
        %v2666 = vpop.f32.mrb[0].mxu0
        %v2667 = vadd.f32 %v2443, %v2666
        %v2668 = vpop.f32.mrb[0].mxu0
        %2669 = vdwg.mxu0
        %v2670 = vadd.f32 %v2232, %v2512
        %v2671 = vadd.f32 %v2237, %v2517
        %v2672 = vadd.f32 %v2242, %v2522
        %v2673 = vadd.f32 %v2247, %v2527
        %v2674 = vadd.f32 %v2252, %v2532
        %v2675 = vadd.f32 %v2257, %v2537
        %v2676 = vadd.f32 %v2262, %v2542
        %v2677 = vadd.f32 %v2267, %v2547
        %v2678 = vadd.f32 %v2272, %v2552
        %v2679 = vadd.f32 %v2277, %v2557
        %v2680 = vadd.f32 %v2282, %v2562
        %v2681 = vadd.f32 %v2287, %v2567
        %v2682 = vadd.f32 %v2292, %v2572
        %v2683 = vadd.f32 %v2297, %v2577
        %v2684 = vadd.f32 %v2302, %v2582
        %v2685 = vadd.f32 %v2307, %v2587
        %v2686 = vadd.f32 %v2312, %v2592
        %v2687 = vadd.f32 %v2317, %v2597
        %v2688 = vadd.f32 %v2322, %v2602
        %v2689 = vadd.f32 %v2327, %v2607
        %v2690 = vadd.f32 %v2332, %v2612
        %v2691 = vadd.f32 %v2337, %v2617
        %v2692 = vadd.f32 %v2342, %v2622
        %v2693 = vadd.f32 %v2347, %v2627
        %v2694 = vadd.f32 %v2352, %v2632
        %v2695 = vadd.f32 %v2357, %v2637
        %v2696 = vadd.f32 %v2362, %v2642
        %v2697 = vadd.f32 %v2367, %v2647
        %v2698 = vadd.f32 %v2372, %v2652
        %v2699 = vadd.f32 %v2377, %v2657
        %v2700 = vadd.f32 %v2382, %v2662
        %v2701 = vadd.f32 %v2387, %v2667
        %2702 = vst [vmem:[%s472] sm:$0xff] %v2670
        %2703 = vst [vmem:[%s472 + $0x8] sm:$0xff] %v2671
        %2704 = vst [vmem:[%s472 + $0x10] sm:$0xff] %v2672
        %2705 = vst [vmem:[%s472 + $0x18] sm:$0xff] %v2673
        %2706 = vst [vmem:[%s472 + $0x20] sm:$0xff] %v2674
        %2707 = vst [vmem:[%s472 + $0x28] sm:$0xff] %v2675
        %2708 = vst [vmem:[%s472 + $0x30] sm:$0xff] %v2676
        %2709 = vst [vmem:[%s472 + $0x38] sm:$0xff] %v2677
        %2710 = vst [vmem:[%s472 + $0x40] sm:$0xff] %v2678
        %2711 = vst [vmem:[%s472 + $0x48] sm:$0xff] %v2679
        %2712 = vst [vmem:[%s472 + $0x50] sm:$0xff] %v2680
        %2713 = vst [vmem:[%s472 + $0x58] sm:$0xff] %v2681
        %2714 = vst [vmem:[%s472 + $0x60] sm:$0xff] %v2682
        %2715 = vst [vmem:[%s472 + $0x68] sm:$0xff] %v2683
        %2716 = vst [vmem:[%s472 + $0x70] sm:$0xff] %v2684
        %2717 = vst [vmem:[%s472 + $0x78] sm:$0xff] %v2685
        %2718 = vst [vmem:[%s472 + $0x80] sm:$0xff] %v2686
        %2719 = vst [vmem:[%s472 + $0x88] sm:$0xff] %v2687
        %2720 = vst [vmem:[%s472 + $0x90] sm:$0xff] %v2688
        %2721 = vst [vmem:[%s472 + $0x98] sm:$0xff] %v2689
        %2722 = vst [vmem:[%s472 + $0xa0] sm:$0xff] %v2690
        %2723 = vst [vmem:[%s472 + $0xa8] sm:$0xff] %v2691
        %2724 = vst [vmem:[%s472 + $0xb0] sm:$0xff] %v2692
        %2725 = vst [vmem:[%s472 + $0xb8] sm:$0xff] %v2693
        %2726 = vst [vmem:[%s472 + $0xc0] sm:$0xff] %v2694
        %2727 = vst [vmem:[%s472 + $0xc8] sm:$0xff] %v2695
        %2728 = vst [vmem:[%s472 + $0xd0] sm:$0xff] %v2696
        %2729 = vst [vmem:[%s472 + $0xd8] sm:$0xff] %v2697
        %2730 = vst [vmem:[%s472 + $0xe0] sm:$0xff] %v2698
        %2731 = vst [vmem:[%s472 + $0xe8] sm:$0xff] %v2699
        %2732 = vst [vmem:[%s472 + $0xf0] sm:$0xff] %v2700
        %2733 = vst [vmem:[%s472 + $0xf8] sm:$0xff] %v2701
        %s2734 = sand.u32 %s257, 1
        %s2735 = scalar_lea.sflag [#allocation5], %s2734
        %s2736 = sand.u32 %s257, 1
        %s2737 = smul.addr %s2736, 256
        %s2738 = scalar_lea.vmem [#allocation13], %s2737
        // Predicated region
        $region85: #{tpu_custom_call.1} parent=59 // pred_check
          %p2739 = pneg %p267
        $region86: #{tpu_custom_call.1} parent=59 // pred_check_branch
          %2741 = sbr.rel (%p2739) target = $region88
        $region87: #{tpu_custom_call.1} parent=59 // pred_region
          %s2743 = ssub.s32 4096, 4096
          %2744 = vsyncadd %s2735, %s2743
          %s2745 = smul.addr %s29, 32
          %s2746 = smul.addr %s2745, 128
          %s2747 = scalar_lea.hbm %s10, %s2746
          %s2748 = sshll.u32 %s2738, 4
          %s2749 = int_to_ptr.vmem [resolvable:$true] %s2748
          %2754 = dma.vmem_to_hbm [thread:$0]  %s2749, 4096, %s2747, %s2735, 128, 128, 8
        $region88: #{tpu_custom_call.1} parent=59 // pred_fallthru
          _
      $region60: #{tpu_custom_call.1} parent=5 // pred_fallthru
        _
      %p2755 = scmp.le.s32.totalorder 2, %s24
      // Predicated region
      $region89: #{tpu_custom_call.1} parent=5 // pred_check
        %p2756 = pneg %p2755
      $region90: #{tpu_custom_call.1} parent=5 // pred_check_branch
        %2758 = sbr.rel (%p2756) target = $region92
      $region91: #{tpu_custom_call.1} parent=5 // pred_region
        %s2759 = ssub.s32 %s24, 2
        // Predicated region
        $region93: #{tpu_custom_call.1} parent=91 // pred_check
          %p2760 = pneg %p273
        $region94: #{tpu_custom_call.1} parent=91 // pred_check_branch
          %2762 = sbr.rel (%p2760) target = $region96
        $region95: #{tpu_custom_call.1} parent=91 // pred_region
          %s2763 = sand.u32 %s258, 1
          %s2764 = scalar_lea.sflag [#allocation5], %s2763
          %s2765 = sand.u32 %s258, 1
          %s2766 = smul.addr %s2765, 256
          %s2767 = scalar_lea.vmem [#allocation13], %s2766
          %2768 = dma.done %s2764, 4096
        $region96: #{tpu_custom_call.1} parent=91 // pred_fallthru
          _
      $region92: #{tpu_custom_call.1} parent=5 // pred_fallthru
        _
    $region6: #{tpu_custom_call.1} parent=1 // loop_footer
      %s28 = sadd.s32 1, %s24
    $region7: #{tpu_custom_call.1} parent=1 // loop_footer_branch
      %23 = sbr.rel target = $region3
    $region8: #{tpu_custom_call.1} parent=1 // loop_exit
      _
    %2769 = vsyncpa [#allocation4], 1
    %s2770 = scalar_lea.sflag [#allocation4], 1
    %2771 = vsyncpa %s2770, 1
    %2772 = vsyncpa [#allocation7], 1
    %2773 = vsyncpa [#allocation10], 1
    %2774 = vsyncpa [#allocation5], 1
    %s2775 = scalar_lea.sflag [#allocation5], 1
    %2776 = vsyncpa %s2775, 1

</llo_original>
